<compile_context>
chip_gen: v6e
topology: v6e:2x2x1
jax: 0.10.0
libtpu: 0.0.40
codegen_flags: <defaults>
</compile_context>

<pallas_src>
import functools

import jax
import jax.numpy as jnp
from jax.experimental import pallas as pl
from jax.experimental.pallas import tpu as pltpu


# ----------------------------------------------------------------------------
# Pallas kernel: fused (scaled-weight) matmul + shift + optional ReLU
# ----------------------------------------------------------------------------
def _mm_bn_relu_kernel(w_ref, x_ref, shift_ref, o_ref, *, relu):
    # w_ref: (Np, Kp) bf16, x_ref: (Kp, tm) bf16, shift_ref: (Np, 1) f32
    acc = jnp.dot(w_ref[...], x_ref[...], preferred_element_type=jnp.float32)
    y = acc + shift_ref[...]          # broadcast per-output-channel shift
    if relu:
        y = jnp.maximum(y, 0.0)
    o_ref[...] = y.astype(o_ref.dtype)


def fused_matmul_bn_relu(wmat, patchesT, shift, relu):
    """out[n, m] = maybe_relu(sum_k wmat[n,k] * patchesT[k,m] + shift[n])."""
    N, K = wmat.shape
    K2, M = patchesT.shape
    assert K == K2

    # Zero-pad K to a multiple of 16 (bf16 sublane packing) and N to a
    # multiple of 8 so every vector load/store is unmasked.  Neutral math.
    Kp = -(-K // 16) * 16
    Np = -(-N // 8) * 8
    if Kp != K:
        wmat = jnp.pad(wmat, ((0, 0), (0, Kp - K)))
        patchesT = jnp.pad(patchesT, ((0, Kp - K), (0, 0)))
    if Np != N:
        wmat = jnp.pad(wmat, ((0, Np - N), (0, 0)))
        shift = jnp.pad(shift, ((0, Np - N),))

    # Single block unless M is large: keep >=2 parallel steps for v7x's two
    # TensorCores; per-grid-step overhead (~0.35us) stays negligible.
    grid_m = 2 if (M >= 1024 and (M // 2) % 128 == 0) else 1
    tm = M // grid_m

    out = pl.pallas_call(
        functools.partial(_mm_bn_relu_kernel, relu=relu),
        out_shape=jax.ShapeDtypeStruct((Np, M), jnp.float32),
        grid=(grid_m,),
        in_specs=[
            pl.BlockSpec((Np, Kp), lambda i: (0, 0)),
            pl.BlockSpec((Kp, tm), lambda i: (0, i)),
            pl.BlockSpec((Np, 1), lambda i: (0, 0)),
        ],
        out_specs=pl.BlockSpec((Np, tm), lambda i: (0, i)),
        compiler_params=pltpu.CompilerParams(
            dimension_semantics=("parallel",)),
    )(wmat.astype(jnp.bfloat16),
      patchesT.astype(jnp.bfloat16),
      shift.astype(jnp.float32).reshape(Np, 1))

    return out[:N] if Np != N else out


# ----------------------------------------------------------------------------
# im2col glue (channels-leading layout -> patches already in (K, M), no
# transposes, only pad / slice / stack / reshape)
# ----------------------------------------------------------------------------
def im2col_3d(x, stride):
    """Conv3d k=3, pad=1.  x: (C,B,D,H,W) -> ((C*27, B*Do*Ho*Wo), dims)."""
    C, B, D, H, W = x.shape
    Do = (D - 1) // stride + 1
    Ho = (H - 1) // stride + 1
    Wo = (W - 1) // stride + 1
    xp = jnp.pad(x, ((0, 0), (0, 0), (1, 1), (1, 1), (1, 1)))
    cols = []
    for kd in range(3):
        for kh in range(3):
            for kw in range(3):
                cols.append(
                    xp[:, :,
                       kd:kd + stride * (Do - 1) + 1:stride,
                       kh:kh + stride * (Ho - 1) + 1:stride,
                       kw:kw + stride * (Wo - 1) + 1:stride])
    p = jnp.stack(cols, axis=1)                      # (C, 27, B, Do, Ho, Wo)
    return p.reshape(C * 27, B * Do * Ho * Wo), (B, Do, Ho, Wo)


def im2col_2d_k3(x):
    """Conv2d k=3, s=1, pad=1.  x: (C,B,H,W) -> ((C*9, B*H*W), dims)."""
    C, B, H, W = x.shape
    xp = jnp.pad(x, ((0, 0), (0, 0), (1, 1), (1, 1)))
    cols = [xp[:, :, kh:kh + H, kw:kw + W] for kh in range(3) for kw in range(3)]
    p = jnp.stack(cols, axis=1)                      # (C, 9, B, H, W)
    return p.reshape(C * 9, B * H * W), (B, H, W)


def im2col_convT_2d(x):
    """ConvTranspose2d(k=4,s=2,p=1) == stride-1 conv over zero-dilated, pad-2 input."""
    C, B, H, W = x.shape
    Ho, Wo = 2 * H, 2 * W
    xd = jnp.zeros((C, B, 2 * H - 1, 2 * W - 1), x.dtype).at[:, :, ::2, ::2].set(x)
    xp = jnp.pad(xd, ((0, 0), (0, 0), (2, 2), (2, 2)))
    cols = [xp[:, :, kh:kh + Ho, kw:kw + Wo] for kh in range(4) for kw in range(4)]
    p = jnp.stack(cols, axis=1)                      # (C, 16, B, Ho, Wo)
    return p.reshape(C * 16, B * Ho * Wo), (B, Ho, Wo)


def bn_fold(conv_bias, gamma, beta, rmean, rvar, eps=1e-5):
    scale = gamma / jnp.sqrt(rvar + eps)
    shift = (conv_bias - rmean) * scale + beta
    return scale, shift


# ----------------------------------------------------------------------------
# Parameters (deterministic synthetic init, shapes match the nn.Module)
# ----------------------------------------------------------------------------
def init_params(key, hidden_dim, input_channels, output_dim):
    ks = jax.random.split(key, 32)
    idx = [0]

    def nxt():
        k = ks[idx[0]]
        idx[0] += 1
        return k

    def rnd(shape, scale=0.1):
        return scale * jax.random.normal(nxt(), shape, jnp.float32)

    hd = hidden_dim
    p = {}
    # Conv3d weights: (Cout, Cin, 3, 3, 3)
    for name, cin, cout in [("enc1", input_channels, hd),
                            ("enc2", hd, 2 * hd),
                            ("enc3", 2 * hd, 4 * hd)]:
        p[name] = dict(
            w=rnd((cout, cin, 3, 3, 3)),
            b=rnd((cout,)),
            gamma=1.0 + rnd((cout,)),
            beta=rnd((cout,)),
            rmean=rnd((cout,)),
            rvar=jax.random.uniform(nxt(), (cout,), jnp.float32, 0.5, 1.5),
        )
    # ConvTranspose2d weights: (Cin, Cout, 4, 4)
    for name, cin, cout in [("dec1", 4 * hd, 2 * hd),
                            ("dec2", 2 * hd, hd)]:
        p[name] = dict(
            w=rnd((cin, cout, 4, 4)),
            b=rnd((cout,)),
            gamma=1.0 + rnd((cout,)),
            beta=rnd((cout,)),
            rmean=rnd((cout,)),
            rvar=jax.random.uniform(nxt(), (cout,), jnp.float32, 0.5, 1.5),
        )
    # Final Conv2d: (Cout, Cin, 3, 3)
    p["dec3"] = dict(w=rnd((output_dim, hd, 3, 3)), b=rnd((output_dim,)))
    return p


# ----------------------------------------------------------------------------
# Forward pass (activations stay channels-leading: (C, B, D, H, W)/(C, B, H, W))
# ----------------------------------------------------------------------------
def generator_forward(params, img, angles, hint):
    # img: (B, D, H, W); angles, hint: (B, H, W)
    B, D, H, W = img.shape
    img5 = img[None]                                                     # (1,B,D,H,W)
    ang5 = jnp.broadcast_to(angles[None, :, None], (1, B, D, H, W))
    hin5 = jnp.broadcast_to(hint[None, :, None], (1, B, D, H, W))
    x = jnp.concatenate([img5, ang5, hin5], axis=0)                      # (3,B,D,H,W)

    def enc_block(x_cf, prm, stride):
        cout = prm["w"].shape[0]
        patchesT, (b, d, h, w) = im2col_3d(x_cf, stride)
        scale, shift = bn_fold(prm["b"], prm["gamma"], prm["beta"],
                               prm["rmean"], prm["rvar"])
        wmat = prm["w"].reshape(cout, -1) * scale[:, None]   # BN scale folded in
        out = fused_matmul_bn_relu(wmat, patchesT, shift, relu=True)
        return out.reshape(cout, b, d, h, w)

    enc1 = enc_block(x, params["enc1"], 1)        # ( hd, B, D,   H,   W)
    enc2 = enc_block(enc1, params["enc2"], 2)     # (2hd, B, D/2, H/2, W/2)
    enc3 = enc_block(enc2, params["enc3"], 2)     # (4hd, B, D/4, H/4, W/4)

    # AdaptiveAvgPool3d((1,None,None)) + squeeze: mean over depth (tiny; XLA)
    x2d = jnp.mean(enc3, axis=2)                  # (4hd, B, H/4, W/4)

    def dec_block(x_cf, prm):
        cout = prm["w"].shape[1]
        patchesT, (b, h, w) = im2col_convT_2d(x_cf)
        # equivalent stride-1 conv weight: W'[co,ci,i,j] = W[ci,co,3-i,3-j]
        wc = jnp.flip(prm["w"], axis=(2, 3)).transpose(1, 0, 2, 3)
        scale, shift = bn_fold(prm["b"], prm["gamma"], prm["beta"],
                               prm["rmean"], prm["rvar"])
        wmat = wc.reshape(cout, -1) * scale[:, None]
        out = fused_matmul_bn_relu(wmat, patchesT, shift, relu=True)
        return out.reshape(cout, b, h, w)

    dec1 = dec_block(x2d, params["dec1"])         # (2hd, B, H/2, W/2)
    dec2 = dec_block(dec1, params["dec2"])        # ( hd, B, H,   W)

    # decoder3: plain Conv2d(hd, output_dim, 3, 1, 1), no BN / ReLU
    prm = params["dec3"]
    cout = prm["w"].shape[0]
    patchesT, (b, h, w) = im2col_2d_k3(dec2)
    wmat = prm["w"].reshape(cout, -1)
    out = fused_matmul_bn_relu(wmat, patchesT, prm["b"], relu=False)
    dec3 = out.reshape(cout, b, h, w)             # (out, B, H, W)

    if cout == 1:                                 # mirrors torch squeeze(1)
        return dec3[0]                            # (B, H, W)
    return dec3.transpose(1, 0, 2, 3)             # (B, out, H, W)


# ----------------------------------------------------------------------------
if __name__ == "__main__":
    hidden_dim, input_channels, output_dim, dropout = 8, 3, 1, 0.1
    B, D, H, W = 2, 8, 16, 16

    key = jax.random.PRNGKey(0)
    k_img, k_ang, k_hint, k_params = jax.random.split(key, 4)
    img = jax.random.normal(k_img, (B, D, H, W), jnp.float32)
    angles = jax.random.normal(k_ang, (B, H, W), jnp.float32)
    hint = jax.random.normal(k_hint, (B, H, W), jnp.float32)

    params = init_params(k_params, hidden_dim, input_channels, output_dim)

    fwd = jax.jit(generator_forward)
    out = fwd(params, img, angles, hint)
    jax.block_until_ready(out)

    assert out.shape == (B, H, W), out.shape
    assert bool(jnp.all(jnp.isfinite(out)))
    print("KERNEL_OK")
</pallas_src>

<mosaic_0001>
module attributes {stable_mosaic.version = 11 : i64} {
  func.func @_mm_bn_relu_kernel(%arg0: i32, %arg1: memref<8x96xbf16, #tpu.memory_space<vmem>>, %arg2: memref<96x2048xbf16, #tpu.memory_space<vmem>>, %arg3: memref<8x1xf32, #tpu.memory_space<vmem>>, %arg4: memref<8x2048xf32, #tpu.memory_space<vmem>>) attributes {dimension_semantics = [#tpu.dimension_semantics<parallel>], iteration_bounds = array<i64: 2>, scalar_prefetch = 0 : i64, scratch_operands = 0 : i64, tpu.core_type = #tpu.core_type<tc>, window_params = [{pipeline_mode = #tpu.pipeline_mode<synchronous>, transform_indices = @transform_0, window_bounds = array<i64: 8, 96>}, {transform_indices = @transform_1, window_bounds = array<i64: 96, 2048>}, {pipeline_mode = #tpu.pipeline_mode<synchronous>, transform_indices = @transform_2, window_bounds = array<i64: 8, 1>}, {transform_indices = @transform_3, window_bounds = array<i64: 8, 2048>}]} {
    %c0 = arith.constant 0 : index
    %c0_0 = arith.constant 0 : index
    %0 = vector.load %arg1[%c0, %c0_0] : memref<8x96xbf16, #tpu.memory_space<vmem>>, vector<8x96xbf16>
    %c0_1 = arith.constant 0 : index
    %c0_2 = arith.constant 0 : index
    %1 = vector.load %arg2[%c0_1, %c0_2] : memref<96x2048xbf16, #tpu.memory_space<vmem>>, vector<96x2048xbf16>
    %cst = arith.constant dense<0.000000e+00> : vector<8x2048xf32>
    %2 = tpu.matmul %0, %1, %cst {dimension_numbers = #tpu.dot_dimension_numbers<[1], [0], [0], [1], [0, 0, 1, 1], [], []>} : vector<8x96xbf16>, vector<96x2048xbf16>, vector<8x2048xf32> -> vector<8x2048xf32>
    %c0_3 = arith.constant 0 : index
    %c0_4 = arith.constant 0 : index
    %3 = vector.load %arg3[%c0_3, %c0_4] : memref<8x1xf32, #tpu.memory_space<vmem>>, vector<8x1xf32>
    %4 = vector.broadcast %3 : vector<8x1xf32> to vector<8x2048xf32>
    %5 = arith.addf %2, %4 : vector<8x2048xf32>
    %cst_5 = arith.constant 0.000000e+00 : f32
    %6 = vector.broadcast %cst_5 : f32 to vector<8x2048xf32>
    %7 = arith.maximumf %5, %6 : vector<8x2048xf32>
    %c0_6 = arith.constant 0 : index
    %c0_7 = arith.constant 0 : index
    %8 = vector.load %arg4[%c0_6, %c0_7] : memref<8x2048xf32, #tpu.memory_space<vmem>>, vector<8x2048xf32>
    tpu.vector_store %arg4[%c0_6, %c0_7], %7 {strides = array<i32>} : memref<8x2048xf32, #tpu.memory_space<vmem>>, vector<8x2048xf32>,
    return
  }
  func.func @transform_0(%arg0: i32) -> (i32, i32) {
    %c0_i32 = arith.constant 0 : i32
    %c0_i32_0 = arith.constant 0 : i32
    %c0_i32_1 = arith.constant 0 : i32
    return %c0_i32, %c0_i32_0 : i32, i32
  }
  func.func @transform_1(%arg0: i32) -> (i32, i32) {
    %c0_i32 = arith.constant 0 : i32
    %c0_i32_0 = arith.constant 0 : i32
    return %c0_i32, %arg0 : i32, i32
  }
  func.func @transform_2(%arg0: i32) -> (i32, i32) {
    %c0_i32 = arith.constant 0 : i32
    %c0_i32_0 = arith.constant 0 : i32
    %c0_i32_1 = arith.constant 0 : i32
    return %c0_i32, %c0_i32_0 : i32, i32
  }
  func.func @transform_3(%arg0: i32) -> (i32, i32) {
    %c0_i32 = arith.constant 0 : i32
    %c0_i32_0 = arith.constant 0 : i32
    return %c0_i32, %arg0 : i32, i32
  }
}

module attributes {stable_mosaic.version = 11 : i64} {
  func.func @_mm_bn_relu_kernel(%arg0: i32, %arg1: memref<16x224xbf16, #tpu.memory_space<vmem>>, %arg2: memref<224x512xbf16, #tpu.memory_space<vmem>>, %arg3: memref<16x1xf32, #tpu.memory_space<vmem>>, %arg4: memref<16x512xf32, #tpu.memory_space<vmem>>) attributes {dimension_semantics = [#tpu.dimension_semantics<parallel>], iteration_bounds = array<i64: 1>, scalar_prefetch = 0 : i64, scratch_operands = 0 : i64, tpu.core_type = #tpu.core_type<tc>, window_params = [{pipeline_mode = #tpu.pipeline_mode<synchronous>, transform_indices = @transform_0, window_bounds = array<i64: 16, 224>}, {transform_indices = @transform_1, window_bounds = array<i64: 224, 512>}, {pipeline_mode = #tpu.pipeline_mode<synchronous>, transform_indices = @transform_2, window_bounds = array<i64: 16, 1>}, {transform_indices = @transform_3, window_bounds = array<i64: 16, 512>}]} {
    %c0 = arith.constant 0 : index
    %c0_0 = arith.constant 0 : index
    %0 = vector.load %arg1[%c0, %c0_0] : memref<16x224xbf16, #tpu.memory_space<vmem>>, vector<16x224xbf16>
    %c0_1 = arith.constant 0 : index
    %c0_2 = arith.constant 0 : index
    %1 = vector.load %arg2[%c0_1, %c0_2] : memref<224x512xbf16, #tpu.memory_space<vmem>>, vector<224x512xbf16>
    %cst = arith.constant dense<0.000000e+00> : vector<16x512xf32>
    %2 = tpu.matmul %0, %1, %cst {dimension_numbers = #tpu.dot_dimension_numbers<[1], [0], [0], [1], [0, 0, 1, 1], [], []>} : vector<16x224xbf16>, vector<224x512xbf16>, vector<16x512xf32> -> vector<16x512xf32>
    %c0_3 = arith.constant 0 : index
    %c0_4 = arith.constant 0 : index
    %3 = vector.load %arg3[%c0_3, %c0_4] : memref<16x1xf32, #tpu.memory_space<vmem>>, vector<16x1xf32>
    %4 = vector.broadcast %3 : vector<16x1xf32> to vector<16x512xf32>
    %5 = arith.addf %2, %4 : vector<16x512xf32>
    %cst_5 = arith.constant 0.000000e+00 : f32
    %6 = vector.broadcast %cst_5 : f32 to vector<16x512xf32>
    %7 = arith.maximumf %5, %6 : vector<16x512xf32>
    %c0_6 = arith.constant 0 : index
    %c0_7 = arith.constant 0 : index
    %8 = vector.load %arg4[%c0_6, %c0_7] : memref<16x512xf32, #tpu.memory_space<vmem>>, vector<16x512xf32>
    tpu.vector_store %arg4[%c0_6, %c0_7], %7 {strides = array<i32>} : memref<16x512xf32, #tpu.memory_space<vmem>>, vector<16x512xf32>,
    return
  }
  func.func @transform_0(%arg0: i32) -> (i32, i32) {
    %c0_i32 = arith.constant 0 : i32
    %c0_i32_0 = arith.constant 0 : i32
    %c0_i32_1 = arith.constant 0 : i32
    return %c0_i32, %c0_i32_0 : i32, i32
  }
  func.func @transform_1(%arg0: i32) -> (i32, i32) {
    %c0_i32 = arith.constant 0 : i32
    %c0_i32_0 = arith.constant 0 : i32
    return %c0_i32, %arg0 : i32, i32
  }
  func.func @transform_2(%arg0: i32) -> (i32, i32) {
    %c0_i32 = arith.constant 0 : i32
    %c0_i32_0 = arith.constant 0 : i32
    %c0_i32_1 = arith.constant 0 : i32
    return %c0_i32, %c0_i32_0 : i32, i32
  }
  func.func @transform_3(%arg0: i32) -> (i32, i32) {
    %c0_i32 = arith.constant 0 : i32
    %c0_i32_0 = arith.constant 0 : i32
    return %c0_i32, %arg0 : i32, i32
  }
}

module attributes {stable_mosaic.version = 11 : i64} {
  func.func @_mm_bn_relu_kernel(%arg0: i32, %arg1: memref<32x432xbf16, #tpu.memory_space<vmem>>, %arg2: memref<432x64xbf16, #tpu.memory_space<vmem>>, %arg3: memref<32x1xf32, #tpu.memory_space<vmem>>, %arg4: memref<32x64xf32, #tpu.memory_space<vmem>>) attributes {dimension_semantics = [#tpu.dimension_semantics<parallel>], iteration_bounds = array<i64: 1>, scalar_prefetch = 0 : i64, scratch_operands = 0 : i64, tpu.core_type = #tpu.core_type<tc>, window_params = [{pipeline_mode = #tpu.pipeline_mode<synchronous>, transform_indices = @transform_0, window_bounds = array<i64: 32, 432>}, {transform_indices = @transform_1, window_bounds = array<i64: 432, 64>}, {pipeline_mode = #tpu.pipeline_mode<synchronous>, transform_indices = @transform_2, window_bounds = array<i64: 32, 1>}, {transform_indices = @transform_3, window_bounds = array<i64: 32, 64>}]} {
    %c0 = arith.constant 0 : index
    %c0_0 = arith.constant 0 : index
    %0 = vector.load %arg1[%c0, %c0_0] : memref<32x432xbf16, #tpu.memory_space<vmem>>, vector<32x432xbf16>
    %c0_1 = arith.constant 0 : index
    %c0_2 = arith.constant 0 : index
    %1 = vector.load %arg2[%c0_1, %c0_2] : memref<432x64xbf16, #tpu.memory_space<vmem>>, vector<432x64xbf16>
    %cst = arith.constant dense<0.000000e+00> : vector<32x64xf32>
    %2 = tpu.matmul %0, %1, %cst {dimension_numbers = #tpu.dot_dimension_numbers<[1], [0], [0], [1], [0, 0, 1, 1], [], []>} : vector<32x432xbf16>, vector<432x64xbf16>, vector<32x64xf32> -> vector<32x64xf32>
    %c0_3 = arith.constant 0 : index
    %c0_4 = arith.constant 0 : index
    %3 = vector.load %arg3[%c0_3, %c0_4] : memref<32x1xf32, #tpu.memory_space<vmem>>, vector<32x1xf32>
    %4 = vector.broadcast %3 : vector<32x1xf32> to vector<32x64xf32>
    %5 = arith.addf %2, %4 : vector<32x64xf32>
    %cst_5 = arith.constant 0.000000e+00 : f32
    %6 = vector.broadcast %cst_5 : f32 to vector<32x64xf32>
    %7 = arith.maximumf %5, %6 : vector<32x64xf32>
    %c0_6 = arith.constant 0 : index
    %c0_7 = arith.constant 0 : index
    %8 = vector.load %arg4[%c0_6, %c0_7] : memref<32x64xf32, #tpu.memory_space<vmem>>, vector<32x64xf32>
    tpu.vector_store %arg4[%c0_6, %c0_7], %7 {strides = array<i32>} : memref<32x64xf32, #tpu.memory_space<vmem>>, vector<32x64xf32>,
    return
  }
  func.func @transform_0(%arg0: i32) -> (i32, i32) {
    %c0_i32 = arith.constant 0 : i32
    %c0_i32_0 = arith.constant 0 : i32
    %c0_i32_1 = arith.constant 0 : i32
    return %c0_i32, %c0_i32_0 : i32, i32
  }
  func.func @transform_1(%arg0: i32) -> (i32, i32) {
    %c0_i32 = arith.constant 0 : i32
    %c0_i32_0 = arith.constant 0 : i32
    return %c0_i32, %arg0 : i32, i32
  }
  func.func @transform_2(%arg0: i32) -> (i32, i32) {
    %c0_i32 = arith.constant 0 : i32
    %c0_i32_0 = arith.constant 0 : i32
    %c0_i32_1 = arith.constant 0 : i32
    return %c0_i32, %c0_i32_0 : i32, i32
  }
  func.func @transform_3(%arg0: i32) -> (i32, i32) {
    %c0_i32 = arith.constant 0 : i32
    %c0_i32_0 = arith.constant 0 : i32
    return %c0_i32, %arg0 : i32, i32
  }
}

module attributes {stable_mosaic.version = 11 : i64} {
  func.func @_mm_bn_relu_kernel(%arg0: i32, %arg1: memref<16x512xbf16, #tpu.memory_space<vmem>>, %arg2: memref<512x128xbf16, #tpu.memory_space<vmem>>, %arg3: memref<16x1xf32, #tpu.memory_space<vmem>>, %arg4: memref<16x128xf32, #tpu.memory_space<vmem>>) attributes {dimension_semantics = [#tpu.dimension_semantics<parallel>], iteration_bounds = array<i64: 1>, scalar_prefetch = 0 : i64, scratch_operands = 0 : i64, tpu.core_type = #tpu.core_type<tc>, window_params = [{pipeline_mode = #tpu.pipeline_mode<synchronous>, transform_indices = @transform_0, window_bounds = array<i64: 16, 512>}, {transform_indices = @transform_1, window_bounds = array<i64: 512, 128>}, {pipeline_mode = #tpu.pipeline_mode<synchronous>, transform_indices = @transform_2, window_bounds = array<i64: 16, 1>}, {transform_indices = @transform_3, window_bounds = array<i64: 16, 128>}]} {
    %c0 = arith.constant 0 : index
    %c0_0 = arith.constant 0 : index
    %0 = vector.load %arg1[%c0, %c0_0] : memref<16x512xbf16, #tpu.memory_space<vmem>>, vector<16x512xbf16>
    %c0_1 = arith.constant 0 : index
    %c0_2 = arith.constant 0 : index
    %1 = vector.load %arg2[%c0_1, %c0_2] : memref<512x128xbf16, #tpu.memory_space<vmem>>, vector<512x128xbf16>
    %cst = arith.constant dense<0.000000e+00> : vector<16x128xf32>
    %2 = tpu.matmul %0, %1, %cst {dimension_numbers = #tpu.dot_dimension_numbers<[1], [0], [0], [1], [0, 0, 1, 1], [], []>} : vector<16x512xbf16>, vector<512x128xbf16>, vector<16x128xf32> -> vector<16x128xf32>
    %c0_3 = arith.constant 0 : index
    %c0_4 = arith.constant 0 : index
    %3 = vector.load %arg3[%c0_3, %c0_4] : memref<16x1xf32, #tpu.memory_space<vmem>>, vector<16x1xf32>
    %4 = vector.broadcast %3 : vector<16x1xf32> to vector<16x128xf32>
    %5 = arith.addf %2, %4 : vector<16x128xf32>
    %cst_5 = arith.constant 0.000000e+00 : f32
    %6 = vector.broadcast %cst_5 : f32 to vector<16x128xf32>
    %7 = arith.maximumf %5, %6 : vector<16x128xf32>
    %c0_6 = arith.constant 0 : index
    %c0_7 = arith.constant 0 : index
    %8 = vector.load %arg4[%c0_6, %c0_7] : memref<16x128xf32, #tpu.memory_space<vmem>>, vector<16x128xf32>
    tpu.vector_store %arg4[%c0_6, %c0_7], %7 {strides = array<i32>} : memref<16x128xf32, #tpu.memory_space<vmem>>, vector<16x128xf32>,
    return
  }
  func.func @transform_0(%arg0: i32) -> (i32, i32) {
    %c0_i32 = arith.constant 0 : i32
    %c0_i32_0 = arith.constant 0 : i32
    %c0_i32_1 = arith.constant 0 : i32
    return %c0_i32, %c0_i32_0 : i32, i32
  }
  func.func @transform_1(%arg0: i32) -> (i32, i32) {
    %c0_i32 = arith.constant 0 : i32
    %c0_i32_0 = arith.constant 0 : i32
    return %c0_i32, %arg0 : i32, i32
  }
  func.func @transform_2(%arg0: i32) -> (i32, i32) {
    %c0_i32 = arith.constant 0 : i32
    %c0_i32_0 = arith.constant 0 : i32
    %c0_i32_1 = arith.constant 0 : i32
    return %c0_i32, %c0_i32_0 : i32, i32
  }
  func.func @transform_3(%arg0: i32) -> (i32, i32) {
    %c0_i32 = arith.constant 0 : i32
    %c0_i32_0 = arith.constant 0 : i32
    return %c0_i32, %arg0 : i32, i32
  }
}

module attributes {stable_mosaic.version = 11 : i64} {
  func.func @_mm_bn_relu_kernel(%arg0: i32, %arg1: memref<8x256xbf16, #tpu.memory_space<vmem>>, %arg2: memref<256x512xbf16, #tpu.memory_space<vmem>>, %arg3: memref<8x1xf32, #tpu.memory_space<vmem>>, %arg4: memref<8x512xf32, #tpu.memory_space<vmem>>) attributes {dimension_semantics = [#tpu.dimension_semantics<parallel>], iteration_bounds = array<i64: 1>, scalar_prefetch = 0 : i64, scratch_operands = 0 : i64, tpu.core_type = #tpu.core_type<tc>, window_params = [{pipeline_mode = #tpu.pipeline_mode<synchronous>, transform_indices = @transform_0, window_bounds = array<i64: 8, 256>}, {transform_indices = @transform_1, window_bounds = array<i64: 256, 512>}, {pipeline_mode = #tpu.pipeline_mode<synchronous>, transform_indices = @transform_2, window_bounds = array<i64: 8, 1>}, {transform_indices = @transform_3, window_bounds = array<i64: 8, 512>}]} {
    %c0 = arith.constant 0 : index
    %c0_0 = arith.constant 0 : index
    %0 = vector.load %arg1[%c0, %c0_0] : memref<8x256xbf16, #tpu.memory_space<vmem>>, vector<8x256xbf16>
    %c0_1 = arith.constant 0 : index
    %c0_2 = arith.constant 0 : index
    %1 = vector.load %arg2[%c0_1, %c0_2] : memref<256x512xbf16, #tpu.memory_space<vmem>>, vector<256x512xbf16>
    %cst = arith.constant dense<0.000000e+00> : vector<8x512xf32>
    %2 = tpu.matmul %0, %1, %cst {dimension_numbers = #tpu.dot_dimension_numbers<[1], [0], [0], [1], [0, 0, 1, 1], [], []>} : vector<8x256xbf16>, vector<256x512xbf16>, vector<8x512xf32> -> vector<8x512xf32>
    %c0_3 = arith.constant 0 : index
    %c0_4 = arith.constant 0 : index
    %3 = vector.load %arg3[%c0_3, %c0_4] : memref<8x1xf32, #tpu.memory_space<vmem>>, vector<8x1xf32>
    %4 = vector.broadcast %3 : vector<8x1xf32> to vector<8x512xf32>
    %5 = arith.addf %2, %4 : vector<8x512xf32>
    %cst_5 = arith.constant 0.000000e+00 : f32
    %6 = vector.broadcast %cst_5 : f32 to vector<8x512xf32>
    %7 = arith.maximumf %5, %6 : vector<8x512xf32>
    %c0_6 = arith.constant 0 : index
    %c0_7 = arith.constant 0 : index
    %8 = vector.load %arg4[%c0_6, %c0_7] : memref<8x512xf32, #tpu.memory_space<vmem>>, vector<8x512xf32>
    tpu.vector_store %arg4[%c0_6, %c0_7], %7 {strides = array<i32>} : memref<8x512xf32, #tpu.memory_space<vmem>>, vector<8x512xf32>,
    return
  }
  func.func @transform_0(%arg0: i32) -> (i32, i32) {
    %c0_i32 = arith.constant 0 : i32
    %c0_i32_0 = arith.constant 0 : i32
    %c0_i32_1 = arith.constant 0 : i32
    return %c0_i32, %c0_i32_0 : i32, i32
  }
  func.func @transform_1(%arg0: i32) -> (i32, i32) {
    %c0_i32 = arith.constant 0 : i32
    %c0_i32_0 = arith.constant 0 : i32
    return %c0_i32, %arg0 : i32, i32
  }
  func.func @transform_2(%arg0: i32) -> (i32, i32) {
    %c0_i32 = arith.constant 0 : i32
    %c0_i32_0 = arith.constant 0 : i32
    %c0_i32_1 = arith.constant 0 : i32
    return %c0_i32, %c0_i32_0 : i32, i32
  }
  func.func @transform_3(%arg0: i32) -> (i32, i32) {
    %c0_i32 = arith.constant 0 : i32
    %c0_i32_0 = arith.constant 0 : i32
    return %c0_i32, %arg0 : i32, i32
  }
}

module attributes {stable_mosaic.version = 11 : i64} {
  func.func @_mm_bn_relu_kernel(%arg0: i32, %arg1: memref<8x80xbf16, #tpu.memory_space<vmem>>, %arg2: memref<80x512xbf16, #tpu.memory_space<vmem>>, %arg3: memref<8x1xf32, #tpu.memory_space<vmem>>, %arg4: memref<8x512xf32, #tpu.memory_space<vmem>>) attributes {dimension_semantics = [#tpu.dimension_semantics<parallel>], iteration_bounds = array<i64: 1>, scalar_prefetch = 0 : i64, scratch_operands = 0 : i64, tpu.core_type = #tpu.core_type<tc>, window_params = [{pipeline_mode = #tpu.pipeline_mode<synchronous>, transform_indices = @transform_0, window_bounds = array<i64: 8, 80>}, {transform_indices = @transform_1, window_bounds = array<i64: 80, 512>}, {pipeline_mode = #tpu.pipeline_mode<synchronous>, transform_indices = @transform_2, window_bounds = array<i64: 8, 1>}, {transform_indices = @transform_3, window_bounds = array<i64: 8, 512>}]} {
    %c0 = arith.constant 0 : index
    %c0_0 = arith.constant 0 : index
    %0 = vector.load %arg1[%c0, %c0_0] : memref<8x80xbf16, #tpu.memory_space<vmem>>, vector<8x80xbf16>
    %c0_1 = arith.constant 0 : index
    %c0_2 = arith.constant 0 : index
    %1 = vector.load %arg2[%c0_1, %c0_2] : memref<80x512xbf16, #tpu.memory_space<vmem>>, vector<80x512xbf16>
    %cst = arith.constant dense<0.000000e+00> : vector<8x512xf32>
    %2 = tpu.matmul %0, %1, %cst {dimension_numbers = #tpu.dot_dimension_numbers<[1], [0], [0], [1], [0, 0, 1, 1], [], []>} : vector<8x80xbf16>, vector<80x512xbf16>, vector<8x512xf32> -> vector<8x512xf32>
    %c0_3 = arith.constant 0 : index
    %c0_4 = arith.constant 0 : index
    %3 = vector.load %arg3[%c0_3, %c0_4] : memref<8x1xf32, #tpu.memory_space<vmem>>, vector<8x1xf32>
    %4 = vector.broadcast %3 : vector<8x1xf32> to vector<8x512xf32>
    %5 = arith.addf %2, %4 : vector<8x512xf32>
    %c0_5 = arith.constant 0 : index
    %c0_6 = arith.constant 0 : index
    %6 = vector.load %arg4[%c0_5, %c0_6] : memref<8x512xf32, #tpu.memory_space<vmem>>, vector<8x512xf32>
    tpu.vector_store %arg4[%c0_5, %c0_6], %5 {strides = array<i32>} : memref<8x512xf32, #tpu.memory_space<vmem>>, vector<8x512xf32>,
    return
  }
  func.func @transform_0(%arg0: i32) -> (i32, i32) {
    %c0_i32 = arith.constant 0 : i32
    %c0_i32_0 = arith.constant 0 : i32
    %c0_i32_1 = arith.constant 0 : i32
    return %c0_i32, %c0_i32_0 : i32, i32
  }
  func.func @transform_1(%arg0: i32) -> (i32, i32) {
    %c0_i32 = arith.constant 0 : i32
    %c0_i32_0 = arith.constant 0 : i32
    return %c0_i32, %arg0 : i32, i32
  }
  func.func @transform_2(%arg0: i32) -> (i32, i32) {
    %c0_i32 = arith.constant 0 : i32
    %c0_i32_0 = arith.constant 0 : i32
    %c0_i32_1 = arith.constant 0 : i32
    return %c0_i32, %c0_i32_0 : i32, i32
  }
  func.func @transform_3(%arg0: i32) -> (i32, i32) {
    %c0_i32 = arith.constant 0 : i32
    %c0_i32_0 = arith.constant 0 : i32
    return %c0_i32, %arg0 : i32, i32
  }
}

</mosaic_0001>

<llo_original>
// kernel: generator_forward.6
$region0: #{generator_forward.6}
  #allocation0 [shape = 'u32[]', space=smem, size = 0x4, offset = 0x4, fixed_abs, tag = 'smem constant byte address 0x4 - core index']
  #allocation1 [shape = 'u32[144,128]{1,0:T(1,128)}', space=vmem, size = 0x12000, scoped, tag = 'internal scratch']
  %s0 = inlined_call_operand.vmem [shape: bf16[8,96], index: 0, kind: input, shape index: {}]
  %s1 = inlined_call_operand.vmem [shape: bf16[96,4096], index: 1, kind: input, shape index: {}]
  %s2 = inlined_call_operand.vmem [shape: f32[8,1], index: 2, kind: input, shape index: {}]
  %s3 = inlined_call_operand.vmem [shape: f32[8,4096], index: 3, kind: output, shape index: {}]
  %s4 = sld [smem:[#allocation0]]
  $region68: #{generator_forward.6} parent=0
    _
  %s6 = ssub.s32 1, %s4
  %s7 = scalar_select 0, %s6, %s4
  $region1: #{generator_forward.6} parent=0
    #allocation2 [shape = 'u8[786432]{0}', space=vmem, size = 0xc0000, scoped, tag = 'input window, operand 1']
    loop: start=0, step=1, limit=4
    $region2: #{generator_forward.6} parent=1 // loop_pre_header
      _
    $region3: #{generator_forward.6} parent=1 // loop_header
      %s9 = sphi 0, %s13
      %p10 = scmp.ge.s32.totalorder %s9, 4
      %s17 = sphi 0, %s17
      %s19 = sphi 0, %s17
      %s20 = sphi 0, %s19
      %s34 = sphi 0, %s20
      %s40 = sphi 0, %s42
      %s43 = sphi 0, %s40
      %s44 = sphi 0, %s43
      %s60 = sphi 0, %s44
      %s64 = sphi 0, %s64
      %s66 = sphi 0, %s64
      %s67 = sphi 0, %s66
      %s81 = sphi 0, %s67
      %s87 = sphi 0, %s89
      %s90 = sphi 0, %s87
      %s91 = sphi 0, %s90
      %s107 = sphi 0, %s91
    $region4: #{generator_forward.6} parent=1 // loop_header_branch
      %12 = sbr.rel (%p10) target = $region8
    $region5: #{generator_forward.6} parent=1 // loop_body
      %s14 = ssub.s32 %s9, 1
      %s15 = ssub.s32 %s9, 2
      %s16 = sadd.s32 %s9, 1
      %s18 = sadd.s32 %s17, 1
      %p21 = scmp.eq.s32.totalorder %s9, 1
      %p22 = scmp.ne.s32.totalorder %s17, %s19
      %p23 = scmp.eq.s32.totalorder %s9, 0
      %p24 = por %p22, %p23
      %p25 = scmp.ne.s32.totalorder %s17, %s19
      %p26 = scmp.eq.s32.totalorder %s14, 1
      %p27 = por %p25, %p26
      %p28 = scmp.ne.s32.totalorder %s19, %s20
      %p29 = scmp.eq.s32.totalorder %s14, 0
      %p30 = por %p28, %p29
      %p31 = scmp.ne.s32.totalorder %s19, %s20
      %p32 = scmp.eq.s32.totalorder %s15, 1
      %p33 = por %p31, %p32
      %p35 = scmp.ne.s32.totalorder %s20, %s34
      %p36 = scmp.eq.s32.totalorder %s15, 0
      %p37 = por %p35, %p36
      %s38 = ssub.s32 %s9, %s16
      %p39 = scmp.eq.s32.totalorder %s38, 0
      %s41 = sadd.s32 %s40, 1
      %s42 = scalar_select %p39, %s40, %s41
      %p45 = pneg %p39
      %p46 = scmp.eq.s32.totalorder %s9, 1
      %p47 = por %p45, %p46
      %p48 = scmp.ne.s32.totalorder %s40, %s43
      %p49 = scmp.eq.s32.totalorder %s9, 0
      %p50 = por %p48, %p49
      %p51 = scmp.ne.s32.totalorder %s40, %s43
      %p52 = scmp.eq.s32.totalorder %s14, 1
      %p53 = por %p51, %p52
      %p54 = scmp.ne.s32.totalorder %s43, %s44
      %p55 = scmp.eq.s32.totalorder %s14, 0
      %p56 = por %p54, %p55
      %p57 = scmp.ne.s32.totalorder %s43, %s44
      %p58 = scmp.eq.s32.totalorder %s15, 1
      %p59 = por %p57, %p58
      %p61 = scmp.ne.s32.totalorder %s44, %s60
      %p62 = scmp.eq.s32.totalorder %s15, 0
      %p63 = por %p61, %p62
      %s65 = sadd.s32 %s64, 1
      %p68 = scmp.eq.s32.totalorder %s9, 1
      %p69 = scmp.ne.s32.totalorder %s64, %s66
      %p70 = scmp.eq.s32.totalorder %s9, 0
      %p71 = por %p69, %p70
      %p72 = scmp.ne.s32.totalorder %s64, %s66
      %p73 = scmp.eq.s32.totalorder %s14, 1
      %p74 = por %p72, %p73
      %p75 = scmp.ne.s32.totalorder %s66, %s67
      %p76 = scmp.eq.s32.totalorder %s14, 0
      %p77 = por %p75, %p76
      %p78 = scmp.ne.s32.totalorder %s66, %s67
      %p79 = scmp.eq.s32.totalorder %s15, 1
      %p80 = por %p78, %p79
      %p82 = scmp.ne.s32.totalorder %s67, %s81
      %p83 = scmp.eq.s32.totalorder %s15, 0
      %p84 = por %p82, %p83
      %s85 = ssub.s32 %s9, %s16
      %p86 = scmp.eq.s32.totalorder %s85, 0
      %s88 = sadd.s32 %s87, 1
      %s89 = scalar_select %p86, %s87, %s88
      %p92 = pneg %p86
      %p93 = scmp.eq.s32.totalorder %s9, 1
      %p94 = por %p92, %p93
      %p95 = scmp.ne.s32.totalorder %s87, %s90
      %p96 = scmp.eq.s32.totalorder %s9, 0
      %p97 = por %p95, %p96
      %p98 = scmp.ne.s32.totalorder %s87, %s90
      %p99 = scmp.eq.s32.totalorder %s14, 1
      %p100 = por %p98, %p99
      %p101 = scmp.ne.s32.totalorder %s90, %s91
      %p102 = scmp.eq.s32.totalorder %s14, 0
      %p103 = por %p101, %p102
      %p104 = scmp.ne.s32.totalorder %s90, %s91
      %p105 = scmp.eq.s32.totalorder %s15, 1
      %p106 = por %p104, %p105
      %p108 = scmp.ne.s32.totalorder %s91, %s107
      %p109 = scmp.eq.s32.totalorder %s15, 0
      %p110 = por %p108, %p109
      %p111 = scmp.le.s32.totalorder 1, %s9
      %p112 = scmp.lt.s32.totalorder %s9, 3
      %p113 = pnand %p111, %p112
      %p114 = pneg %p113
      // Predicated region
      $region9: #{generator_forward.6} parent=5 // pred_check
        _
      $region10: #{generator_forward.6} parent=5 // pred_check_branch
        %116 = sbr.rel (%p113) target = $region12
      $region11: #{generator_forward.6} parent=5 // pred_region
        %s117 = ssub.s32 %s9, 1
        // Predicated region
        $region13: #{generator_forward.6} parent=11 // pred_check
          %p118 = pneg %p30
        $region14: #{generator_forward.6} parent=11 // pred_check_branch
          %120 = sbr.rel (%p118) target = $region16
        $region15: #{generator_forward.6} parent=11 // pred_region
          _
        $region16: #{generator_forward.6} parent=11 // pred_fallthru
          _
        // Predicated region
        $region17: #{generator_forward.6} parent=11 // pred_check
          %p121 = pneg %p77
        $region18: #{generator_forward.6} parent=11 // pred_check_branch
          %123 = sbr.rel (%p121) target = $region20
        $region19: #{generator_forward.6} parent=11 // pred_region
          _
        $region20: #{generator_forward.6} parent=11 // pred_fallthru
          _
      $region12: #{generator_forward.6} parent=5 // pred_fallthru
        _
      %p124 = scmp.lt.s32.totalorder %s9, 2
      // Predicated region
      $region21: #{generator_forward.6} parent=5 // pred_check
        %p125 = pneg %p124
      $region22: #{generator_forward.6} parent=5 // pred_check_branch
        %127 = sbr.rel (%p125) target = $region24
      $region23: #{generator_forward.6} parent=5 // pred_region
        // Predicated region
        $region25: #{generator_forward.6} parent=23 // pred_check
          %p128 = pneg %p50
        $region26: #{generator_forward.6} parent=23 // pred_check_branch
          %130 = sbr.rel (%p128) target = $region28
        $region27: #{generator_forward.6} parent=23 // pred_region
          %s131 = sand.u32 %s40, 1
          %s132 = sand.u32 %s40, 1
          %s133 = smul.addr %s132, 768
          %s134 = scalar_lea.vmem [#allocation2], %s133
          %s135 = smul.u32 16, %s9
          %s136 = smul.addr %s135, 4
          %s137 = scalar_lea.vmem %s1, %s136
          // Predicated region
          $region29: #{generator_forward.6} parent=27 // pred_check
            _
          $region30: #{generator_forward.6} parent=27 // pred_check_branch
            %139 = sbr.rel (0) target = $region32
          $region31: #{generator_forward.6} parent=27 // pred_region
            // Predicated region
            $region33: #{generator_forward.6} parent=31 // pred_check
              _
            $region34: #{generator_forward.6} parent=31 // pred_check_branch
              %141 = sbr.rel (0) target = $region36
            $region35: #{generator_forward.6} parent=31 // pred_region
              loop: start=0, step=1, limit=1
              $region37: #{generator_forward.6} parent=35 // loop_pre_header
                _
              $region38: #{generator_forward.6} parent=35 // loop_header
                %s143 = sphi 0, %s147
                %p144 = scmp.ge.s32.totalorder %s143, 1
                %s148 = sphi %s137, %s137
                %s149 = sphi %s134, %s134
              $region39: #{generator_forward.6} parent=35 // loop_header_branch
                %146 = sbr.rel (%p144) target = $region43
              $region40: #{generator_forward.6} parent=35 // loop_body
                %v150 = vld [vmem:[%s148] sm:$0xff]
                %151 = vst [vmem:[%s149] sm:$0xff] %v150
                %v152 = vld [vmem:[%s148 + $0x8] sm:$0xff]
                %153 = vst [vmem:[%s149 + $0x8] sm:$0xff] %v152
                %v154 = vld [vmem:[%s148 + $0x10] sm:$0xff]
                %155 = vst [vmem:[%s149 + $0x10] sm:$0xff] %v154
                %v156 = vld [vmem:[%s148 + $0x18] sm:$0xff]
                %157 = vst [vmem:[%s149 + $0x18] sm:$0xff] %v156
                %v158 = vld [vmem:[%s148 + $0x20] sm:$0xff]
                %159 = vst [vmem:[%s149 + $0x20] sm:$0xff] %v158
                %v160 = vld [vmem:[%s148 + $0x28] sm:$0xff]
                %161 = vst [vmem:[%s149 + $0x28] sm:$0xff] %v160
                %v162 = vld [vmem:[%s148 + $0x30] sm:$0xff]
                %163 = vst [vmem:[%s149 + $0x30] sm:$0xff] %v162
                %v164 = vld [vmem:[%s148 + $0x38] sm:$0xff]
                %165 = vst [vmem:[%s149 + $0x38] sm:$0xff] %v164
                %v166 = vld [vmem:[%s148 + $0x80] sm:$0xff]
                %167 = vst [vmem:[%s149 + $0x40] sm:$0xff] %v166
                %v168 = vld [vmem:[%s148 + $0x88] sm:$0xff]
                %169 = vst [vmem:[%s149 + $0x48] sm:$0xff] %v168
                %v170 = vld [vmem:[%s148 + $0x90] sm:$0xff]
                %171 = vst [vmem:[%s149 + $0x50] sm:$0xff] %v170
                %v172 = vld [vmem:[%s148 + $0x98] sm:$0xff]
                %173 = vst [vmem:[%s149 + $0x58] sm:$0xff] %v172
                %v174 = vld [vmem:[%s148 + $0xa0] sm:$0xff]
                %175 = vst [vmem:[%s149 + $0x60] sm:$0xff] %v174
                %v176 = vld [vmem:[%s148 + $0xa8] sm:$0xff]
                %177 = vst [vmem:[%s149 + $0x68] sm:$0xff] %v176
                %v178 = vld [vmem:[%s148 + $0xb0] sm:$0xff]
                %179 = vst [vmem:[%s149 + $0x70] sm:$0xff] %v178
                %v180 = vld [vmem:[%s148 + $0xb8] sm:$0xff]
                %181 = vst [vmem:[%s149 + $0x78] sm:$0xff] %v180
                %v182 = vld [vmem:[%s148 + $0x100] sm:$0xff]
                %183 = vst [vmem:[%s149 + $0x80] sm:$0xff] %v182
                %v184 = vld [vmem:[%s148 + $0x108] sm:$0xff]
                %185 = vst [vmem:[%s149 + $0x88] sm:$0xff] %v184
                %v186 = vld [vmem:[%s148 + $0x110] sm:$0xff]
                %187 = vst [vmem:[%s149 + $0x90] sm:$0xff] %v186
                %v188 = vld [vmem:[%s148 + $0x118] sm:$0xff]
                %189 = vst [vmem:[%s149 + $0x98] sm:$0xff] %v188
                %v190 = vld [vmem:[%s148 + $0x120] sm:$0xff]
                %191 = vst [vmem:[%s149 + $0xa0] sm:$0xff] %v190
                %v192 = vld [vmem:[%s148 + $0x128] sm:$0xff]
                %193 = vst [vmem:[%s149 + $0xa8] sm:$0xff] %v192
                %v194 = vld [vmem:[%s148 + $0x130] sm:$0xff]
                %195 = vst [vmem:[%s149 + $0xb0] sm:$0xff] %v194
                %v196 = vld [vmem:[%s148 + $0x138] sm:$0xff]
                %197 = vst [vmem:[%s149 + $0xb8] sm:$0xff] %v196
                %v198 = vld [vmem:[%s148 + $0x180] sm:$0xff]
                %199 = vst [vmem:[%s149 + $0xc0] sm:$0xff] %v198
                %v200 = vld [vmem:[%s148 + $0x188] sm:$0xff]
                %201 = vst [vmem:[%s149 + $0xc8] sm:$0xff] %v200
                %v202 = vld [vmem:[%s148 + $0x190] sm:$0xff]
                %203 = vst [vmem:[%s149 + $0xd0] sm:$0xff] %v202
                %v204 = vld [vmem:[%s148 + $0x198] sm:$0xff]
                %205 = vst [vmem:[%s149 + $0xd8] sm:$0xff] %v204
                %v206 = vld [vmem:[%s148 + $0x1a0] sm:$0xff]
                %207 = vst [vmem:[%s149 + $0xe0] sm:$0xff] %v206
                %v208 = vld [vmem:[%s148 + $0x1a8] sm:$0xff]
                %209 = vst [vmem:[%s149 + $0xe8] sm:$0xff] %v208
                %v210 = vld [vmem:[%s148 + $0x1b0] sm:$0xff]
                %211 = vst [vmem:[%s149 + $0xf0] sm:$0xff] %v210
                %v212 = vld [vmem:[%s148 + $0x1b8] sm:$0xff]
                %213 = vst [vmem:[%s149 + $0xf8] sm:$0xff] %v212
                %v214 = vld [vmem:[%s148 + $0x200] sm:$0xff]
                %215 = vst [vmem:[%s149 + $0x100] sm:$0xff] %v214
                %v216 = vld [vmem:[%s148 + $0x208] sm:$0xff]
                %217 = vst [vmem:[%s149 + $0x108] sm:$0xff] %v216
                %v218 = vld [vmem:[%s148 + $0x210] sm:$0xff]
                %219 = vst [vmem:[%s149 + $0x110] sm:$0xff] %v218
                %v220 = vld [vmem:[%s148 + $0x218] sm:$0xff]
                %221 = vst [vmem:[%s149 + $0x118] sm:$0xff] %v220
                %v222 = vld [vmem:[%s148 + $0x220] sm:$0xff]
                %223 = vst [vmem:[%s149 + $0x120] sm:$0xff] %v222
                %v224 = vld [vmem:[%s148 + $0x228] sm:$0xff]
                %225 = vst [vmem:[%s149 + $0x128] sm:$0xff] %v224
                %v226 = vld [vmem:[%s148 + $0x230] sm:$0xff]
                %227 = vst [vmem:[%s149 + $0x130] sm:$0xff] %v226
                %v228 = vld [vmem:[%s148 + $0x238] sm:$0xff]
                %229 = vst [vmem:[%s149 + $0x138] sm:$0xff] %v228
                %v230 = vld [vmem:[%s148 + $0x280] sm:$0xff]
                %231 = vst [vmem:[%s149 + $0x140] sm:$0xff] %v230
                %v232 = vld [vmem:[%s148 + $0x288] sm:$0xff]
                %233 = vst [vmem:[%s149 + $0x148] sm:$0xff] %v232
                %v234 = vld [vmem:[%s148 + $0x290] sm:$0xff]
                %235 = vst [vmem:[%s149 + $0x150] sm:$0xff] %v234
                %v236 = vld [vmem:[%s148 + $0x298] sm:$0xff]
                %237 = vst [vmem:[%s149 + $0x158] sm:$0xff] %v236
                %v238 = vld [vmem:[%s148 + $0x2a0] sm:$0xff]
                %239 = vst [vmem:[%s149 + $0x160] sm:$0xff] %v238
                %v240 = vld [vmem:[%s148 + $0x2a8] sm:$0xff]
                %241 = vst [vmem:[%s149 + $0x168] sm:$0xff] %v240
                %v242 = vld [vmem:[%s148 + $0x2b0] sm:$0xff]
                %243 = vst [vmem:[%s149 + $0x170] sm:$0xff] %v242
                %v244 = vld [vmem:[%s148 + $0x2b8] sm:$0xff]
                %245 = vst [vmem:[%s149 + $0x178] sm:$0xff] %v244
                %v246 = vld [vmem:[%s148 + $0x300] sm:$0xff]
                %247 = vst [vmem:[%s149 + $0x180] sm:$0xff] %v246
                %v248 = vld [vmem:[%s148 + $0x308] sm:$0xff]
                %249 = vst [vmem:[%s149 + $0x188] sm:$0xff] %v248
                %v250 = vld [vmem:[%s148 + $0x310] sm:$0xff]
                %251 = vst [vmem:[%s149 + $0x190] sm:$0xff] %v250
                %v252 = vld [vmem:[%s148 + $0x318] sm:$0xff]
                %253 = vst [vmem:[%s149 + $0x198] sm:$0xff] %v252
                %v254 = vld [vmem:[%s148 + $0x320] sm:$0xff]
                %255 = vst [vmem:[%s149 + $0x1a0] sm:$0xff] %v254
                %v256 = vld [vmem:[%s148 + $0x328] sm:$0xff]
                %257 = vst [vmem:[%s149 + $0x1a8] sm:$0xff] %v256
                %v258 = vld [vmem:[%s148 + $0x330] sm:$0xff]
                %259 = vst [vmem:[%s149 + $0x1b0] sm:$0xff] %v258
                %v260 = vld [vmem:[%s148 + $0x338] sm:$0xff]
                %261 = vst [vmem:[%s149 + $0x1b8] sm:$0xff] %v260
                %v262 = vld [vmem:[%s148 + $0x380] sm:$0xff]
                %263 = vst [vmem:[%s149 + $0x1c0] sm:$0xff] %v262
                %v264 = vld [vmem:[%s148 + $0x388] sm:$0xff]
                %265 = vst [vmem:[%s149 + $0x1c8] sm:$0xff] %v264
                %v266 = vld [vmem:[%s148 + $0x390] sm:$0xff]
                %267 = vst [vmem:[%s149 + $0x1d0] sm:$0xff] %v266
                %v268 = vld [vmem:[%s148 + $0x398] sm:$0xff]
                %269 = vst [vmem:[%s149 + $0x1d8] sm:$0xff] %v268
                %v270 = vld [vmem:[%s148 + $0x3a0] sm:$0xff]
                %271 = vst [vmem:[%s149 + $0x1e0] sm:$0xff] %v270
                %v272 = vld [vmem:[%s148 + $0x3a8] sm:$0xff]
                %273 = vst [vmem:[%s149 + $0x1e8] sm:$0xff] %v272
                %v274 = vld [vmem:[%s148 + $0x3b0] sm:$0xff]
                %275 = vst [vmem:[%s149 + $0x1f0] sm:$0xff] %v274
                %v276 = vld [vmem:[%s148 + $0x3b8] sm:$0xff]
                %277 = vst [vmem:[%s149 + $0x1f8] sm:$0xff] %v276
                %v278 = vld [vmem:[%s148 + $0x400] sm:$0xff]
                %279 = vst [vmem:[%s149 + $0x200] sm:$0xff] %v278
                %v280 = vld [vmem:[%s148 + $0x408] sm:$0xff]
                %281 = vst [vmem:[%s149 + $0x208] sm:$0xff] %v280
                %v282 = vld [vmem:[%s148 + $0x410] sm:$0xff]
                %283 = vst [vmem:[%s149 + $0x210] sm:$0xff] %v282
                %v284 = vld [vmem:[%s148 + $0x418] sm:$0xff]
                %285 = vst [vmem:[%s149 + $0x218] sm:$0xff] %v284
                %v286 = vld [vmem:[%s148 + $0x420] sm:$0xff]
                %287 = vst [vmem:[%s149 + $0x220] sm:$0xff] %v286
                %v288 = vld [vmem:[%s148 + $0x428] sm:$0xff]
                %289 = vst [vmem:[%s149 + $0x228] sm:$0xff] %v288
                %v290 = vld [vmem:[%s148 + $0x430] sm:$0xff]
                %291 = vst [vmem:[%s149 + $0x230] sm:$0xff] %v290
                %v292 = vld [vmem:[%s148 + $0x438] sm:$0xff]
                %293 = vst [vmem:[%s149 + $0x238] sm:$0xff] %v292
                %v294 = vld [vmem:[%s148 + $0x480] sm:$0xff]
                %295 = vst [vmem:[%s149 + $0x240] sm:$0xff] %v294
                %v296 = vld [vmem:[%s148 + $0x488] sm:$0xff]
                %297 = vst [vmem:[%s149 + $0x248] sm:$0xff] %v296
                %v298 = vld [vmem:[%s148 + $0x490] sm:$0xff]
                %299 = vst [vmem:[%s149 + $0x250] sm:$0xff] %v298
                %v300 = vld [vmem:[%s148 + $0x498] sm:$0xff]
                %301 = vst [vmem:[%s149 + $0x258] sm:$0xff] %v300
                %v302 = vld [vmem:[%s148 + $0x4a0] sm:$0xff]
                %303 = vst [vmem:[%s149 + $0x260] sm:$0xff] %v302
                %v304 = vld [vmem:[%s148 + $0x4a8] sm:$0xff]
                %305 = vst [vmem:[%s149 + $0x268] sm:$0xff] %v304
                %v306 = vld [vmem:[%s148 + $0x4b0] sm:$0xff]
                %307 = vst [vmem:[%s149 + $0x270] sm:$0xff] %v306
                %v308 = vld [vmem:[%s148 + $0x4b8] sm:$0xff]
                %309 = vst [vmem:[%s149 + $0x278] sm:$0xff] %v308
                %v310 = vld [vmem:[%s148 + $0x500] sm:$0xff]
                %311 = vst [vmem:[%s149 + $0x280] sm:$0xff] %v310
                %v312 = vld [vmem:[%s148 + $0x508] sm:$0xff]
                %313 = vst [vmem:[%s149 + $0x288] sm:$0xff] %v312
                %v314 = vld [vmem:[%s148 + $0x510] sm:$0xff]
                %315 = vst [vmem:[%s149 + $0x290] sm:$0xff] %v314
                %v316 = vld [vmem:[%s148 + $0x518] sm:$0xff]
                %317 = vst [vmem:[%s149 + $0x298] sm:$0xff] %v316
                %v318 = vld [vmem:[%s148 + $0x520] sm:$0xff]
                %319 = vst [vmem:[%s149 + $0x2a0] sm:$0xff] %v318
                %v320 = vld [vmem:[%s148 + $0x528] sm:$0xff]
                %321 = vst [vmem:[%s149 + $0x2a8] sm:$0xff] %v320
                %v322 = vld [vmem:[%s148 + $0x530] sm:$0xff]
                %323 = vst [vmem:[%s149 + $0x2b0] sm:$0xff] %v322
                %v324 = vld [vmem:[%s148 + $0x538] sm:$0xff]
                %325 = vst [vmem:[%s149 + $0x2b8] sm:$0xff] %v324
                %v326 = vld [vmem:[%s148 + $0x580] sm:$0xff]
                %327 = vst [vmem:[%s149 + $0x2c0] sm:$0xff] %v326
                %v328 = vld [vmem:[%s148 + $0x588] sm:$0xff]
                %329 = vst [vmem:[%s149 + $0x2c8] sm:$0xff] %v328
                %v330 = vld [vmem:[%s148 + $0x590] sm:$0xff]
                %331 = vst [vmem:[%s149 + $0x2d0] sm:$0xff] %v330
                %v332 = vld [vmem:[%s148 + $0x598] sm:$0xff]
                %333 = vst [vmem:[%s149 + $0x2d8] sm:$0xff] %v332
                %v334 = vld [vmem:[%s148 + $0x5a0] sm:$0xff]
                %335 = vst [vmem:[%s149 + $0x2e0] sm:$0xff] %v334
                %v336 = vld [vmem:[%s148 + $0x5a8] sm:$0xff]
                %337 = vst [vmem:[%s149 + $0x2e8] sm:$0xff] %v336
                %v338 = vld [vmem:[%s148 + $0x5b0] sm:$0xff]
                %339 = vst [vmem:[%s149 + $0x2f0] sm:$0xff] %v338
                %v340 = vld [vmem:[%s148 + $0x5b8] sm:$0xff]
                %341 = vst [vmem:[%s149 + $0x2f8] sm:$0xff] %v340
              $region41: #{generator_forward.6} parent=35 // loop_footer
                %s147 = sadd.s32 1, %s143
              $region42: #{generator_forward.6} parent=35 // loop_footer_branch
                %142 = sbr.rel target = $region38
              $region43: #{generator_forward.6} parent=35 // loop_exit
                _
            $region36: #{generator_forward.6} parent=31 // pred_fallthru
              _
            // Predicated region
            $region44: #{generator_forward.6} parent=31 // pred_check
              _
            $region45: #{generator_forward.6} parent=31 // pred_check_branch
              %343 = sbr.rel target = $region47
            $region46: #{generator_forward.6} parent=31 // pred_region
              _
            $region47: #{generator_forward.6} parent=31 // pred_fallthru
              _
          $region32: #{generator_forward.6} parent=27 // pred_fallthru
            _
          %344 = vnop
        $region28: #{generator_forward.6} parent=23 // pred_fallthru
          _
      $region24: #{generator_forward.6} parent=5 // pred_fallthru
        _
      %p345 = scmp.le.s32.totalorder 1, %s9
      %p346 = scmp.lt.s32.totalorder %s9, 3
      %p347 = pnand %p345, %p346
      %p348 = pneg %p347
      // Predicated region
      $region48: #{generator_forward.6} parent=5 // pred_check
        _
      $region49: #{generator_forward.6} parent=5 // pred_check_branch
        %350 = sbr.rel (%p347) target = $region51
      $region50: #{generator_forward.6} parent=5 // pred_region
        %s351 = ssub.s32 %s9, 1
        %s352 = sand.u32 %s43, 1
        %s353 = sand.u32 %s43, 1
        %s354 = smul.addr %s353, 768
        %s355 = scalar_lea.vmem [#allocation2], %s354
        // Predicated region
        $region52: #{generator_forward.6} parent=50 // pred_check
          %p356 = pneg %p56
        $region53: #{generator_forward.6} parent=50 // pred_check_branch
          %358 = sbr.rel (%p356) target = $region55
        $region54: #{generator_forward.6} parent=50 // pred_region
          _
        $region55: #{generator_forward.6} parent=50 // pred_fallthru
          _
        %p359 = pneg %p30
        %p360 = pneg %p27
        %s361 = sand.u32 %s43, 1
        %s362 = sand.u32 %s43, 1
        %s363 = smul.addr %s362, 768
        %s364 = scalar_lea.vmem [#allocation2], %s363
        %p365 = pneg %p56
        %p366 = pneg %p53
        %p367 = pneg %p77
        %p368 = pneg %p74
        %p369 = pneg %p103
        %p370 = pneg %p100
        %s371 = smul.u32 16, %s14
        %p372 = scmp.lt.s32.totalorder %s371, 31
        %s373 = scalar_select %p372, %s371, 31
        %s374 = smul.addr %s373, 8
        %s375 = scalar_lea.vmem %s3, %s374
        %s376 = smul.u32 16, %s14
        %s377 = smul.u32 16, %s14
        %p378 = scmp.lt.s32.totalorder %s377, 31
        %s379 = scalar_select %p378, %s377, 31
        %s380 = smul.addr %s379, 8
        %s381 = scalar_lea.vmem %s3, %s380
        %s382 = smul.u32 16, %s14
        %v384 = vld [vmem:[%s0] sm:$0xf]
        %v385 = vld [vmem:[%s355] sm:$0xff]
        %v386 = vld [vmem:[%s355 + $0x8] sm:$0xff]
        %v387 = vld [vmem:[%s355 + $0x10] sm:$0xff]
        %v388 = vld [vmem:[%s355 + $0x18] sm:$0xff]
        %v389 = vld [vmem:[%s355 + $0x20] sm:$0xff]
        %v390 = vld [vmem:[%s355 + $0x28] sm:$0xff]
        %v391 = vld [vmem:[%s355 + $0x30] sm:$0xff]
        %v392 = vld [vmem:[%s355 + $0x38] sm:$0xff]
        %v393 = vld [vmem:[%s355 + $0x40] sm:$0xff]
        %v394 = vld [vmem:[%s355 + $0x48] sm:$0xff]
        %v395 = vld [vmem:[%s355 + $0x50] sm:$0xff]
        %v396 = vld [vmem:[%s355 + $0x58] sm:$0xff]
        %v397 = vld [vmem:[%s355 + $0x60] sm:$0xff]
        %v398 = vld [vmem:[%s355 + $0x68] sm:$0xff]
        %v399 = vld [vmem:[%s355 + $0x70] sm:$0xff]
        %v400 = vld [vmem:[%s355 + $0x78] sm:$0xff]
        %v401 = vld [vmem:[%s355 + $0x80] sm:$0xff]
        %v402 = vld [vmem:[%s355 + $0x88] sm:$0xff]
        %v403 = vld [vmem:[%s355 + $0x90] sm:$0xff]
        %v404 = vld [vmem:[%s355 + $0x98] sm:$0xff]
        %v405 = vld [vmem:[%s355 + $0xa0] sm:$0xff]
        %v406 = vld [vmem:[%s355 + $0xa8] sm:$0xff]
        %v407 = vld [vmem:[%s355 + $0xb0] sm:$0xff]
        %v408 = vld [vmem:[%s355 + $0xb8] sm:$0xff]
        %v409 = vld [vmem:[%s355 + $0xc0] sm:$0xff]
        %v410 = vld [vmem:[%s355 + $0xc8] sm:$0xff]
        %v411 = vld [vmem:[%s355 + $0xd0] sm:$0xff]
        %v412 = vld [vmem:[%s355 + $0xd8] sm:$0xff]
        %v413 = vld [vmem:[%s355 + $0xe0] sm:$0xff]
        %v414 = vld [vmem:[%s355 + $0xe8] sm:$0xff]
        %v415 = vld [vmem:[%s355 + $0xf0] sm:$0xff]
        %v416 = vld [vmem:[%s355 + $0xf8] sm:$0xff]
        %v417 = vld [vmem:[%s355 + $0x100] sm:$0xff]
        %v418 = vld [vmem:[%s355 + $0x108] sm:$0xff]
        %v419 = vld [vmem:[%s355 + $0x110] sm:$0xff]
        %v420 = vld [vmem:[%s355 + $0x118] sm:$0xff]
        %v421 = vld [vmem:[%s355 + $0x120] sm:$0xff]
        %v422 = vld [vmem:[%s355 + $0x128] sm:$0xff]
        %v423 = vld [vmem:[%s355 + $0x130] sm:$0xff]
        %v424 = vld [vmem:[%s355 + $0x138] sm:$0xff]
        %v425 = vld [vmem:[%s355 + $0x140] sm:$0xff]
        %v426 = vld [vmem:[%s355 + $0x148] sm:$0xff]
        %v427 = vld [vmem:[%s355 + $0x150] sm:$0xff]
        %v428 = vld [vmem:[%s355 + $0x158] sm:$0xff]
        %v429 = vld [vmem:[%s355 + $0x160] sm:$0xff]
        %v430 = vld [vmem:[%s355 + $0x168] sm:$0xff]
        %v431 = vld [vmem:[%s355 + $0x170] sm:$0xff]
        %v432 = vld [vmem:[%s355 + $0x178] sm:$0xff]
        %v433 = vld [vmem:[%s355 + $0x180] sm:$0xff]
        %v434 = vld [vmem:[%s355 + $0x188] sm:$0xff]
        %v435 = vld [vmem:[%s355 + $0x190] sm:$0xff]
        %v436 = vld [vmem:[%s355 + $0x198] sm:$0xff]
        %v437 = vld [vmem:[%s355 + $0x1a0] sm:$0xff]
        %v438 = vld [vmem:[%s355 + $0x1a8] sm:$0xff]
        %v439 = vld [vmem:[%s355 + $0x1b0] sm:$0xff]
        %v440 = vld [vmem:[%s355 + $0x1b8] sm:$0xff]
        %v441 = vld [vmem:[%s355 + $0x1c0] sm:$0xff]
        %v442 = vld [vmem:[%s355 + $0x1c8] sm:$0xff]
        %v443 = vld [vmem:[%s355 + $0x1d0] sm:$0xff]
        %v444 = vld [vmem:[%s355 + $0x1d8] sm:$0xff]
        %v445 = vld [vmem:[%s355 + $0x1e0] sm:$0xff]
        %v446 = vld [vmem:[%s355 + $0x1e8] sm:$0xff]
        %v447 = vld [vmem:[%s355 + $0x1f0] sm:$0xff]
        %v448 = vld [vmem:[%s355 + $0x1f8] sm:$0xff]
        %v449 = vld [vmem:[%s355 + $0x200] sm:$0xff]
        %v450 = vld [vmem:[%s355 + $0x208] sm:$0xff]
        %v451 = vld [vmem:[%s355 + $0x210] sm:$0xff]
        %v452 = vld [vmem:[%s355 + $0x218] sm:$0xff]
        %v453 = vld [vmem:[%s355 + $0x220] sm:$0xff]
        %v454 = vld [vmem:[%s355 + $0x228] sm:$0xff]
        %v455 = vld [vmem:[%s355 + $0x230] sm:$0xff]
        %v456 = vld [vmem:[%s355 + $0x238] sm:$0xff]
        %v457 = vld [vmem:[%s355 + $0x240] sm:$0xff]
        %v458 = vld [vmem:[%s355 + $0x248] sm:$0xff]
        %v459 = vld [vmem:[%s355 + $0x250] sm:$0xff]
        %v460 = vld [vmem:[%s355 + $0x258] sm:$0xff]
        %v461 = vld [vmem:[%s355 + $0x260] sm:$0xff]
        %v462 = vld [vmem:[%s355 + $0x268] sm:$0xff]
        %v463 = vld [vmem:[%s355 + $0x270] sm:$0xff]
        %v464 = vld [vmem:[%s355 + $0x278] sm:$0xff]
        %v465 = vld [vmem:[%s355 + $0x280] sm:$0xff]
        %v466 = vld [vmem:[%s355 + $0x288] sm:$0xff]
        %v467 = vld [vmem:[%s355 + $0x290] sm:$0xff]
        %v468 = vld [vmem:[%s355 + $0x298] sm:$0xff]
        %v469 = vld [vmem:[%s355 + $0x2a0] sm:$0xff]
        %v470 = vld [vmem:[%s355 + $0x2a8] sm:$0xff]
        %v471 = vld [vmem:[%s355 + $0x2b0] sm:$0xff]
        %v472 = vld [vmem:[%s355 + $0x2b8] sm:$0xff]
        %v473 = vld [vmem:[%s355 + $0x2c0] sm:$0xff]
        %v474 = vld [vmem:[%s355 + $0x2c8] sm:$0xff]
        %v475 = vld [vmem:[%s355 + $0x2d0] sm:$0xff]
        %v476 = vld [vmem:[%s355 + $0x2d8] sm:$0xff]
        %v477 = vld [vmem:[%s355 + $0x2e0] sm:$0xff]
        %v478 = vld [vmem:[%s355 + $0x2e8] sm:$0xff]
        %v479 = vld [vmem:[%s355 + $0x2f0] sm:$0xff]
        %v480 = vld [vmem:[%s355 + $0x2f8] sm:$0xff]
        %v481 = vld [vmem:[%s2] sm:$0xff]
        %483 = vset.pattern.permute.xlu0 0
        %484 = vperm.xlu0 %483, %v481
        %v485 = vpop.permute.xlu0 %484
        %v583 = vunpack.c.l.b16 %v385
        %v584 = vunpack.c.h.b16 %v385
        %v585 = vunpack.c.l.b16 %v386
        %v586 = vunpack.c.h.b16 %v386
        %v587 = vunpack.c.l.b16 %v387
        %v588 = vunpack.c.h.b16 %v387
        %v589 = vunpack.c.l.b16 %v388
        %v590 = vunpack.c.h.b16 %v388
        %v591 = vunpack.c.l.b16 %v389
        %v592 = vunpack.c.h.b16 %v389
        %v593 = vunpack.c.l.b16 %v390
        %v594 = vunpack.c.h.b16 %v390
        %v595 = vunpack.c.l.b16 %v391
        %v596 = vunpack.c.h.b16 %v391
        %v597 = vunpack.c.l.b16 %v392
        %v598 = vunpack.c.h.b16 %v392
        %v599 = vunpack.c.l.b16 %v393
        %v600 = vunpack.c.h.b16 %v393
        %v601 = vunpack.c.l.b16 %v394
        %v602 = vunpack.c.h.b16 %v394
        %v603 = vunpack.c.l.b16 %v395
        %v604 = vunpack.c.h.b16 %v395
        %v605 = vunpack.c.l.b16 %v396
        %v606 = vunpack.c.h.b16 %v396
        %v607 = vunpack.c.l.b16 %v397
        %v608 = vunpack.c.h.b16 %v397
        %v609 = vunpack.c.l.b16 %v398
        %v610 = vunpack.c.h.b16 %v398
        %v611 = vunpack.c.l.b16 %v399
        %v612 = vunpack.c.h.b16 %v399
        %v613 = vunpack.c.l.b16 %v400
        %v614 = vunpack.c.h.b16 %v400
        %v615 = vunpack.c.l.b16 %v401
        %v616 = vunpack.c.h.b16 %v401
        %v617 = vunpack.c.l.b16 %v402
        %v618 = vunpack.c.h.b16 %v402
        %v619 = vunpack.c.l.b16 %v403
        %v620 = vunpack.c.h.b16 %v403
        %v621 = vunpack.c.l.b16 %v404
        %v622 = vunpack.c.h.b16 %v404
        %v623 = vunpack.c.l.b16 %v405
        %v624 = vunpack.c.h.b16 %v405
        %v625 = vunpack.c.l.b16 %v406
        %v626 = vunpack.c.h.b16 %v406
        %v627 = vunpack.c.l.b16 %v407
        %v628 = vunpack.c.h.b16 %v407
        %v629 = vunpack.c.l.b16 %v408
        %v630 = vunpack.c.h.b16 %v408
        %v631 = vunpack.c.l.b16 %v409
        %v632 = vunpack.c.h.b16 %v409
        %v633 = vunpack.c.l.b16 %v410
        %v634 = vunpack.c.h.b16 %v410
        %v635 = vunpack.c.l.b16 %v411
        %v636 = vunpack.c.h.b16 %v411
        %v637 = vunpack.c.l.b16 %v412
        %v638 = vunpack.c.h.b16 %v412
        %v639 = vunpack.c.l.b16 %v413
        %v640 = vunpack.c.h.b16 %v413
        %v641 = vunpack.c.l.b16 %v414
        %v642 = vunpack.c.h.b16 %v414
        %v643 = vunpack.c.l.b16 %v415
        %v644 = vunpack.c.h.b16 %v415
        %v645 = vunpack.c.l.b16 %v416
        %v646 = vunpack.c.h.b16 %v416
        %v647 = vunpack.c.l.b16 %v417
        %v648 = vunpack.c.h.b16 %v417
        %v649 = vunpack.c.l.b16 %v418
        %v650 = vunpack.c.h.b16 %v418
        %v651 = vunpack.c.l.b16 %v419
        %v652 = vunpack.c.h.b16 %v419
        %v653 = vunpack.c.l.b16 %v420
        %v654 = vunpack.c.h.b16 %v420
        %v655 = vunpack.c.l.b16 %v421
        %v656 = vunpack.c.h.b16 %v421
        %v657 = vunpack.c.l.b16 %v422
        %v658 = vunpack.c.h.b16 %v422
        %v659 = vunpack.c.l.b16 %v423
        %v660 = vunpack.c.h.b16 %v423
        %v661 = vunpack.c.l.b16 %v424
        %v662 = vunpack.c.h.b16 %v424
        %v663 = vunpack.c.l.b16 %v425
        %v664 = vunpack.c.h.b16 %v425
        %v665 = vunpack.c.l.b16 %v426
        %v666 = vunpack.c.h.b16 %v426
        %v667 = vunpack.c.l.b16 %v427
        %v668 = vunpack.c.h.b16 %v427
        %v669 = vunpack.c.l.b16 %v428
        %v670 = vunpack.c.h.b16 %v428
        %v671 = vunpack.c.l.b16 %v429
        %v672 = vunpack.c.h.b16 %v429
        %v673 = vunpack.c.l.b16 %v430
        %v674 = vunpack.c.h.b16 %v430
        %v675 = vunpack.c.l.b16 %v431
        %v676 = vunpack.c.h.b16 %v431
        %v677 = vunpack.c.l.b16 %v432
        %v678 = vunpack.c.h.b16 %v432
        %v679 = vunpack.c.l.b16 %v433
        %v680 = vunpack.c.h.b16 %v433
        %v681 = vunpack.c.l.b16 %v434
        %v682 = vunpack.c.h.b16 %v434
        %v683 = vunpack.c.l.b16 %v435
        %v684 = vunpack.c.h.b16 %v435
        %v685 = vunpack.c.l.b16 %v436
        %v686 = vunpack.c.h.b16 %v436
        %v687 = vunpack.c.l.b16 %v437
        %v688 = vunpack.c.h.b16 %v437
        %v689 = vunpack.c.l.b16 %v438
        %v690 = vunpack.c.h.b16 %v438
        %v691 = vunpack.c.l.b16 %v439
        %v692 = vunpack.c.h.b16 %v439
        %v693 = vunpack.c.l.b16 %v440
        %v694 = vunpack.c.h.b16 %v440
        %v695 = vunpack.c.l.b16 %v441
        %v696 = vunpack.c.h.b16 %v441
        %v697 = vunpack.c.l.b16 %v442
        %v698 = vunpack.c.h.b16 %v442
        %v699 = vunpack.c.l.b16 %v443
        %v700 = vunpack.c.h.b16 %v443
        %v701 = vunpack.c.l.b16 %v444
        %v702 = vunpack.c.h.b16 %v444
        %v703 = vunpack.c.l.b16 %v445
        %v704 = vunpack.c.h.b16 %v445
        %v705 = vunpack.c.l.b16 %v446
        %v706 = vunpack.c.h.b16 %v446
        %v707 = vunpack.c.l.b16 %v447
        %v708 = vunpack.c.h.b16 %v447
        %v709 = vunpack.c.l.b16 %v448
        %v710 = vunpack.c.h.b16 %v448
        %v711 = vunpack.c.l.b16 %v449
        %v712 = vunpack.c.h.b16 %v449
        %v713 = vunpack.c.l.b16 %v450
        %v714 = vunpack.c.h.b16 %v450
        %v715 = vunpack.c.l.b16 %v451
        %v716 = vunpack.c.h.b16 %v451
        %v717 = vunpack.c.l.b16 %v452
        %v718 = vunpack.c.h.b16 %v452
        %v719 = vunpack.c.l.b16 %v453
        %v720 = vunpack.c.h.b16 %v453
        %v721 = vunpack.c.l.b16 %v454
        %v722 = vunpack.c.h.b16 %v454
        %v723 = vunpack.c.l.b16 %v455
        %v724 = vunpack.c.h.b16 %v455
        %v725 = vunpack.c.l.b16 %v456
        %v726 = vunpack.c.h.b16 %v456
        %v727 = vunpack.c.l.b16 %v457
        %v728 = vunpack.c.h.b16 %v457
        %v729 = vunpack.c.l.b16 %v458
        %v730 = vunpack.c.h.b16 %v458
        %v731 = vunpack.c.l.b16 %v459
        %v732 = vunpack.c.h.b16 %v459
        %v733 = vunpack.c.l.b16 %v460
        %v734 = vunpack.c.h.b16 %v460
        %v735 = vunpack.c.l.b16 %v461
        %v736 = vunpack.c.h.b16 %v461
        %v737 = vunpack.c.l.b16 %v462
        %v738 = vunpack.c.h.b16 %v462
        %v739 = vunpack.c.l.b16 %v463
        %v740 = vunpack.c.h.b16 %v463
        %v741 = vunpack.c.l.b16 %v464
        %v742 = vunpack.c.h.b16 %v464
        %v743 = vunpack.c.l.b16 %v465
        %v744 = vunpack.c.h.b16 %v465
        %v745 = vunpack.c.l.b16 %v466
        %v746 = vunpack.c.h.b16 %v466
        %v747 = vunpack.c.l.b16 %v467
        %v748 = vunpack.c.h.b16 %v467
        %v749 = vunpack.c.l.b16 %v468
        %v750 = vunpack.c.h.b16 %v468
        %v751 = vunpack.c.l.b16 %v469
        %v752 = vunpack.c.h.b16 %v469
        %v753 = vunpack.c.l.b16 %v470
        %v754 = vunpack.c.h.b16 %v470
        %v755 = vunpack.c.l.b16 %v471
        %v756 = vunpack.c.h.b16 %v471
        %v757 = vunpack.c.l.b16 %v472
        %v758 = vunpack.c.h.b16 %v472
        %v759 = vunpack.c.l.b16 %v473
        %v760 = vunpack.c.h.b16 %v473
        %v761 = vunpack.c.l.b16 %v474
        %v762 = vunpack.c.h.b16 %v474
        %v763 = vunpack.c.l.b16 %v475
        %v764 = vunpack.c.h.b16 %v475
        %v765 = vunpack.c.l.b16 %v476
        %v766 = vunpack.c.h.b16 %v476
        %v767 = vunpack.c.l.b16 %v477
        %v768 = vunpack.c.h.b16 %v477
        %v769 = vunpack.c.l.b16 %v478
        %v770 = vunpack.c.h.b16 %v478
        %v771 = vunpack.c.l.b16 %v479
        %v772 = vunpack.c.h.b16 %v479
        %v773 = vunpack.c.l.b16 %v480
        %v774 = vunpack.c.h.b16 %v480
        %v775 = vpack.c.b16 %v599, %v583
        %v776 = vpack.c.b16 %v600, %v584
        %v777 = vpack.c.b16 %v601, %v585
        %v778 = vpack.c.b16 %v602, %v586
        %v779 = vpack.c.b16 %v603, %v587
        %v780 = vpack.c.b16 %v604, %v588
        %v781 = vpack.c.b16 %v605, %v589
        %v782 = vpack.c.b16 %v606, %v590
        %v783 = vpack.c.b16 %v607, %v591
        %v784 = vpack.c.b16 %v608, %v592
        %v785 = vpack.c.b16 %v609, %v593
        %v786 = vpack.c.b16 %v610, %v594
        %v787 = vpack.c.b16 %v611, %v595
        %v788 = vpack.c.b16 %v612, %v596
        %v789 = vpack.c.b16 %v613, %v597
        %v790 = vpack.c.b16 %v614, %v598
        %v791 = vpack.c.b16 %v631, %v615
        %v792 = vpack.c.b16 %v632, %v616
        %v793 = vpack.c.b16 %v633, %v617
        %v794 = vpack.c.b16 %v634, %v618
        %v795 = vpack.c.b16 %v635, %v619
        %v796 = vpack.c.b16 %v636, %v620
        %v797 = vpack.c.b16 %v637, %v621
        %v798 = vpack.c.b16 %v638, %v622
        %v799 = vpack.c.b16 %v639, %v623
        %v800 = vpack.c.b16 %v640, %v624
        %v801 = vpack.c.b16 %v641, %v625
        %v802 = vpack.c.b16 %v642, %v626
        %v803 = vpack.c.b16 %v643, %v627
        %v804 = vpack.c.b16 %v644, %v628
        %v805 = vpack.c.b16 %v645, %v629
        %v806 = vpack.c.b16 %v646, %v630
        %v807 = vpack.c.b16 %v663, %v647
        %v808 = vpack.c.b16 %v664, %v648
        %v809 = vpack.c.b16 %v665, %v649
        %v810 = vpack.c.b16 %v666, %v650
        %v811 = vpack.c.b16 %v667, %v651
        %v812 = vpack.c.b16 %v668, %v652
        %v813 = vpack.c.b16 %v669, %v653
        %v814 = vpack.c.b16 %v670, %v654
        %v815 = vpack.c.b16 %v671, %v655
        %v816 = vpack.c.b16 %v672, %v656
        %v817 = vpack.c.b16 %v673, %v657
        %v818 = vpack.c.b16 %v674, %v658
        %v819 = vpack.c.b16 %v675, %v659
        %v820 = vpack.c.b16 %v676, %v660
        %v821 = vpack.c.b16 %v677, %v661
        %v822 = vpack.c.b16 %v678, %v662
        %v823 = vpack.c.b16 %v695, %v679
        %v824 = vpack.c.b16 %v696, %v680
        %v825 = vpack.c.b16 %v697, %v681
        %v826 = vpack.c.b16 %v698, %v682
        %v827 = vpack.c.b16 %v699, %v683
        %v828 = vpack.c.b16 %v700, %v684
        %v829 = vpack.c.b16 %v701, %v685
        %v830 = vpack.c.b16 %v702, %v686
        %v831 = vpack.c.b16 %v703, %v687
        %v832 = vpack.c.b16 %v704, %v688
        %v833 = vpack.c.b16 %v705, %v689
        %v834 = vpack.c.b16 %v706, %v690
        %v835 = vpack.c.b16 %v707, %v691
        %v836 = vpack.c.b16 %v708, %v692
        %v837 = vpack.c.b16 %v709, %v693
        %v838 = vpack.c.b16 %v710, %v694
        %v839 = vpack.c.b16 %v727, %v711
        %v840 = vpack.c.b16 %v728, %v712
        %v841 = vpack.c.b16 %v729, %v713
        %v842 = vpack.c.b16 %v730, %v714
        %v843 = vpack.c.b16 %v731, %v715
        %v844 = vpack.c.b16 %v732, %v716
        %v845 = vpack.c.b16 %v733, %v717
        %v846 = vpack.c.b16 %v734, %v718
        %v847 = vpack.c.b16 %v735, %v719
        %v848 = vpack.c.b16 %v736, %v720
        %v849 = vpack.c.b16 %v737, %v721
        %v850 = vpack.c.b16 %v738, %v722
        %v851 = vpack.c.b16 %v739, %v723
        %v852 = vpack.c.b16 %v740, %v724
        %v853 = vpack.c.b16 %v741, %v725
        %v854 = vpack.c.b16 %v742, %v726
        %v855 = vpack.c.b16 %v759, %v743
        %v856 = vpack.c.b16 %v760, %v744
        %v857 = vpack.c.b16 %v761, %v745
        %v858 = vpack.c.b16 %v762, %v746
        %v859 = vpack.c.b16 %v763, %v747
        %v860 = vpack.c.b16 %v764, %v748
        %v861 = vpack.c.b16 %v765, %v749
        %v862 = vpack.c.b16 %v766, %v750
        %v863 = vpack.c.b16 %v767, %v751
        %v864 = vpack.c.b16 %v768, %v752
        %v865 = vpack.c.b16 %v769, %v753
        %v866 = vpack.c.b16 %v770, %v754
        %v867 = vpack.c.b16 %v771, %v755
        %v868 = vpack.c.b16 %v772, %v756
        %v869 = vpack.c.b16 %v773, %v757
        %v870 = vpack.c.b16 %v774, %v758
        %vm967 = vcmask 785408
        %v969 = vsel %vm967, %v384, 0
        %971 = vmatprep.subr.bf16.mxu0 0
        %972 = vmatpush1.bf16.msra.mxu0 0
        %973 = vmatprep.subr.bf16.mxu0 0
        %974 = vmatpush1.bf16.msra.mxu0 0
        %975 = vmatprep.subr.bf16.mxu0 %v856
        %976 = vmatpush1.bf16.msra.mxu0 %v855
        %977 = vmatprep.subr.bf16.mxu0 %v840
        %978 = vmatpush1.bf16.msra.mxu0 %v839
        %979 = vmatprep.subr.bf16.mxu0 %v824
        %980 = vmatpush1.bf16.msra.mxu0 %v823
        %981 = vmatprep.subr.bf16.mxu0 %v808
        %982 = vmatpush1.bf16.msra.mxu0 %v807
        %983 = vmatprep.subr.bf16.mxu0 %v792
        %984 = vmatpush1.bf16.msra.mxu0 %v791
        %985 = vmatprep.subr.bf16.mxu0 %v776
        %986 = vmatpush1.bf16.msra.mxu0 %v775
        %987 = vmatprep.subr.bf16.mxu0 0
        %988 = vmatpush2.bf16.msra.mxu0 0
        %989 = vmatprep.subr.bf16.mxu0 0
        %990 = vmatpush2.bf16.msra.mxu0 0
        %991 = vmatprep.subr.bf16.mxu0 0
        %992 = vmatpush2.bf16.msra.mxu0 0
        %993 = vmatprep.subr.bf16.mxu0 0
        %994 = vmatpush2.bf16.msra.mxu0 0
        %995 = vmatprep.subr.bf16.mxu0 0
        %996 = vmatpush2.bf16.msra.mxu0 0
        %997 = vmatprep.subr.bf16.mxu0 0
        %998 = vmatpush2.bf16.msra.mxu0 0
        %999 = vmatprep.subr.bf16.mxu0 0
        %1000 = vmatpush2.bf16.msra.mxu0 0
        %1001 = vmatprep.subr.bf16.mxu0 0
        %1002 = vmatpush2.bf16.msra.mxu0 0
        %1003 = vmatprep.mubr.bf16.mxu0 0
        %1004 = vmatmul.mubr.bf16.gmra.mxu0 %v969
        %v1005 = vpop.f32.mrf.mxu0
        %v1006 = vadd.f32 %v485, %v1005
        %v1007 = vpop.f32.mrf.mxu0
        %v1008 = vadd.f32 %v485, %v1007
        %v1009 = vpop.f32.mrf.mxu0
        %v1010 = vpop.f32.mrf.mxu0
        %1011 = vdwg.mxu0
        %1012 = vmatprep.subr.bf16.mxu0 0
        %1013 = vmatpush1.bf16.msra.mxu0 0
        %1014 = vmatprep.subr.bf16.mxu0 0
        %1015 = vmatpush1.bf16.msra.mxu0 0
        %1016 = vmatprep.subr.bf16.mxu0 %v858
        %1017 = vmatpush1.bf16.msra.mxu0 %v857
        %1018 = vmatprep.subr.bf16.mxu0 %v842
        %1019 = vmatpush1.bf16.msra.mxu0 %v841
        %1020 = vmatprep.subr.bf16.mxu0 %v826
        %1021 = vmatpush1.bf16.msra.mxu0 %v825
        %1022 = vmatprep.subr.bf16.mxu0 %v810
        %1023 = vmatpush1.bf16.msra.mxu0 %v809
        %1024 = vmatprep.subr.bf16.mxu0 %v794
        %1025 = vmatpush1.bf16.msra.mxu0 %v793
        %1026 = vmatprep.subr.bf16.mxu0 %v778
        %1027 = vmatpush1.bf16.msra.mxu0 %v777
        %1028 = vmatprep.subr.bf16.mxu0 0
        %1029 = vmatpush2.bf16.msra.mxu0 0
        %1030 = vmatprep.subr.bf16.mxu0 0
        %1031 = vmatpush2.bf16.msra.mxu0 0
        %1032 = vmatprep.subr.bf16.mxu0 0
        %1033 = vmatpush2.bf16.msra.mxu0 0
        %1034 = vmatprep.subr.bf16.mxu0 0
        %1035 = vmatpush2.bf16.msra.mxu0 0
        %1036 = vmatprep.subr.bf16.mxu0 0
        %1037 = vmatpush2.bf16.msra.mxu0 0
        %1038 = vmatprep.subr.bf16.mxu0 0
        %1039 = vmatpush2.bf16.msra.mxu0 0
        %1040 = vmatprep.subr.bf16.mxu0 0
        %1041 = vmatpush2.bf16.msra.mxu0 0
        %1042 = vmatprep.subr.bf16.mxu0 0
        %1043 = vmatpush2.bf16.msra.mxu0 0
        %1044 = vmatprep.mubr.bf16.mxu0 0
        %1045 = vmatmul.mubr.bf16.gmra.mxu0 %v969
        %v1046 = vpop.f32.mrf.mxu0
        %v1047 = vadd.f32 %v485, %v1046
        %v1048 = vpop.f32.mrf.mxu0
        %v1049 = vadd.f32 %v485, %v1048
        %v1050 = vpop.f32.mrf.mxu0
        %v1051 = vpop.f32.mrf.mxu0
        %1052 = vdwg.mxu0
        %1053 = vmatprep.subr.bf16.mxu0 0
        %1054 = vmatpush1.bf16.msra.mxu0 0
        %1055 = vmatprep.subr.bf16.mxu0 0
        %1056 = vmatpush1.bf16.msra.mxu0 0
        %1057 = vmatprep.subr.bf16.mxu0 %v860
        %1058 = vmatpush1.bf16.msra.mxu0 %v859
        %1059 = vmatprep.subr.bf16.mxu0 %v844
        %1060 = vmatpush1.bf16.msra.mxu0 %v843
        %1061 = vmatprep.subr.bf16.mxu0 %v828
        %1062 = vmatpush1.bf16.msra.mxu0 %v827
        %1063 = vmatprep.subr.bf16.mxu0 %v812
        %1064 = vmatpush1.bf16.msra.mxu0 %v811
        %1065 = vmatprep.subr.bf16.mxu0 %v796
        %1066 = vmatpush1.bf16.msra.mxu0 %v795
        %1067 = vmatprep.subr.bf16.mxu0 %v780
        %1068 = vmatpush1.bf16.msra.mxu0 %v779
        %1069 = vmatprep.subr.bf16.mxu0 0
        %1070 = vmatpush2.bf16.msra.mxu0 0
        %1071 = vmatprep.subr.bf16.mxu0 0
        %1072 = vmatpush2.bf16.msra.mxu0 0
        %1073 = vmatprep.subr.bf16.mxu0 0
        %1074 = vmatpush2.bf16.msra.mxu0 0
        %1075 = vmatprep.subr.bf16.mxu0 0
        %1076 = vmatpush2.bf16.msra.mxu0 0
        %1077 = vmatprep.subr.bf16.mxu0 0
        %1078 = vmatpush2.bf16.msra.mxu0 0
        %1079 = vmatprep.subr.bf16.mxu0 0
        %1080 = vmatpush2.bf16.msra.mxu0 0
        %1081 = vmatprep.subr.bf16.mxu0 0
        %1082 = vmatpush2.bf16.msra.mxu0 0
        %1083 = vmatprep.subr.bf16.mxu0 0
        %1084 = vmatpush2.bf16.msra.mxu0 0
        %1085 = vmatprep.mubr.bf16.mxu0 0
        %1086 = vmatmul.mubr.bf16.gmra.mxu0 %v969
        %v1087 = vpop.f32.mrf.mxu0
        %v1088 = vadd.f32 %v485, %v1087
        %v1089 = vpop.f32.mrf.mxu0
        %v1090 = vadd.f32 %v485, %v1089
        %v1091 = vpop.f32.mrf.mxu0
        %v1092 = vpop.f32.mrf.mxu0
        %1093 = vdwg.mxu0
        %1094 = vmatprep.subr.bf16.mxu0 0
        %1095 = vmatpush1.bf16.msra.mxu0 0
        %1096 = vmatprep.subr.bf16.mxu0 0
        %1097 = vmatpush1.bf16.msra.mxu0 0
        %1098 = vmatprep.subr.bf16.mxu0 %v862
        %1099 = vmatpush1.bf16.msra.mxu0 %v861
        %1100 = vmatprep.subr.bf16.mxu0 %v846
        %1101 = vmatpush1.bf16.msra.mxu0 %v845
        %1102 = vmatprep.subr.bf16.mxu0 %v830
        %1103 = vmatpush1.bf16.msra.mxu0 %v829
        %1104 = vmatprep.subr.bf16.mxu0 %v814
        %1105 = vmatpush1.bf16.msra.mxu0 %v813
        %1106 = vmatprep.subr.bf16.mxu0 %v798
        %1107 = vmatpush1.bf16.msra.mxu0 %v797
        %1108 = vmatprep.subr.bf16.mxu0 %v782
        %1109 = vmatpush1.bf16.msra.mxu0 %v781
        %1110 = vmatprep.subr.bf16.mxu0 0
        %1111 = vmatpush2.bf16.msra.mxu0 0
        %1112 = vmatprep.subr.bf16.mxu0 0
        %1113 = vmatpush2.bf16.msra.mxu0 0
        %1114 = vmatprep.subr.bf16.mxu0 0
        %1115 = vmatpush2.bf16.msra.mxu0 0
        %1116 = vmatprep.subr.bf16.mxu0 0
        %1117 = vmatpush2.bf16.msra.mxu0 0
        %1118 = vmatprep.subr.bf16.mxu0 0
        %1119 = vmatpush2.bf16.msra.mxu0 0
        %1120 = vmatprep.subr.bf16.mxu0 0
        %1121 = vmatpush2.bf16.msra.mxu0 0
        %1122 = vmatprep.subr.bf16.mxu0 0
        %1123 = vmatpush2.bf16.msra.mxu0 0
        %1124 = vmatprep.subr.bf16.mxu0 0
        %1125 = vmatpush2.bf16.msra.mxu0 0
        %1126 = vmatprep.mubr.bf16.mxu0 0
        %1127 = vmatmul.mubr.bf16.gmra.mxu0 %v969
        %v1128 = vpop.f32.mrf.mxu0
        %v1129 = vadd.f32 %v485, %v1128
        %v1130 = vpop.f32.mrf.mxu0
        %v1131 = vadd.f32 %v485, %v1130
        %v1132 = vpop.f32.mrf.mxu0
        %v1133 = vpop.f32.mrf.mxu0
        %1134 = vdwg.mxu0
        %1135 = vmatprep.subr.bf16.mxu0 0
        %1136 = vmatpush1.bf16.msra.mxu0 0
        %1137 = vmatprep.subr.bf16.mxu0 0
        %1138 = vmatpush1.bf16.msra.mxu0 0
        %1139 = vmatprep.subr.bf16.mxu0 %v864
        %1140 = vmatpush1.bf16.msra.mxu0 %v863
        %1141 = vmatprep.subr.bf16.mxu0 %v848
        %1142 = vmatpush1.bf16.msra.mxu0 %v847
        %1143 = vmatprep.subr.bf16.mxu0 %v832
        %1144 = vmatpush1.bf16.msra.mxu0 %v831
        %1145 = vmatprep.subr.bf16.mxu0 %v816
        %1146 = vmatpush1.bf16.msra.mxu0 %v815
        %1147 = vmatprep.subr.bf16.mxu0 %v800
        %1148 = vmatpush1.bf16.msra.mxu0 %v799
        %1149 = vmatprep.subr.bf16.mxu0 %v784
        %1150 = vmatpush1.bf16.msra.mxu0 %v783
        %1151 = vmatprep.subr.bf16.mxu0 0
        %1152 = vmatpush2.bf16.msra.mxu0 0
        %1153 = vmatprep.subr.bf16.mxu0 0
        %1154 = vmatpush2.bf16.msra.mxu0 0
        %1155 = vmatprep.subr.bf16.mxu0 0
        %1156 = vmatpush2.bf16.msra.mxu0 0
        %1157 = vmatprep.subr.bf16.mxu0 0
        %1158 = vmatpush2.bf16.msra.mxu0 0
        %1159 = vmatprep.subr.bf16.mxu0 0
        %1160 = vmatpush2.bf16.msra.mxu0 0
        %1161 = vmatprep.subr.bf16.mxu0 0
        %1162 = vmatpush2.bf16.msra.mxu0 0
        %1163 = vmatprep.subr.bf16.mxu0 0
        %1164 = vmatpush2.bf16.msra.mxu0 0
        %1165 = vmatprep.subr.bf16.mxu0 0
        %1166 = vmatpush2.bf16.msra.mxu0 0
        %1167 = vmatprep.mubr.bf16.mxu0 0
        %1168 = vmatmul.mubr.bf16.gmra.mxu0 %v969
        %v1169 = vpop.f32.mrf.mxu0
        %v1170 = vadd.f32 %v485, %v1169
        %v1171 = vpop.f32.mrf.mxu0
        %v1172 = vadd.f32 %v485, %v1171
        %v1173 = vpop.f32.mrf.mxu0
        %v1174 = vpop.f32.mrf.mxu0
        %1175 = vdwg.mxu0
        %1176 = vmatprep.subr.bf16.mxu0 0
        %1177 = vmatpush1.bf16.msra.mxu0 0
        %1178 = vmatprep.subr.bf16.mxu0 0
        %1179 = vmatpush1.bf16.msra.mxu0 0
        %1180 = vmatprep.subr.bf16.mxu0 %v866
        %1181 = vmatpush1.bf16.msra.mxu0 %v865
        %1182 = vmatprep.subr.bf16.mxu0 %v850
        %1183 = vmatpush1.bf16.msra.mxu0 %v849
        %1184 = vmatprep.subr.bf16.mxu0 %v834
        %1185 = vmatpush1.bf16.msra.mxu0 %v833
        %1186 = vmatprep.subr.bf16.mxu0 %v818
        %1187 = vmatpush1.bf16.msra.mxu0 %v817
        %1188 = vmatprep.subr.bf16.mxu0 %v802
        %1189 = vmatpush1.bf16.msra.mxu0 %v801
        %1190 = vmatprep.subr.bf16.mxu0 %v786
        %1191 = vmatpush1.bf16.msra.mxu0 %v785
        %1192 = vmatprep.subr.bf16.mxu0 0
        %1193 = vmatpush2.bf16.msra.mxu0 0
        %1194 = vmatprep.subr.bf16.mxu0 0
        %1195 = vmatpush2.bf16.msra.mxu0 0
        %1196 = vmatprep.subr.bf16.mxu0 0
        %1197 = vmatpush2.bf16.msra.mxu0 0
        %1198 = vmatprep.subr.bf16.mxu0 0
        %1199 = vmatpush2.bf16.msra.mxu0 0
        %1200 = vmatprep.subr.bf16.mxu0 0
        %1201 = vmatpush2.bf16.msra.mxu0 0
        %1202 = vmatprep.subr.bf16.mxu0 0
        %1203 = vmatpush2.bf16.msra.mxu0 0
        %1204 = vmatprep.subr.bf16.mxu0 0
        %1205 = vmatpush2.bf16.msra.mxu0 0
        %1206 = vmatprep.subr.bf16.mxu0 0
        %1207 = vmatpush2.bf16.msra.mxu0 0
        %1208 = vmatprep.mubr.bf16.mxu0 0
        %1209 = vmatmul.mubr.bf16.gmra.mxu0 %v969
        %v1210 = vpop.f32.mrf.mxu0
        %v1211 = vadd.f32 %v485, %v1210
        %v1212 = vpop.f32.mrf.mxu0
        %v1213 = vadd.f32 %v485, %v1212
        %v1214 = vpop.f32.mrf.mxu0
        %v1215 = vpop.f32.mrf.mxu0
        %1216 = vdwg.mxu0
        %1217 = vmatprep.subr.bf16.mxu0 0
        %1218 = vmatpush1.bf16.msra.mxu0 0
        %1219 = vmatprep.subr.bf16.mxu0 0
        %1220 = vmatpush1.bf16.msra.mxu0 0
        %1221 = vmatprep.subr.bf16.mxu0 %v868
        %1222 = vmatpush1.bf16.msra.mxu0 %v867
        %1223 = vmatprep.subr.bf16.mxu0 %v852
        %1224 = vmatpush1.bf16.msra.mxu0 %v851
        %1225 = vmatprep.subr.bf16.mxu0 %v836
        %1226 = vmatpush1.bf16.msra.mxu0 %v835
        %1227 = vmatprep.subr.bf16.mxu0 %v820
        %1228 = vmatpush1.bf16.msra.mxu0 %v819
        %1229 = vmatprep.subr.bf16.mxu0 %v804
        %1230 = vmatpush1.bf16.msra.mxu0 %v803
        %1231 = vmatprep.subr.bf16.mxu0 %v788
        %1232 = vmatpush1.bf16.msra.mxu0 %v787
        %1233 = vmatprep.subr.bf16.mxu0 0
        %1234 = vmatpush2.bf16.msra.mxu0 0
        %1235 = vmatprep.subr.bf16.mxu0 0
        %1236 = vmatpush2.bf16.msra.mxu0 0
        %1237 = vmatprep.subr.bf16.mxu0 0
        %1238 = vmatpush2.bf16.msra.mxu0 0
        %1239 = vmatprep.subr.bf16.mxu0 0
        %1240 = vmatpush2.bf16.msra.mxu0 0
        %1241 = vmatprep.subr.bf16.mxu0 0
        %1242 = vmatpush2.bf16.msra.mxu0 0
        %1243 = vmatprep.subr.bf16.mxu0 0
        %1244 = vmatpush2.bf16.msra.mxu0 0
        %1245 = vmatprep.subr.bf16.mxu0 0
        %1246 = vmatpush2.bf16.msra.mxu0 0
        %1247 = vmatprep.subr.bf16.mxu0 0
        %1248 = vmatpush2.bf16.msra.mxu0 0
        %1249 = vmatprep.mubr.bf16.mxu0 0
        %1250 = vmatmul.mubr.bf16.gmra.mxu0 %v969
        %v1251 = vpop.f32.mrf.mxu0
        %v1252 = vadd.f32 %v485, %v1251
        %v1253 = vpop.f32.mrf.mxu0
        %v1254 = vadd.f32 %v485, %v1253
        %v1255 = vpop.f32.mrf.mxu0
        %v1256 = vpop.f32.mrf.mxu0
        %1257 = vdwg.mxu0
        %1258 = vmatprep.subr.bf16.mxu0 0
        %1259 = vmatpush1.bf16.msra.mxu0 0
        %1260 = vmatprep.subr.bf16.mxu0 0
        %1261 = vmatpush1.bf16.msra.mxu0 0
        %1262 = vmatprep.subr.bf16.mxu0 %v870
        %1263 = vmatpush1.bf16.msra.mxu0 %v869
        %1264 = vmatprep.subr.bf16.mxu0 %v854
        %1265 = vmatpush1.bf16.msra.mxu0 %v853
        %1266 = vmatprep.subr.bf16.mxu0 %v838
        %1267 = vmatpush1.bf16.msra.mxu0 %v837
        %1268 = vmatprep.subr.bf16.mxu0 %v822
        %1269 = vmatpush1.bf16.msra.mxu0 %v821
        %1270 = vmatprep.subr.bf16.mxu0 %v806
        %1271 = vmatpush1.bf16.msra.mxu0 %v805
        %1272 = vmatprep.subr.bf16.mxu0 %v790
        %1273 = vmatpush1.bf16.msra.mxu0 %v789
        %1274 = vmatprep.subr.bf16.mxu0 0
        %1275 = vmatpush2.bf16.msra.mxu0 0
        %1276 = vmatprep.subr.bf16.mxu0 0
        %1277 = vmatpush2.bf16.msra.mxu0 0
        %1278 = vmatprep.subr.bf16.mxu0 0
        %1279 = vmatpush2.bf16.msra.mxu0 0
        %1280 = vmatprep.subr.bf16.mxu0 0
        %1281 = vmatpush2.bf16.msra.mxu0 0
        %1282 = vmatprep.subr.bf16.mxu0 0
        %1283 = vmatpush2.bf16.msra.mxu0 0
        %1284 = vmatprep.subr.bf16.mxu0 0
        %1285 = vmatpush2.bf16.msra.mxu0 0
        %1286 = vmatprep.subr.bf16.mxu0 0
        %1287 = vmatpush2.bf16.msra.mxu0 0
        %1288 = vmatprep.subr.bf16.mxu0 0
        %1289 = vmatpush2.bf16.msra.mxu0 0
        %1290 = vmatprep.mubr.bf16.mxu0 0
        %1291 = vmatmul.mubr.bf16.gmra.mxu0 %v969
        %v1292 = vpop.f32.mrf.mxu0
        %v1293 = vadd.f32 %v485, %v1292
        %v1294 = vpop.f32.mrf.mxu0
        %v1295 = vadd.f32 %v485, %v1294
        %v1296 = vpop.f32.mrf.mxu0
        %v1297 = vpop.f32.mrf.mxu0
        %1298 = vdwg.mxu0
        %v1299 = vmax.f32 %v1006, 0.0
        %v1300 = vmax.f32 %v1008, 0.0
        %v1301 = vmax.f32 %v1047, 0.0
        %v1302 = vmax.f32 %v1049, 0.0
        %v1303 = vmax.f32 %v1088, 0.0
        %v1304 = vmax.f32 %v1090, 0.0
        %v1305 = vmax.f32 %v1129, 0.0
        %v1306 = vmax.f32 %v1131, 0.0
        %v1307 = vmax.f32 %v1170, 0.0
        %v1308 = vmax.f32 %v1172, 0.0
        %v1309 = vmax.f32 %v1211, 0.0
        %v1310 = vmax.f32 %v1213, 0.0
        %v1311 = vmax.f32 %v1252, 0.0
        %v1312 = vmax.f32 %v1254, 0.0
        %v1313 = vmax.f32 %v1293, 0.0
        %v1314 = vmax.f32 %v1295, 0.0
        %1315 = vst [vmem:[%s381] sm:$0xff] %v1299
        %1316 = vst [vmem:[%s381 + $0x8] sm:$0xff] %v1300
        %1317 = vst [vmem:[%s381 + $0x10] sm:$0xff] %v1301
        %1318 = vst [vmem:[%s381 + $0x18] sm:$0xff] %v1302
        %1319 = vst [vmem:[%s381 + $0x20] sm:$0xff] %v1303
        %1320 = vst [vmem:[%s381 + $0x28] sm:$0xff] %v1304
        %1321 = vst [vmem:[%s381 + $0x30] sm:$0xff] %v1305
        %1322 = vst [vmem:[%s381 + $0x38] sm:$0xff] %v1306
        %1323 = vst [vmem:[%s381 + $0x40] sm:$0xff] %v1307
        %1324 = vst [vmem:[%s381 + $0x48] sm:$0xff] %v1308
        %1325 = vst [vmem:[%s381 + $0x50] sm:$0xff] %v1309
        %1326 = vst [vmem:[%s381 + $0x58] sm:$0xff] %v1310
        %1327 = vst [vmem:[%s381 + $0x60] sm:$0xff] %v1311
        %1328 = vst [vmem:[%s381 + $0x68] sm:$0xff] %v1312
        %1329 = vst [vmem:[%s381 + $0x70] sm:$0xff] %v1313
        %1330 = vst [vmem:[%s381 + $0x78] sm:$0xff] %v1314
        %s1331 = smul.u32 16, %s14
        %p1332 = scmp.lt.s32.totalorder %s1331, 31
        %s1333 = scalar_select %p1332, %s1331, 31
        %s1334 = smul.addr %s1333, 8
        %s1335 = scalar_lea.vmem %s3, %s1334
        // Predicated region
        $region56: #{generator_forward.6} parent=50 // pred_check
          %p1336 = pneg %p100
        $region57: #{generator_forward.6} parent=50 // pred_check_branch
          %1338 = sbr.rel (%p1336) target = $region59
        $region58: #{generator_forward.6} parent=50 // pred_region
          %s1339 = smul.u32 16, %s14
        $region59: #{generator_forward.6} parent=50 // pred_fallthru
          _
      $region51: #{generator_forward.6} parent=5 // pred_fallthru
        _
      %p1340 = scmp.le.s32.totalorder 2, %s9
      // Predicated region
      $region60: #{generator_forward.6} parent=5 // pred_check
        %p1341 = pneg %p1340
      $region61: #{generator_forward.6} parent=5 // pred_check_branch
        %1343 = sbr.rel (%p1341) target = $region63
      $region62: #{generator_forward.6} parent=5 // pred_region
        %s1344 = ssub.s32 %s9, 2
        // Predicated region
        $region64: #{generator_forward.6} parent=62 // pred_check
          %p1345 = pneg %p106
        $region65: #{generator_forward.6} parent=62 // pred_check_branch
          %1347 = sbr.rel (%p1345) target = $region67
        $region66: #{generator_forward.6} parent=62 // pred_region
          %s1348 = smul.u32 16, %s15
          %p1349 = scmp.lt.s32.totalorder %s1348, 31
          %s1350 = scalar_select %p1349, %s1348, 31
          %s1351 = smul.addr %s1350, 8
          %s1352 = scalar_lea.vmem %s3, %s1351
        $region67: #{generator_forward.6} parent=62 // pred_fallthru
          _
      $region63: #{generator_forward.6} parent=5 // pred_fallthru
        _
    $region6: #{generator_forward.6} parent=1 // loop_footer
      %s13 = sadd.s32 1, %s9
    $region7: #{generator_forward.6} parent=1 // loop_footer_branch
      %8 = sbr.rel target = $region3
    $region8: #{generator_forward.6} parent=1 // loop_exit
      _

// kernel: generator_forward.7
$region0: #{generator_forward.7}
  #allocation0 [shape = 'u32[]', space=smem, size = 0x4, offset = 0x4, fixed_abs, tag = 'smem constant byte address 0x4 - core index']
  #allocation1 [shape = 'u32[144,128]{1,0:T(1,128)}', space=vmem, size = 0x12000, scoped, tag = 'internal scratch']
  %s0 = inlined_call_operand.vmem [shape: bf16[16,224], index: 0, kind: input, shape index: {}]
  %s1 = inlined_call_operand.vmem [shape: bf16[224,512], index: 1, kind: input, shape index: {}]
  %s2 = inlined_call_operand.vmem [shape: f32[16,1], index: 2, kind: input, shape index: {}]
  %s3 = inlined_call_operand.vmem [shape: f32[16,512], index: 3, kind: output, shape index: {}]
  %s4 = sld [smem:[#allocation0]]
  $region22: #{generator_forward.7} parent=0
    _
  %s6 = ssub.s32 1, %s4
  %s7 = scalar_select 0, %s6, %s4
  // Predicated region
  $region2: #{generator_forward.7} parent=0 // pred_check
    _
  $region3: #{generator_forward.7} parent=0 // pred_check_branch
    %9 = sbr.rel (0) target = $region5
  $region4: #{generator_forward.7} parent=0 // pred_region
    _
  $region5: #{generator_forward.7} parent=0 // pred_fallthru
    _
  // Predicated region
  $region6: #{generator_forward.7} parent=0 // pred_check
    _
  $region7: #{generator_forward.7} parent=0 // pred_check_branch
    %11 = sbr.rel (0) target = $region9
  $region8: #{generator_forward.7} parent=0 // pred_region
    _
  $region9: #{generator_forward.7} parent=0 // pred_fallthru
    _
  // Predicated region
  $region10: #{generator_forward.7} parent=0 // pred_check
    _
  $region11: #{generator_forward.7} parent=0 // pred_check_branch
    %13 = sbr.rel (0) target = $region13
  $region12: #{generator_forward.7} parent=0 // pred_region
    _
  $region13: #{generator_forward.7} parent=0 // pred_fallthru
    _
  %v15 = vld [vmem:[%s0] sm:$0xff]
  %v16 = vld [vmem:[%s0 + $0x8] sm:$0xff]
  %v17 = vld [vmem:[%s1] sm:$0xff]
  %v18 = vld [vmem:[%s1 + $0x8] sm:$0xff]
  %v19 = vld [vmem:[%s1 + $0x10] sm:$0xff]
  %v20 = vld [vmem:[%s1 + $0x18] sm:$0xff]
  %v21 = vld [vmem:[%s1 + $0x20] sm:$0xff]
  %v22 = vld [vmem:[%s1 + $0x28] sm:$0xff]
  %v23 = vld [vmem:[%s1 + $0x30] sm:$0xff]
  %v24 = vld [vmem:[%s1 + $0x38] sm:$0xff]
  %v25 = vld [vmem:[%s1 + $0x40] sm:$0xff]
  %v26 = vld [vmem:[%s1 + $0x48] sm:$0xff]
  %v27 = vld [vmem:[%s1 + $0x50] sm:$0xff]
  %v28 = vld [vmem:[%s1 + $0x58] sm:$0xff]
  %v29 = vld [vmem:[%s1 + $0x60] sm:$0xff]
  %v30 = vld [vmem:[%s1 + $0x68] sm:$0xff]
  %v31 = vld [vmem:[%s1 + $0x70] sm:$0xff]
  %v32 = vld [vmem:[%s1 + $0x78] sm:$0xff]
  %v33 = vld [vmem:[%s1 + $0x80] sm:$0xff]
  %v34 = vld [vmem:[%s1 + $0x88] sm:$0xff]
  %v35 = vld [vmem:[%s1 + $0x90] sm:$0xff]
  %v36 = vld [vmem:[%s1 + $0x98] sm:$0xff]
  %v37 = vld [vmem:[%s1 + $0xa0] sm:$0xff]
  %v38 = vld [vmem:[%s1 + $0xa8] sm:$0xff]
  %v39 = vld [vmem:[%s1 + $0xb0] sm:$0xff]
  %v40 = vld [vmem:[%s1 + $0xb8] sm:$0xff]
  %v41 = vld [vmem:[%s1 + $0xc0] sm:$0xff]
  %v42 = vld [vmem:[%s1 + $0xc8] sm:$0xff]
  %v43 = vld [vmem:[%s1 + $0xd0] sm:$0xff]
  %v44 = vld [vmem:[%s1 + $0xd8] sm:$0xff]
  %v45 = vld [vmem:[%s1 + $0xe0] sm:$0xff]
  %v46 = vld [vmem:[%s1 + $0xe8] sm:$0xff]
  %v47 = vld [vmem:[%s1 + $0xf0] sm:$0xff]
  %v48 = vld [vmem:[%s1 + $0xf8] sm:$0xff]
  %v49 = vld [vmem:[%s1 + $0x100] sm:$0xff]
  %v50 = vld [vmem:[%s1 + $0x108] sm:$0xff]
  %v51 = vld [vmem:[%s1 + $0x110] sm:$0xff]
  %v52 = vld [vmem:[%s1 + $0x118] sm:$0xff]
  %v53 = vld [vmem:[%s1 + $0x120] sm:$0xff]
  %v54 = vld [vmem:[%s1 + $0x128] sm:$0xff]
  %v55 = vld [vmem:[%s1 + $0x130] sm:$0xff]
  %v56 = vld [vmem:[%s1 + $0x138] sm:$0xff]
  %v57 = vld [vmem:[%s1 + $0x140] sm:$0xff]
  %v58 = vld [vmem:[%s1 + $0x148] sm:$0xff]
  %v59 = vld [vmem:[%s1 + $0x150] sm:$0xff]
  %v60 = vld [vmem:[%s1 + $0x158] sm:$0xff]
  %v61 = vld [vmem:[%s1 + $0x160] sm:$0xff]
  %v62 = vld [vmem:[%s1 + $0x168] sm:$0xff]
  %v63 = vld [vmem:[%s1 + $0x170] sm:$0xff]
  %v64 = vld [vmem:[%s1 + $0x178] sm:$0xff]
  %v65 = vld [vmem:[%s1 + $0x180] sm:$0xff]
  %v66 = vld [vmem:[%s1 + $0x188] sm:$0xff]
  %v67 = vld [vmem:[%s1 + $0x190] sm:$0xff]
  %v68 = vld [vmem:[%s1 + $0x198] sm:$0xff]
  %v69 = vld [vmem:[%s1 + $0x1a0] sm:$0xff]
  %v70 = vld [vmem:[%s1 + $0x1a8] sm:$0xff]
  %v71 = vld [vmem:[%s1 + $0x1b0] sm:$0xff]
  %v72 = vld [vmem:[%s1 + $0x1b8] sm:$0xff]
  %v73 = vld [vmem:[%s2] sm:$0xff]
  %v74 = vld [vmem:[%s2 + $0x8] sm:$0xff]
  %76 = vset.pattern.permute.xlu0 0
  %77 = vperm.xlu0 %76, %v73
  %v78 = vpop.permute.xlu0 %77
  %81 = vset.pattern.permute.xlu0 0
  %82 = vperm.xlu0 %81, %v74
  %v83 = vpop.permute.xlu0 %82
  %v87 = vunpack.c.l.b16 %v15
  %v88 = vunpack.c.h.b16 %v15
  %v89 = vunpack.c.l.b16 %v16
  %v90 = vunpack.c.h.b16 %v16
  %v91 = vpack.c.b16 %v89, %v87
  %v92 = vpack.c.b16 %v90, %v88
  %v150 = vunpack.c.l.b16 %v17
  %v151 = vunpack.c.h.b16 %v17
  %v152 = vunpack.c.l.b16 %v18
  %v153 = vunpack.c.h.b16 %v18
  %v154 = vunpack.c.l.b16 %v19
  %v155 = vunpack.c.h.b16 %v19
  %v156 = vunpack.c.l.b16 %v20
  %v157 = vunpack.c.h.b16 %v20
  %v158 = vunpack.c.l.b16 %v21
  %v159 = vunpack.c.h.b16 %v21
  %v160 = vunpack.c.l.b16 %v22
  %v161 = vunpack.c.h.b16 %v22
  %v162 = vunpack.c.l.b16 %v23
  %v163 = vunpack.c.h.b16 %v23
  %v164 = vunpack.c.l.b16 %v24
  %v165 = vunpack.c.h.b16 %v24
  %v166 = vunpack.c.l.b16 %v25
  %v167 = vunpack.c.h.b16 %v25
  %v168 = vunpack.c.l.b16 %v26
  %v169 = vunpack.c.h.b16 %v26
  %v170 = vunpack.c.l.b16 %v27
  %v171 = vunpack.c.h.b16 %v27
  %v172 = vunpack.c.l.b16 %v28
  %v173 = vunpack.c.h.b16 %v28
  %v174 = vunpack.c.l.b16 %v29
  %v175 = vunpack.c.h.b16 %v29
  %v176 = vunpack.c.l.b16 %v30
  %v177 = vunpack.c.h.b16 %v30
  %v178 = vunpack.c.l.b16 %v31
  %v179 = vunpack.c.h.b16 %v31
  %v180 = vunpack.c.l.b16 %v32
  %v181 = vunpack.c.h.b16 %v32
  %v182 = vunpack.c.l.b16 %v33
  %v183 = vunpack.c.h.b16 %v33
  %v184 = vunpack.c.l.b16 %v34
  %v185 = vunpack.c.h.b16 %v34
  %v186 = vunpack.c.l.b16 %v35
  %v187 = vunpack.c.h.b16 %v35
  %v188 = vunpack.c.l.b16 %v36
  %v189 = vunpack.c.h.b16 %v36
  %v190 = vunpack.c.l.b16 %v37
  %v191 = vunpack.c.h.b16 %v37
  %v192 = vunpack.c.l.b16 %v38
  %v193 = vunpack.c.h.b16 %v38
  %v194 = vunpack.c.l.b16 %v39
  %v195 = vunpack.c.h.b16 %v39
  %v196 = vunpack.c.l.b16 %v40
  %v197 = vunpack.c.h.b16 %v40
  %v198 = vunpack.c.l.b16 %v41
  %v199 = vunpack.c.h.b16 %v41
  %v200 = vunpack.c.l.b16 %v42
  %v201 = vunpack.c.h.b16 %v42
  %v202 = vunpack.c.l.b16 %v43
  %v203 = vunpack.c.h.b16 %v43
  %v204 = vunpack.c.l.b16 %v44
  %v205 = vunpack.c.h.b16 %v44
  %v206 = vunpack.c.l.b16 %v45
  %v207 = vunpack.c.h.b16 %v45
  %v208 = vunpack.c.l.b16 %v46
  %v209 = vunpack.c.h.b16 %v46
  %v210 = vunpack.c.l.b16 %v47
  %v211 = vunpack.c.h.b16 %v47
  %v212 = vunpack.c.l.b16 %v48
  %v213 = vunpack.c.h.b16 %v48
  %v214 = vunpack.c.l.b16 %v49
  %v215 = vunpack.c.h.b16 %v49
  %v216 = vunpack.c.l.b16 %v50
  %v217 = vunpack.c.h.b16 %v50
  %v218 = vunpack.c.l.b16 %v51
  %v219 = vunpack.c.h.b16 %v51
  %v220 = vunpack.c.l.b16 %v52
  %v221 = vunpack.c.h.b16 %v52
  %v222 = vunpack.c.l.b16 %v53
  %v223 = vunpack.c.h.b16 %v53
  %v224 = vunpack.c.l.b16 %v54
  %v225 = vunpack.c.h.b16 %v54
  %v226 = vunpack.c.l.b16 %v55
  %v227 = vunpack.c.h.b16 %v55
  %v228 = vunpack.c.l.b16 %v56
  %v229 = vunpack.c.h.b16 %v56
  %v230 = vunpack.c.l.b16 %v57
  %v231 = vunpack.c.h.b16 %v57
  %v232 = vunpack.c.l.b16 %v58
  %v233 = vunpack.c.h.b16 %v58
  %v234 = vunpack.c.l.b16 %v59
  %v235 = vunpack.c.h.b16 %v59
  %v236 = vunpack.c.l.b16 %v60
  %v237 = vunpack.c.h.b16 %v60
  %v238 = vunpack.c.l.b16 %v61
  %v239 = vunpack.c.h.b16 %v61
  %v240 = vunpack.c.l.b16 %v62
  %v241 = vunpack.c.h.b16 %v62
  %v242 = vunpack.c.l.b16 %v63
  %v243 = vunpack.c.h.b16 %v63
  %v244 = vunpack.c.l.b16 %v64
  %v245 = vunpack.c.h.b16 %v64
  %v246 = vunpack.c.l.b16 %v65
  %v247 = vunpack.c.h.b16 %v65
  %v248 = vunpack.c.l.b16 %v66
  %v249 = vunpack.c.h.b16 %v66
  %v250 = vunpack.c.l.b16 %v67
  %v251 = vunpack.c.h.b16 %v67
  %v252 = vunpack.c.l.b16 %v68
  %v253 = vunpack.c.h.b16 %v68
  %v254 = vunpack.c.l.b16 %v69
  %v255 = vunpack.c.h.b16 %v69
  %v256 = vunpack.c.l.b16 %v70
  %v257 = vunpack.c.h.b16 %v70
  %v258 = vunpack.c.l.b16 %v71
  %v259 = vunpack.c.h.b16 %v71
  %v260 = vunpack.c.l.b16 %v72
  %v261 = vunpack.c.h.b16 %v72
  %v262 = vpack.c.b16 %v154, %v150
  %v263 = vpack.c.b16 %v155, %v151
  %v264 = vpack.c.b16 %v156, %v152
  %v265 = vpack.c.b16 %v157, %v153
  %v266 = vpack.c.b16 %v162, %v158
  %v267 = vpack.c.b16 %v163, %v159
  %v268 = vpack.c.b16 %v164, %v160
  %v269 = vpack.c.b16 %v165, %v161
  %v270 = vpack.c.b16 %v170, %v166
  %v271 = vpack.c.b16 %v171, %v167
  %v272 = vpack.c.b16 %v172, %v168
  %v273 = vpack.c.b16 %v173, %v169
  %v274 = vpack.c.b16 %v178, %v174
  %v275 = vpack.c.b16 %v179, %v175
  %v276 = vpack.c.b16 %v180, %v176
  %v277 = vpack.c.b16 %v181, %v177
  %v278 = vpack.c.b16 %v186, %v182
  %v279 = vpack.c.b16 %v187, %v183
  %v280 = vpack.c.b16 %v188, %v184
  %v281 = vpack.c.b16 %v189, %v185
  %v282 = vpack.c.b16 %v194, %v190
  %v283 = vpack.c.b16 %v195, %v191
  %v284 = vpack.c.b16 %v196, %v192
  %v285 = vpack.c.b16 %v197, %v193
  %v286 = vpack.c.b16 %v202, %v198
  %v287 = vpack.c.b16 %v203, %v199
  %v288 = vpack.c.b16 %v204, %v200
  %v289 = vpack.c.b16 %v205, %v201
  %v290 = vpack.c.b16 %v210, %v206
  %v291 = vpack.c.b16 %v211, %v207
  %v292 = vpack.c.b16 %v212, %v208
  %v293 = vpack.c.b16 %v213, %v209
  %v294 = vpack.c.b16 %v218, %v214
  %v295 = vpack.c.b16 %v219, %v215
  %v296 = vpack.c.b16 %v220, %v216
  %v297 = vpack.c.b16 %v221, %v217
  %v298 = vpack.c.b16 %v226, %v222
  %v299 = vpack.c.b16 %v227, %v223
  %v300 = vpack.c.b16 %v228, %v224
  %v301 = vpack.c.b16 %v229, %v225
  %v302 = vpack.c.b16 %v234, %v230
  %v303 = vpack.c.b16 %v235, %v231
  %v304 = vpack.c.b16 %v236, %v232
  %v305 = vpack.c.b16 %v237, %v233
  %v306 = vpack.c.b16 %v242, %v238
  %v307 = vpack.c.b16 %v243, %v239
  %v308 = vpack.c.b16 %v244, %v240
  %v309 = vpack.c.b16 %v245, %v241
  %v310 = vpack.c.b16 %v250, %v246
  %v311 = vpack.c.b16 %v251, %v247
  %v312 = vpack.c.b16 %v252, %v248
  %v313 = vpack.c.b16 %v253, %v249
  %v314 = vpack.c.b16 %v258, %v254
  %v315 = vpack.c.b16 %v259, %v255
  %v316 = vpack.c.b16 %v260, %v256
  %v317 = vpack.c.b16 %v261, %v257
  %vm374 = vcmask 785408
  %v376 = vsel %vm374, %v92, 0
  %378 = vmatprep.subr.bf16.mxu0 %v291
  %379 = vmatpush1.bf16.msra.mxu0 %v290
  %380 = vmatprep.subr.bf16.mxu0 %v287
  %381 = vmatpush1.bf16.msra.mxu0 %v286
  %382 = vmatprep.subr.bf16.mxu0 %v283
  %383 = vmatpush1.bf16.msra.mxu0 %v282
  %384 = vmatprep.subr.bf16.mxu0 %v279
  %385 = vmatpush1.bf16.msra.mxu0 %v278
  %386 = vmatprep.subr.bf16.mxu0 %v275
  %387 = vmatpush1.bf16.msra.mxu0 %v274
  %388 = vmatprep.subr.bf16.mxu0 %v271
  %389 = vmatpush1.bf16.msra.mxu0 %v270
  %390 = vmatprep.subr.bf16.mxu0 %v267
  %391 = vmatpush1.bf16.msra.mxu0 %v266
  %392 = vmatprep.subr.bf16.mxu0 %v263
  %393 = vmatpush1.bf16.msra.mxu0 %v262
  %394 = vmatprep.subr.bf16.mxu0 0
  %395 = vmatpush2.bf16.msra.mxu0 0
  %396 = vmatprep.subr.bf16.mxu0 0
  %397 = vmatpush2.bf16.msra.mxu0 0
  %398 = vmatprep.subr.bf16.mxu0 %v315
  %399 = vmatpush2.bf16.msra.mxu0 %v314
  %400 = vmatprep.subr.bf16.mxu0 %v311
  %401 = vmatpush2.bf16.msra.mxu0 %v310
  %402 = vmatprep.subr.bf16.mxu0 %v307
  %403 = vmatpush2.bf16.msra.mxu0 %v306
  %404 = vmatprep.subr.bf16.mxu0 %v303
  %405 = vmatpush2.bf16.msra.mxu0 %v302
  %406 = vmatprep.subr.bf16.mxu0 %v299
  %407 = vmatpush2.bf16.msra.mxu0 %v298
  %408 = vmatprep.subr.bf16.mxu0 %v295
  %409 = vmatpush2.bf16.msra.mxu0 %v294
  %410 = vmatprep.mubr.bf16.mxu0 %v376
  %411 = vmatmul.mubr.bf16.gmra.mxu0 %v91
  %v412 = vpop.f32.mrf.mxu0
  %v413 = vadd.f32 %v78, %v412
  %v414 = vpop.f32.mrf.mxu0
  %v415 = vadd.f32 %v78, %v414
  %v416 = vpop.f32.mrf.mxu0
  %v417 = vadd.f32 %v83, %v416
  %v418 = vpop.f32.mrf.mxu0
  %v419 = vadd.f32 %v83, %v418
  %420 = vdwg.mxu0
  %421 = vmatprep.subr.bf16.mxu0 %v293
  %422 = vmatpush1.bf16.msra.mxu0 %v292
  %423 = vmatprep.subr.bf16.mxu0 %v289
  %424 = vmatpush1.bf16.msra.mxu0 %v288
  %425 = vmatprep.subr.bf16.mxu0 %v285
  %426 = vmatpush1.bf16.msra.mxu0 %v284
  %427 = vmatprep.subr.bf16.mxu0 %v281
  %428 = vmatpush1.bf16.msra.mxu0 %v280
  %429 = vmatprep.subr.bf16.mxu0 %v277
  %430 = vmatpush1.bf16.msra.mxu0 %v276
  %431 = vmatprep.subr.bf16.mxu0 %v273
  %432 = vmatpush1.bf16.msra.mxu0 %v272
  %433 = vmatprep.subr.bf16.mxu0 %v269
  %434 = vmatpush1.bf16.msra.mxu0 %v268
  %435 = vmatprep.subr.bf16.mxu0 %v265
  %436 = vmatpush1.bf16.msra.mxu0 %v264
  %437 = vmatprep.subr.bf16.mxu0 0
  %438 = vmatpush2.bf16.msra.mxu0 0
  %439 = vmatprep.subr.bf16.mxu0 0
  %440 = vmatpush2.bf16.msra.mxu0 0
  %441 = vmatprep.subr.bf16.mxu0 %v317
  %442 = vmatpush2.bf16.msra.mxu0 %v316
  %443 = vmatprep.subr.bf16.mxu0 %v313
  %444 = vmatpush2.bf16.msra.mxu0 %v312
  %445 = vmatprep.subr.bf16.mxu0 %v309
  %446 = vmatpush2.bf16.msra.mxu0 %v308
  %447 = vmatprep.subr.bf16.mxu0 %v305
  %448 = vmatpush2.bf16.msra.mxu0 %v304
  %449 = vmatprep.subr.bf16.mxu0 %v301
  %450 = vmatpush2.bf16.msra.mxu0 %v300
  %451 = vmatprep.subr.bf16.mxu0 %v297
  %452 = vmatpush2.bf16.msra.mxu0 %v296
  %453 = vmatprep.mubr.bf16.mxu0 %v376
  %454 = vmatmul.mubr.bf16.gmra.mxu0 %v91
  %v455 = vpop.f32.mrf.mxu0
  %v456 = vadd.f32 %v78, %v455
  %v457 = vpop.f32.mrf.mxu0
  %v458 = vadd.f32 %v78, %v457
  %v459 = vpop.f32.mrf.mxu0
  %v460 = vadd.f32 %v83, %v459
  %v461 = vpop.f32.mrf.mxu0
  %v462 = vadd.f32 %v83, %v461
  %463 = vdwg.mxu0
  %v464 = vmax.f32 %v413, 0.0
  %v465 = vmax.f32 %v415, 0.0
  %v466 = vmax.f32 %v456, 0.0
  %v467 = vmax.f32 %v458, 0.0
  %v468 = vmax.f32 %v417, 0.0
  %v469 = vmax.f32 %v419, 0.0
  %v470 = vmax.f32 %v460, 0.0
  %v471 = vmax.f32 %v462, 0.0
  %472 = vst [vmem:[%s3] sm:$0xff] %v464
  %473 = vst [vmem:[%s3 + $0x8] sm:$0xff] %v465
  %474 = vst [vmem:[%s3 + $0x10] sm:$0xff] %v466
  %475 = vst [vmem:[%s3 + $0x18] sm:$0xff] %v467
  %476 = vst [vmem:[%s3 + $0x20] sm:$0xff] %v468
  %477 = vst [vmem:[%s3 + $0x28] sm:$0xff] %v469
  %478 = vst [vmem:[%s3 + $0x30] sm:$0xff] %v470
  %479 = vst [vmem:[%s3 + $0x38] sm:$0xff] %v471
  // Predicated region
  $region14: #{generator_forward.7} parent=0 // pred_check
    _
  $region15: #{generator_forward.7} parent=0 // pred_check_branch
    %481 = sbr.rel (0) target = $region17
  $region16: #{generator_forward.7} parent=0 // pred_region
    _
  $region17: #{generator_forward.7} parent=0 // pred_fallthru
    _
  // Predicated region
  $region18: #{generator_forward.7} parent=0 // pred_check
    _
  $region19: #{generator_forward.7} parent=0 // pred_check_branch
    %483 = sbr.rel (0) target = $region21
  $region20: #{generator_forward.7} parent=0 // pred_region
    _
  $region21: #{generator_forward.7} parent=0 // pred_fallthru
    _

// kernel: generator_forward.8
$region0: #{generator_forward.8}
  #allocation0 [shape = 'u32[]', space=smem, size = 0x4, offset = 0x4, fixed_abs, tag = 'smem constant byte address 0x4 - core index']
  #allocation1 [shape = 'u32[144,128]{1,0:T(1,128)}', space=vmem, size = 0x12000, scoped, tag = 'internal scratch']
  %s0 = inlined_call_operand.vmem [shape: bf16[32,432], index: 0, kind: input, shape index: {}]
  %s1 = inlined_call_operand.vmem [shape: bf16[432,64], index: 1, kind: input, shape index: {}]
  %s2 = inlined_call_operand.vmem [shape: f32[32,1], index: 2, kind: input, shape index: {}]
  %s3 = inlined_call_operand.vmem [shape: f32[32,64], index: 3, kind: output, shape index: {}]
  %s4 = sld [smem:[#allocation0]]
  $region22: #{generator_forward.8} parent=0
    _
  %s6 = ssub.s32 1, %s4
  %s7 = scalar_select 0, %s6, %s4
  // Predicated region
  $region2: #{generator_forward.8} parent=0 // pred_check
    _
  $region3: #{generator_forward.8} parent=0 // pred_check_branch
    %9 = sbr.rel (0) target = $region5
  $region4: #{generator_forward.8} parent=0 // pred_region
    _
  $region5: #{generator_forward.8} parent=0 // pred_fallthru
    _
  // Predicated region
  $region6: #{generator_forward.8} parent=0 // pred_check
    _
  $region7: #{generator_forward.8} parent=0 // pred_check_branch
    %11 = sbr.rel (0) target = $region9
  $region8: #{generator_forward.8} parent=0 // pred_region
    _
  $region9: #{generator_forward.8} parent=0 // pred_fallthru
    _
  // Predicated region
  $region10: #{generator_forward.8} parent=0 // pred_check
    _
  $region11: #{generator_forward.8} parent=0 // pred_check_branch
    %13 = sbr.rel (0) target = $region13
  $region12: #{generator_forward.8} parent=0 // pred_region
    _
  $region13: #{generator_forward.8} parent=0 // pred_fallthru
    _
  %v15 = vld [vmem:[%s0] sm:$0xff]
  %v16 = vld [vmem:[%s0 + $0x8] sm:$0xff]
  %v17 = vld [vmem:[%s0 + $0x10] sm:$0xff]
  %v18 = vld [vmem:[%s0 + $0x18] sm:$0xff]
  %v19 = vld [vmem:[%s0 + $0x20] sm:$0xff]
  %v20 = vld [vmem:[%s0 + $0x28] sm:$0xff]
  %v21 = vld [vmem:[%s0 + $0x30] sm:$0xff]
  %v22 = vld [vmem:[%s0 + $0x38] sm:$0xff]
  %v23 = vld [vmem:[%s1] sm:$0xf]
  %v24 = vld [vmem:[%s1 + $0x4] sm:$0xf]
  %v25 = vld [vmem:[%s1 + $0x8] sm:$0xf]
  %v26 = vld [vmem:[%s1 + $0xc] sm:$0xf]
  %v27 = vld [vmem:[%s1 + $0x10] sm:$0xf]
  %v28 = vld [vmem:[%s1 + $0x14] sm:$0xf]
  %v29 = vld [vmem:[%s1 + $0x18] sm:$0xf]
  %v30 = vld [vmem:[%s1 + $0x1c] sm:$0xf]
  %v31 = vld [vmem:[%s1 + $0x20] sm:$0xf]
  %v32 = vld [vmem:[%s1 + $0x24] sm:$0xf]
  %v33 = vld [vmem:[%s1 + $0x28] sm:$0xf]
  %v34 = vld [vmem:[%s1 + $0x2c] sm:$0xf]
  %v35 = vld [vmem:[%s1 + $0x30] sm:$0xf]
  %v36 = vld [vmem:[%s1 + $0x34] sm:$0xf]
  %v37 = vld [vmem:[%s1 + $0x38] sm:$0xf]
  %v38 = vld [vmem:[%s1 + $0x3c] sm:$0xf]
  %v39 = vld [vmem:[%s1 + $0x40] sm:$0xf]
  %v40 = vld [vmem:[%s1 + $0x44] sm:$0xf]
  %v41 = vld [vmem:[%s1 + $0x48] sm:$0xf]
  %v42 = vld [vmem:[%s1 + $0x4c] sm:$0xf]
  %v43 = vld [vmem:[%s1 + $0x50] sm:$0xf]
  %v44 = vld [vmem:[%s1 + $0x54] sm:$0xf]
  %v45 = vld [vmem:[%s1 + $0x58] sm:$0xf]
  %v46 = vld [vmem:[%s1 + $0x5c] sm:$0xf]
  %v47 = vld [vmem:[%s1 + $0x60] sm:$0xf]
  %v48 = vld [vmem:[%s1 + $0x64] sm:$0xf]
  %v49 = vld [vmem:[%s1 + $0x68] sm:$0xf]
  %v50 = vld [vmem:[%s1 + $0x6c] sm:$0xf]
  %v51 = vld [vmem:[%s1 + $0x70] sm:$0xf]
  %v52 = vld [vmem:[%s1 + $0x74] sm:$0xf]
  %v53 = vld [vmem:[%s1 + $0x78] sm:$0xf]
  %v54 = vld [vmem:[%s1 + $0x7c] sm:$0xf]
  %v55 = vld [vmem:[%s1 + $0x80] sm:$0xf]
  %v56 = vld [vmem:[%s1 + $0x84] sm:$0xf]
  %v57 = vld [vmem:[%s1 + $0x88] sm:$0xf]
  %v58 = vld [vmem:[%s1 + $0x8c] sm:$0xf]
  %v59 = vld [vmem:[%s1 + $0x90] sm:$0xf]
  %v60 = vld [vmem:[%s1 + $0x94] sm:$0xf]
  %v61 = vld [vmem:[%s1 + $0x98] sm:$0xf]
  %v62 = vld [vmem:[%s1 + $0x9c] sm:$0xf]
  %v63 = vld [vmem:[%s1 + $0xa0] sm:$0xf]
  %v64 = vld [vmem:[%s1 + $0xa4] sm:$0xf]
  %v65 = vld [vmem:[%s1 + $0xa8] sm:$0xf]
  %v66 = vld [vmem:[%s1 + $0xac] sm:$0xf]
  %v67 = vld [vmem:[%s1 + $0xb0] sm:$0xf]
  %v68 = vld [vmem:[%s1 + $0xb4] sm:$0xf]
  %v69 = vld [vmem:[%s1 + $0xb8] sm:$0xf]
  %v70 = vld [vmem:[%s1 + $0xbc] sm:$0xf]
  %v71 = vld [vmem:[%s1 + $0xc0] sm:$0xf]
  %v72 = vld [vmem:[%s1 + $0xc4] sm:$0xf]
  %v73 = vld [vmem:[%s1 + $0xc8] sm:$0xf]
  %v74 = vld [vmem:[%s1 + $0xcc] sm:$0xf]
  %v75 = vld [vmem:[%s1 + $0xd0] sm:$0xf]
  %v76 = vld [vmem:[%s1 + $0xd4] sm:$0xf]
  %v77 = vld [vmem:[%s2] sm:$0xff]
  %v78 = vld [vmem:[%s2 + $0x8] sm:$0xff]
  %v79 = vld [vmem:[%s2 + $0x10] sm:$0xff]
  %v80 = vld [vmem:[%s2 + $0x18] sm:$0xff]
  %82 = vset.pattern.permute.xlu0 0
  %83 = vperm.xlu0 %82, %v77
  %v84 = vpop.permute.xlu0 %83
  %87 = vset.pattern.permute.xlu0 0
  %88 = vperm.xlu0 %87, %v78
  %v89 = vpop.permute.xlu0 %88
  %92 = vset.pattern.permute.xlu0 0
  %93 = vperm.xlu0 %92, %v79
  %v94 = vpop.permute.xlu0 %93
  %97 = vset.pattern.permute.xlu0 0
  %98 = vperm.xlu0 %97, %v80
  %v99 = vpop.permute.xlu0 %98
  %v109 = vunpack.c.l.b16 %v15
  %v110 = vunpack.c.h.b16 %v15
  %v111 = vunpack.c.l.b16 %v16
  %v112 = vunpack.c.h.b16 %v16
  %v113 = vunpack.c.l.b16 %v17
  %v114 = vunpack.c.h.b16 %v17
  %v115 = vunpack.c.l.b16 %v18
  %v116 = vunpack.c.h.b16 %v18
  %v117 = vunpack.c.l.b16 %v19
  %v118 = vunpack.c.h.b16 %v19
  %v119 = vunpack.c.l.b16 %v20
  %v120 = vunpack.c.h.b16 %v20
  %v121 = vunpack.c.l.b16 %v21
  %v122 = vunpack.c.h.b16 %v21
  %v123 = vunpack.c.l.b16 %v22
  %v124 = vunpack.c.h.b16 %v22
  %v125 = vpack.c.b16 %v113, %v109
  %v126 = vpack.c.b16 %v114, %v110
  %v127 = vpack.c.b16 %v115, %v111
  %v128 = vpack.c.b16 %v116, %v112
  %v129 = vpack.c.b16 %v121, %v117
  %v130 = vpack.c.b16 %v122, %v118
  %v131 = vpack.c.b16 %v123, %v119
  %v132 = vpack.c.b16 %v124, %v120
  %v193 = vunpack.c.l.b16 %v23
  %v194 = vunpack.c.l.b16 %v24
  %v195 = vunpack.c.l.b16 %v25
  %v196 = vunpack.c.l.b16 %v26
  %v197 = vunpack.c.l.b16 %v27
  %v198 = vunpack.c.l.b16 %v28
  %v199 = vunpack.c.l.b16 %v29
  %v200 = vunpack.c.l.b16 %v30
  %v201 = vunpack.c.l.b16 %v31
  %v202 = vunpack.c.l.b16 %v32
  %v203 = vunpack.c.l.b16 %v33
  %v204 = vunpack.c.l.b16 %v34
  %v205 = vunpack.c.l.b16 %v35
  %v206 = vunpack.c.l.b16 %v36
  %v207 = vunpack.c.l.b16 %v37
  %v208 = vunpack.c.l.b16 %v38
  %v209 = vunpack.c.l.b16 %v39
  %v210 = vunpack.c.l.b16 %v40
  %v211 = vunpack.c.l.b16 %v41
  %v212 = vunpack.c.l.b16 %v42
  %v213 = vunpack.c.l.b16 %v43
  %v214 = vunpack.c.l.b16 %v44
  %v215 = vunpack.c.l.b16 %v45
  %v216 = vunpack.c.l.b16 %v46
  %v217 = vunpack.c.l.b16 %v47
  %v218 = vunpack.c.l.b16 %v48
  %v219 = vunpack.c.l.b16 %v49
  %v220 = vunpack.c.l.b16 %v50
  %v221 = vunpack.c.l.b16 %v51
  %v222 = vunpack.c.l.b16 %v52
  %v223 = vunpack.c.l.b16 %v53
  %v224 = vunpack.c.l.b16 %v54
  %v225 = vunpack.c.l.b16 %v55
  %v226 = vunpack.c.l.b16 %v56
  %v227 = vunpack.c.l.b16 %v57
  %v228 = vunpack.c.l.b16 %v58
  %v229 = vunpack.c.l.b16 %v59
  %v230 = vunpack.c.l.b16 %v60
  %v231 = vunpack.c.l.b16 %v61
  %v232 = vunpack.c.l.b16 %v62
  %v233 = vunpack.c.l.b16 %v63
  %v234 = vunpack.c.l.b16 %v64
  %v235 = vunpack.c.l.b16 %v65
  %v236 = vunpack.c.l.b16 %v66
  %v237 = vunpack.c.l.b16 %v67
  %v238 = vunpack.c.l.b16 %v68
  %v239 = vunpack.c.l.b16 %v69
  %v240 = vunpack.c.l.b16 %v70
  %v241 = vunpack.c.l.b16 %v71
  %v242 = vunpack.c.l.b16 %v72
  %v243 = vunpack.c.l.b16 %v73
  %v244 = vunpack.c.l.b16 %v74
  %v245 = vunpack.c.l.b16 %v75
  %v246 = vunpack.c.l.b16 %v76
  %v247 = vpack.c.b16 %v194, %v193
  %v248 = vpack.c.b16 %v196, %v195
  %v249 = vpack.c.b16 %v198, %v197
  %v250 = vpack.c.b16 %v200, %v199
  %v251 = vpack.c.b16 %v202, %v201
  %v252 = vpack.c.b16 %v204, %v203
  %v253 = vpack.c.b16 %v206, %v205
  %v254 = vpack.c.b16 %v208, %v207
  %v255 = vpack.c.b16 %v210, %v209
  %v256 = vpack.c.b16 %v212, %v211
  %v257 = vpack.c.b16 %v214, %v213
  %v258 = vpack.c.b16 %v216, %v215
  %v259 = vpack.c.b16 %v218, %v217
  %v260 = vpack.c.b16 %v220, %v219
  %v261 = vpack.c.b16 %v222, %v221
  %v262 = vpack.c.b16 %v224, %v223
  %v263 = vpack.c.b16 %v226, %v225
  %v264 = vpack.c.b16 %v228, %v227
  %v265 = vpack.c.b16 %v230, %v229
  %v266 = vpack.c.b16 %v232, %v231
  %v267 = vpack.c.b16 %v234, %v233
  %v268 = vpack.c.b16 %v236, %v235
  %v269 = vpack.c.b16 %v238, %v237
  %v270 = vpack.c.b16 %v240, %v239
  %v271 = vpack.c.b16 %v242, %v241
  %v272 = vpack.c.b16 %v244, %v243
  %v273 = vpack.c.b16 %v246, %v245
  %vm301 = vcmask 392192
  %v303 = vsel %vm301, %v128, 0
  %v306 = vsel %vm301, %v132, 0
  %308 = vmatprep.subr.bf16.mxu0 0
  %309 = vmatpush1.bf16.msra.mxu0 %v254
  %310 = vmatprep.subr.bf16.mxu0 0
  %311 = vmatpush1.bf16.msra.mxu0 %v253
  %312 = vmatprep.subr.bf16.mxu0 0
  %313 = vmatpush1.bf16.msra.mxu0 %v252
  %314 = vmatprep.subr.bf16.mxu0 0
  %315 = vmatpush1.bf16.msra.mxu0 %v251
  %316 = vmatprep.subr.bf16.mxu0 0
  %317 = vmatpush1.bf16.msra.mxu0 %v250
  %318 = vmatprep.subr.bf16.mxu0 0
  %319 = vmatpush1.bf16.msra.mxu0 %v249
  %320 = vmatprep.subr.bf16.mxu0 0
  %321 = vmatpush1.bf16.msra.mxu0 %v248
  %322 = vmatprep.subr.bf16.mxu0 0
  %323 = vmatpush1.bf16.msra.mxu0 %v247
  %324 = vmatprep.subr.bf16.mxu0 0
  %325 = vmatpush2.bf16.msra.mxu0 %v262
  %326 = vmatprep.subr.bf16.mxu0 0
  %327 = vmatpush2.bf16.msra.mxu0 %v261
  %328 = vmatprep.subr.bf16.mxu0 0
  %329 = vmatpush2.bf16.msra.mxu0 %v260
  %330 = vmatprep.subr.bf16.mxu0 0
  %331 = vmatpush2.bf16.msra.mxu0 %v259
  %332 = vmatprep.subr.bf16.mxu0 0
  %333 = vmatpush2.bf16.msra.mxu0 %v258
  %334 = vmatprep.subr.bf16.mxu0 0
  %335 = vmatpush2.bf16.msra.mxu0 %v257
  %336 = vmatprep.subr.bf16.mxu0 0
  %337 = vmatpush2.bf16.msra.mxu0 %v256
  %338 = vmatprep.subr.bf16.mxu0 0
  %339 = vmatpush2.bf16.msra.mxu0 %v255
  %340 = vmatprep.mubr.bf16.mxu0 %v126
  %341 = vmatmul.mubr.bf16.gmra.mxu0 %v125
  %v342 = vpop.f32.mrf.mxu0
  %v343 = vadd.f32 %v84, %v342
  %v344 = vpop.f32.mrf.mxu0
  %v345 = vpop.f32.mrf.mxu0
  %v346 = vadd.f32 %v89, %v345
  %v347 = vpop.f32.mrf.mxu0
  %348 = vmatprep.mubr.bf16.mxu0 %v130
  %349 = vmatmul.mubr.bf16.gmra.mxu0 %v129
  %v350 = vpop.f32.mrf.mxu0
  %v351 = vadd.f32 %v94, %v350
  %v352 = vpop.f32.mrf.mxu0
  %v353 = vpop.f32.mrf.mxu0
  %v354 = vadd.f32 %v99, %v353
  %v355 = vpop.f32.mrf.mxu0
  %356 = vdwg.mxu0
  %357 = vmatprep.subr.bf16.mxu0 0
  %358 = vmatpush1.bf16.msra.mxu0 %v270
  %359 = vmatprep.subr.bf16.mxu0 0
  %360 = vmatpush1.bf16.msra.mxu0 %v269
  %361 = vmatprep.subr.bf16.mxu0 0
  %362 = vmatpush1.bf16.msra.mxu0 %v268
  %363 = vmatprep.subr.bf16.mxu0 0
  %364 = vmatpush1.bf16.msra.mxu0 %v267
  %365 = vmatprep.subr.bf16.mxu0 0
  %366 = vmatpush1.bf16.msra.mxu0 %v266
  %367 = vmatprep.subr.bf16.mxu0 0
  %368 = vmatpush1.bf16.msra.mxu0 %v265
  %369 = vmatprep.subr.bf16.mxu0 0
  %370 = vmatpush1.bf16.msra.mxu0 %v264
  %371 = vmatprep.subr.bf16.mxu0 0
  %372 = vmatpush1.bf16.msra.mxu0 %v263
  %373 = vmatprep.subr.bf16.mxu0 0
  %374 = vmatpush2.bf16.msra.mxu0 0
  %375 = vmatprep.subr.bf16.mxu0 0
  %376 = vmatpush2.bf16.msra.mxu0 0
  %377 = vmatprep.subr.bf16.mxu0 0
  %378 = vmatpush2.bf16.msra.mxu0 0
  %379 = vmatprep.subr.bf16.mxu0 0
  %380 = vmatpush2.bf16.msra.mxu0 0
  %381 = vmatprep.subr.bf16.mxu0 0
  %382 = vmatpush2.bf16.msra.mxu0 0
  %383 = vmatprep.subr.bf16.mxu0 0
  %384 = vmatpush2.bf16.msra.mxu0 %v273
  %385 = vmatprep.subr.bf16.mxu0 0
  %386 = vmatpush2.bf16.msra.mxu0 %v272
  %387 = vmatprep.subr.bf16.mxu0 0
  %388 = vmatpush2.bf16.msra.mxu0 %v271
  %389 = vmatprep.mubr.bf16.mxu0 %v303
  %390 = vmatmul.mubr.bf16.gmra.mxu0 %v127
  %v391 = vpop.f32.mrf.mxu0
  %v392 = vadd.f32 %v343, %v391
  %v393 = vpop.f32.mrf.mxu0
  %v394 = vpop.f32.mrf.mxu0
  %v395 = vadd.f32 %v346, %v394
  %v396 = vpop.f32.mrf.mxu0
  %397 = vmatprep.mubr.bf16.mxu0 %v306
  %398 = vmatmul.mubr.bf16.gmra.mxu0 %v131
  %v399 = vpop.f32.mrf.mxu0
  %v400 = vadd.f32 %v351, %v399
  %v401 = vpop.f32.mrf.mxu0
  %v402 = vpop.f32.mrf.mxu0
  %v403 = vadd.f32 %v354, %v402
  %v404 = vpop.f32.mrf.mxu0
  %405 = vdwg.mxu0
  %v406 = vmax.f32 %v392, 0.0
  %v407 = vmax.f32 %v395, 0.0
  %v408 = vmax.f32 %v400, 0.0
  %v409 = vmax.f32 %v403, 0.0
  %vm410 = vcmask 523264
  %411 = vst.msk [vmem:[%s3] sm:$0xff] %vm410, %v406
  %412 = vst.msk [vmem:[%s3 + $0x8] sm:$0xff] %vm410, %v407
  %413 = vst.msk [vmem:[%s3 + $0x10] sm:$0xff] %vm410, %v408
  %414 = vst.msk [vmem:[%s3 + $0x18] sm:$0xff] %vm410, %v409
  // Predicated region
  $region14: #{generator_forward.8} parent=0 // pred_check
    _
  $region15: #{generator_forward.8} parent=0 // pred_check_branch
    %416 = sbr.rel (0) target = $region17
  $region16: #{generator_forward.8} parent=0 // pred_region
    _
  $region17: #{generator_forward.8} parent=0 // pred_fallthru
    _
  // Predicated region
  $region18: #{generator_forward.8} parent=0 // pred_check
    _
  $region19: #{generator_forward.8} parent=0 // pred_check_branch
    %418 = sbr.rel (0) target = $region21
  $region20: #{generator_forward.8} parent=0 // pred_region
    _
  $region21: #{generator_forward.8} parent=0 // pred_fallthru
    _

// kernel: generator_forward.9
$region0: #{generator_forward.9}
  #allocation0 [shape = 'u32[]', space=smem, size = 0x4, offset = 0x4, fixed_abs, tag = 'smem constant byte address 0x4 - core index']
  #allocation1 [shape = 'u32[144,128]{1,0:T(1,128)}', space=vmem, size = 0x12000, scoped, tag = 'internal scratch']
  %s0 = inlined_call_operand.vmem [shape: bf16[16,512], index: 0, kind: input, shape index: {}]
  %s1 = inlined_call_operand.vmem [shape: bf16[512,128], index: 1, kind: input, shape index: {}]
  %s2 = inlined_call_operand.vmem [shape: f32[16,1], index: 2, kind: input, shape index: {}]
  %s3 = inlined_call_operand.vmem [shape: f32[16,128], index: 3, kind: output, shape index: {}]
  %s4 = sld [smem:[#allocation0]]
  $region22: #{generator_forward.9} parent=0
    _
  %s6 = ssub.s32 1, %s4
  %s7 = scalar_select 0, %s6, %s4
  // Predicated region
  $region2: #{generator_forward.9} parent=0 // pred_check
    _
  $region3: #{generator_forward.9} parent=0 // pred_check_branch
    %9 = sbr.rel (0) target = $region5
  $region4: #{generator_forward.9} parent=0 // pred_region
    _
  $region5: #{generator_forward.9} parent=0 // pred_fallthru
    _
  // Predicated region
  $region6: #{generator_forward.9} parent=0 // pred_check
    _
  $region7: #{generator_forward.9} parent=0 // pred_check_branch
    %11 = sbr.rel (0) target = $region9
  $region8: #{generator_forward.9} parent=0 // pred_region
    _
  $region9: #{generator_forward.9} parent=0 // pred_fallthru
    _
  // Predicated region
  $region10: #{generator_forward.9} parent=0 // pred_check
    _
  $region11: #{generator_forward.9} parent=0 // pred_check_branch
    %13 = sbr.rel (0) target = $region13
  $region12: #{generator_forward.9} parent=0 // pred_region
    _
  $region13: #{generator_forward.9} parent=0 // pred_fallthru
    _
  %v15 = vld [vmem:[%s0] sm:$0xff]
  %v16 = vld [vmem:[%s0 + $0x8] sm:$0xff]
  %v17 = vld [vmem:[%s0 + $0x10] sm:$0xff]
  %v18 = vld [vmem:[%s0 + $0x18] sm:$0xff]
  %v19 = vld [vmem:[%s1] sm:$0xf]
  %v20 = vld [vmem:[%s1 + $0x4] sm:$0xf]
  %v21 = vld [vmem:[%s1 + $0x8] sm:$0xf]
  %v22 = vld [vmem:[%s1 + $0xc] sm:$0xf]
  %v23 = vld [vmem:[%s1 + $0x10] sm:$0xf]
  %v24 = vld [vmem:[%s1 + $0x14] sm:$0xf]
  %v25 = vld [vmem:[%s1 + $0x18] sm:$0xf]
  %v26 = vld [vmem:[%s1 + $0x1c] sm:$0xf]
  %v27 = vld [vmem:[%s1 + $0x20] sm:$0xf]
  %v28 = vld [vmem:[%s1 + $0x24] sm:$0xf]
  %v29 = vld [vmem:[%s1 + $0x28] sm:$0xf]
  %v30 = vld [vmem:[%s1 + $0x2c] sm:$0xf]
  %v31 = vld [vmem:[%s1 + $0x30] sm:$0xf]
  %v32 = vld [vmem:[%s1 + $0x34] sm:$0xf]
  %v33 = vld [vmem:[%s1 + $0x38] sm:$0xf]
  %v34 = vld [vmem:[%s1 + $0x3c] sm:$0xf]
  %v35 = vld [vmem:[%s1 + $0x40] sm:$0xf]
  %v36 = vld [vmem:[%s1 + $0x44] sm:$0xf]
  %v37 = vld [vmem:[%s1 + $0x48] sm:$0xf]
  %v38 = vld [vmem:[%s1 + $0x4c] sm:$0xf]
  %v39 = vld [vmem:[%s1 + $0x50] sm:$0xf]
  %v40 = vld [vmem:[%s1 + $0x54] sm:$0xf]
  %v41 = vld [vmem:[%s1 + $0x58] sm:$0xf]
  %v42 = vld [vmem:[%s1 + $0x5c] sm:$0xf]
  %v43 = vld [vmem:[%s1 + $0x60] sm:$0xf]
  %v44 = vld [vmem:[%s1 + $0x64] sm:$0xf]
  %v45 = vld [vmem:[%s1 + $0x68] sm:$0xf]
  %v46 = vld [vmem:[%s1 + $0x6c] sm:$0xf]
  %v47 = vld [vmem:[%s1 + $0x70] sm:$0xf]
  %v48 = vld [vmem:[%s1 + $0x74] sm:$0xf]
  %v49 = vld [vmem:[%s1 + $0x78] sm:$0xf]
  %v50 = vld [vmem:[%s1 + $0x7c] sm:$0xf]
  %v51 = vld [vmem:[%s1 + $0x80] sm:$0xf]
  %v52 = vld [vmem:[%s1 + $0x84] sm:$0xf]
  %v53 = vld [vmem:[%s1 + $0x88] sm:$0xf]
  %v54 = vld [vmem:[%s1 + $0x8c] sm:$0xf]
  %v55 = vld [vmem:[%s1 + $0x90] sm:$0xf]
  %v56 = vld [vmem:[%s1 + $0x94] sm:$0xf]
  %v57 = vld [vmem:[%s1 + $0x98] sm:$0xf]
  %v58 = vld [vmem:[%s1 + $0x9c] sm:$0xf]
  %v59 = vld [vmem:[%s1 + $0xa0] sm:$0xf]
  %v60 = vld [vmem:[%s1 + $0xa4] sm:$0xf]
  %v61 = vld [vmem:[%s1 + $0xa8] sm:$0xf]
  %v62 = vld [vmem:[%s1 + $0xac] sm:$0xf]
  %v63 = vld [vmem:[%s1 + $0xb0] sm:$0xf]
  %v64 = vld [vmem:[%s1 + $0xb4] sm:$0xf]
  %v65 = vld [vmem:[%s1 + $0xb8] sm:$0xf]
  %v66 = vld [vmem:[%s1 + $0xbc] sm:$0xf]
  %v67 = vld [vmem:[%s1 + $0xc0] sm:$0xf]
  %v68 = vld [vmem:[%s1 + $0xc4] sm:$0xf]
  %v69 = vld [vmem:[%s1 + $0xc8] sm:$0xf]
  %v70 = vld [vmem:[%s1 + $0xcc] sm:$0xf]
  %v71 = vld [vmem:[%s1 + $0xd0] sm:$0xf]
  %v72 = vld [vmem:[%s1 + $0xd4] sm:$0xf]
  %v73 = vld [vmem:[%s1 + $0xd8] sm:$0xf]
  %v74 = vld [vmem:[%s1 + $0xdc] sm:$0xf]
  %v75 = vld [vmem:[%s1 + $0xe0] sm:$0xf]
  %v76 = vld [vmem:[%s1 + $0xe4] sm:$0xf]
  %v77 = vld [vmem:[%s1 + $0xe8] sm:$0xf]
  %v78 = vld [vmem:[%s1 + $0xec] sm:$0xf]
  %v79 = vld [vmem:[%s1 + $0xf0] sm:$0xf]
  %v80 = vld [vmem:[%s1 + $0xf4] sm:$0xf]
  %v81 = vld [vmem:[%s1 + $0xf8] sm:$0xf]
  %v82 = vld [vmem:[%s1 + $0xfc] sm:$0xf]
  %v83 = vld [vmem:[%s2] sm:$0xff]
  %v84 = vld [vmem:[%s2 + $0x8] sm:$0xff]
  %86 = vset.pattern.permute.xlu0 0
  %87 = vperm.xlu0 %86, %v83
  %v88 = vpop.permute.xlu0 %87
  %91 = vset.pattern.permute.xlu0 0
  %92 = vperm.xlu0 %91, %v84
  %v93 = vpop.permute.xlu0 %92
  %v99 = vunpack.c.l.b16 %v15
  %v100 = vunpack.c.h.b16 %v15
  %v101 = vunpack.c.l.b16 %v16
  %v102 = vunpack.c.h.b16 %v16
  %v103 = vunpack.c.l.b16 %v17
  %v104 = vunpack.c.h.b16 %v17
  %v105 = vunpack.c.l.b16 %v18
  %v106 = vunpack.c.h.b16 %v18
  %v107 = vpack.c.b16 %v103, %v99
  %v108 = vpack.c.b16 %v104, %v100
  %v109 = vpack.c.b16 %v105, %v101
  %v110 = vpack.c.b16 %v106, %v102
  %v179 = vunpack.c.l.b16 %v19
  %v180 = vunpack.c.l.b16 %v20
  %v181 = vunpack.c.l.b16 %v21
  %v182 = vunpack.c.l.b16 %v22
  %v183 = vunpack.c.l.b16 %v23
  %v184 = vunpack.c.l.b16 %v24
  %v185 = vunpack.c.l.b16 %v25
  %v186 = vunpack.c.l.b16 %v26
  %v187 = vunpack.c.l.b16 %v27
  %v188 = vunpack.c.l.b16 %v28
  %v189 = vunpack.c.l.b16 %v29
  %v190 = vunpack.c.l.b16 %v30
  %v191 = vunpack.c.l.b16 %v31
  %v192 = vunpack.c.l.b16 %v32
  %v193 = vunpack.c.l.b16 %v33
  %v194 = vunpack.c.l.b16 %v34
  %v195 = vunpack.c.l.b16 %v35
  %v196 = vunpack.c.l.b16 %v36
  %v197 = vunpack.c.l.b16 %v37
  %v198 = vunpack.c.l.b16 %v38
  %v199 = vunpack.c.l.b16 %v39
  %v200 = vunpack.c.l.b16 %v40
  %v201 = vunpack.c.l.b16 %v41
  %v202 = vunpack.c.l.b16 %v42
  %v203 = vunpack.c.l.b16 %v43
  %v204 = vunpack.c.l.b16 %v44
  %v205 = vunpack.c.l.b16 %v45
  %v206 = vunpack.c.l.b16 %v46
  %v207 = vunpack.c.l.b16 %v47
  %v208 = vunpack.c.l.b16 %v48
  %v209 = vunpack.c.l.b16 %v49
  %v210 = vunpack.c.l.b16 %v50
  %v211 = vunpack.c.l.b16 %v51
  %v212 = vunpack.c.l.b16 %v52
  %v213 = vunpack.c.l.b16 %v53
  %v214 = vunpack.c.l.b16 %v54
  %v215 = vunpack.c.l.b16 %v55
  %v216 = vunpack.c.l.b16 %v56
  %v217 = vunpack.c.l.b16 %v57
  %v218 = vunpack.c.l.b16 %v58
  %v219 = vunpack.c.l.b16 %v59
  %v220 = vunpack.c.l.b16 %v60
  %v221 = vunpack.c.l.b16 %v61
  %v222 = vunpack.c.l.b16 %v62
  %v223 = vunpack.c.l.b16 %v63
  %v224 = vunpack.c.l.b16 %v64
  %v225 = vunpack.c.l.b16 %v65
  %v226 = vunpack.c.l.b16 %v66
  %v227 = vunpack.c.l.b16 %v67
  %v228 = vunpack.c.l.b16 %v68
  %v229 = vunpack.c.l.b16 %v69
  %v230 = vunpack.c.l.b16 %v70
  %v231 = vunpack.c.l.b16 %v71
  %v232 = vunpack.c.l.b16 %v72
  %v233 = vunpack.c.l.b16 %v73
  %v234 = vunpack.c.l.b16 %v74
  %v235 = vunpack.c.l.b16 %v75
  %v236 = vunpack.c.l.b16 %v76
  %v237 = vunpack.c.l.b16 %v77
  %v238 = vunpack.c.l.b16 %v78
  %v239 = vunpack.c.l.b16 %v79
  %v240 = vunpack.c.l.b16 %v80
  %v241 = vunpack.c.l.b16 %v81
  %v242 = vunpack.c.l.b16 %v82
  %v243 = vpack.c.b16 %v180, %v179
  %v244 = vpack.c.b16 %v182, %v181
  %v245 = vpack.c.b16 %v184, %v183
  %v246 = vpack.c.b16 %v186, %v185
  %v247 = vpack.c.b16 %v188, %v187
  %v248 = vpack.c.b16 %v190, %v189
  %v249 = vpack.c.b16 %v192, %v191
  %v250 = vpack.c.b16 %v194, %v193
  %v251 = vpack.c.b16 %v196, %v195
  %v252 = vpack.c.b16 %v198, %v197
  %v253 = vpack.c.b16 %v200, %v199
  %v254 = vpack.c.b16 %v202, %v201
  %v255 = vpack.c.b16 %v204, %v203
  %v256 = vpack.c.b16 %v206, %v205
  %v257 = vpack.c.b16 %v208, %v207
  %v258 = vpack.c.b16 %v210, %v209
  %v259 = vpack.c.b16 %v212, %v211
  %v260 = vpack.c.b16 %v214, %v213
  %v261 = vpack.c.b16 %v216, %v215
  %v262 = vpack.c.b16 %v218, %v217
  %v263 = vpack.c.b16 %v220, %v219
  %v264 = vpack.c.b16 %v222, %v221
  %v265 = vpack.c.b16 %v224, %v223
  %v266 = vpack.c.b16 %v226, %v225
  %v267 = vpack.c.b16 %v228, %v227
  %v268 = vpack.c.b16 %v230, %v229
  %v269 = vpack.c.b16 %v232, %v231
  %v270 = vpack.c.b16 %v234, %v233
  %v271 = vpack.c.b16 %v236, %v235
  %v272 = vpack.c.b16 %v238, %v237
  %v273 = vpack.c.b16 %v240, %v239
  %v274 = vpack.c.b16 %v242, %v241
  %307 = vmatprep.subr.bf16.mxu0 0
  %308 = vmatpush1.bf16.msra.mxu0 %v250
  %309 = vmatprep.subr.bf16.mxu0 0
  %310 = vmatpush1.bf16.msra.mxu0 %v249
  %311 = vmatprep.subr.bf16.mxu0 0
  %312 = vmatpush1.bf16.msra.mxu0 %v248
  %313 = vmatprep.subr.bf16.mxu0 0
  %314 = vmatpush1.bf16.msra.mxu0 %v247
  %315 = vmatprep.subr.bf16.mxu0 0
  %316 = vmatpush1.bf16.msra.mxu0 %v246
  %317 = vmatprep.subr.bf16.mxu0 0
  %318 = vmatpush1.bf16.msra.mxu0 %v245
  %319 = vmatprep.subr.bf16.mxu0 0
  %320 = vmatpush1.bf16.msra.mxu0 %v244
  %321 = vmatprep.subr.bf16.mxu0 0
  %322 = vmatpush1.bf16.msra.mxu0 %v243
  %323 = vmatprep.subr.bf16.mxu0 0
  %324 = vmatpush2.bf16.msra.mxu0 %v258
  %325 = vmatprep.subr.bf16.mxu0 0
  %326 = vmatpush2.bf16.msra.mxu0 %v257
  %327 = vmatprep.subr.bf16.mxu0 0
  %328 = vmatpush2.bf16.msra.mxu0 %v256
  %329 = vmatprep.subr.bf16.mxu0 0
  %330 = vmatpush2.bf16.msra.mxu0 %v255
  %331 = vmatprep.subr.bf16.mxu0 0
  %332 = vmatpush2.bf16.msra.mxu0 %v254
  %333 = vmatprep.subr.bf16.mxu0 0
  %334 = vmatpush2.bf16.msra.mxu0 %v253
  %335 = vmatprep.subr.bf16.mxu0 0
  %336 = vmatpush2.bf16.msra.mxu0 %v252
  %337 = vmatprep.subr.bf16.mxu0 0
  %338 = vmatpush2.bf16.msra.mxu0 %v251
  %339 = vmatprep.mubr.bf16.mxu0 %v108
  %340 = vmatmul.mubr.bf16.gmra.mxu0 %v107
  %v341 = vpop.f32.mrf.mxu0
  %v342 = vadd.f32 %v88, %v341
  %v343 = vpop.f32.mrf.mxu0
  %v344 = vpop.f32.mrf.mxu0
  %v345 = vadd.f32 %v93, %v344
  %v346 = vpop.f32.mrf.mxu0
  %347 = vdwg.mxu0
  %348 = vmatprep.subr.bf16.mxu0 0
  %349 = vmatpush1.bf16.msra.mxu0 %v266
  %350 = vmatprep.subr.bf16.mxu0 0
  %351 = vmatpush1.bf16.msra.mxu0 %v265
  %352 = vmatprep.subr.bf16.mxu0 0
  %353 = vmatpush1.bf16.msra.mxu0 %v264
  %354 = vmatprep.subr.bf16.mxu0 0
  %355 = vmatpush1.bf16.msra.mxu0 %v263
  %356 = vmatprep.subr.bf16.mxu0 0
  %357 = vmatpush1.bf16.msra.mxu0 %v262
  %358 = vmatprep.subr.bf16.mxu0 0
  %359 = vmatpush1.bf16.msra.mxu0 %v261
  %360 = vmatprep.subr.bf16.mxu0 0
  %361 = vmatpush1.bf16.msra.mxu0 %v260
  %362 = vmatprep.subr.bf16.mxu0 0
  %363 = vmatpush1.bf16.msra.mxu0 %v259
  %364 = vmatprep.subr.bf16.mxu0 0
  %365 = vmatpush2.bf16.msra.mxu0 %v274
  %366 = vmatprep.subr.bf16.mxu0 0
  %367 = vmatpush2.bf16.msra.mxu0 %v273
  %368 = vmatprep.subr.bf16.mxu0 0
  %369 = vmatpush2.bf16.msra.mxu0 %v272
  %370 = vmatprep.subr.bf16.mxu0 0
  %371 = vmatpush2.bf16.msra.mxu0 %v271
  %372 = vmatprep.subr.bf16.mxu0 0
  %373 = vmatpush2.bf16.msra.mxu0 %v270
  %374 = vmatprep.subr.bf16.mxu0 0
  %375 = vmatpush2.bf16.msra.mxu0 %v269
  %376 = vmatprep.subr.bf16.mxu0 0
  %377 = vmatpush2.bf16.msra.mxu0 %v268
  %378 = vmatprep.subr.bf16.mxu0 0
  %379 = vmatpush2.bf16.msra.mxu0 %v267
  %380 = vmatprep.mubr.bf16.mxu0 %v110
  %381 = vmatmul.mubr.bf16.gmra.mxu0 %v109
  %v382 = vpop.f32.mrf.mxu0
  %v383 = vadd.f32 %v342, %v382
  %v384 = vpop.f32.mrf.mxu0
  %v385 = vpop.f32.mrf.mxu0
  %v386 = vadd.f32 %v345, %v385
  %v387 = vpop.f32.mrf.mxu0
  %388 = vdwg.mxu0
  %v389 = vmax.f32 %v383, 0.0
  %v390 = vmax.f32 %v386, 0.0
  %391 = vst [vmem:[%s3] sm:$0xff] %v389
  %392 = vst [vmem:[%s3 + $0x8] sm:$0xff] %v390
  // Predicated region
  $region14: #{generator_forward.9} parent=0 // pred_check
    _
  $region15: #{generator_forward.9} parent=0 // pred_check_branch
    %394 = sbr.rel (0) target = $region17
  $region16: #{generator_forward.9} parent=0 // pred_region
    _
  $region17: #{generator_forward.9} parent=0 // pred_fallthru
    _
  // Predicated region
  $region18: #{generator_forward.9} parent=0 // pred_check
    _
  $region19: #{generator_forward.9} parent=0 // pred_check_branch
    %396 = sbr.rel (0) target = $region21
  $region20: #{generator_forward.9} parent=0 // pred_region
    _
  $region21: #{generator_forward.9} parent=0 // pred_fallthru
    _

// kernel: generator_forward.10
$region0: #{generator_forward.10}
  #allocation0 [shape = 'u32[]', space=smem, size = 0x4, offset = 0x4, fixed_abs, tag = 'smem constant byte address 0x4 - core index']
  #allocation1 [shape = 'u32[144,128]{1,0:T(1,128)}', space=vmem, size = 0x12000, scoped, tag = 'internal scratch']
  %s0 = inlined_call_operand.vmem [shape: bf16[8,256], index: 0, kind: input, shape index: {}]
  %s1 = inlined_call_operand.vmem [shape: bf16[256,512], index: 1, kind: input, shape index: {}]
  %s2 = inlined_call_operand.vmem [shape: f32[8,1], index: 2, kind: input, shape index: {}]
  %s3 = inlined_call_operand.vmem [shape: f32[8,512], index: 3, kind: output, shape index: {}]
  %s4 = sld [smem:[#allocation0]]
  $region22: #{generator_forward.10} parent=0
    _
  %s6 = ssub.s32 1, %s4
  %s7 = scalar_select 0, %s6, %s4
  // Predicated region
  $region2: #{generator_forward.10} parent=0 // pred_check
    _
  $region3: #{generator_forward.10} parent=0 // pred_check_branch
    %9 = sbr.rel (0) target = $region5
  $region4: #{generator_forward.10} parent=0 // pred_region
    _
  $region5: #{generator_forward.10} parent=0 // pred_fallthru
    _
  // Predicated region
  $region6: #{generator_forward.10} parent=0 // pred_check
    _
  $region7: #{generator_forward.10} parent=0 // pred_check_branch
    %11 = sbr.rel (0) target = $region9
  $region8: #{generator_forward.10} parent=0 // pred_region
    _
  $region9: #{generator_forward.10} parent=0 // pred_fallthru
    _
  // Predicated region
  $region10: #{generator_forward.10} parent=0 // pred_check
    _
  $region11: #{generator_forward.10} parent=0 // pred_check_branch
    %13 = sbr.rel (0) target = $region13
  $region12: #{generator_forward.10} parent=0 // pred_region
    _
  $region13: #{generator_forward.10} parent=0 // pred_fallthru
    _
  %v14 = vld [vmem:[%s0] sm:$0xff]
  %v15 = vld [vmem:[%s1] sm:$0xff]
  %v16 = vld [vmem:[%s1 + $0x8] sm:$0xff]
  %v17 = vld [vmem:[%s1 + $0x10] sm:$0xff]
  %v18 = vld [vmem:[%s1 + $0x18] sm:$0xff]
  %v19 = vld [vmem:[%s1 + $0x20] sm:$0xff]
  %v20 = vld [vmem:[%s1 + $0x28] sm:$0xff]
  %v21 = vld [vmem:[%s1 + $0x30] sm:$0xff]
  %v22 = vld [vmem:[%s1 + $0x38] sm:$0xff]
  %v23 = vld [vmem:[%s1 + $0x40] sm:$0xff]
  %v24 = vld [vmem:[%s1 + $0x48] sm:$0xff]
  %v25 = vld [vmem:[%s1 + $0x50] sm:$0xff]
  %v26 = vld [vmem:[%s1 + $0x58] sm:$0xff]
  %v27 = vld [vmem:[%s1 + $0x60] sm:$0xff]
  %v28 = vld [vmem:[%s1 + $0x68] sm:$0xff]
  %v29 = vld [vmem:[%s1 + $0x70] sm:$0xff]
  %v30 = vld [vmem:[%s1 + $0x78] sm:$0xff]
  %v31 = vld [vmem:[%s1 + $0x80] sm:$0xff]
  %v32 = vld [vmem:[%s1 + $0x88] sm:$0xff]
  %v33 = vld [vmem:[%s1 + $0x90] sm:$0xff]
  %v34 = vld [vmem:[%s1 + $0x98] sm:$0xff]
  %v35 = vld [vmem:[%s1 + $0xa0] sm:$0xff]
  %v36 = vld [vmem:[%s1 + $0xa8] sm:$0xff]
  %v37 = vld [vmem:[%s1 + $0xb0] sm:$0xff]
  %v38 = vld [vmem:[%s1 + $0xb8] sm:$0xff]
  %v39 = vld [vmem:[%s1 + $0xc0] sm:$0xff]
  %v40 = vld [vmem:[%s1 + $0xc8] sm:$0xff]
  %v41 = vld [vmem:[%s1 + $0xd0] sm:$0xff]
  %v42 = vld [vmem:[%s1 + $0xd8] sm:$0xff]
  %v43 = vld [vmem:[%s1 + $0xe0] sm:$0xff]
  %v44 = vld [vmem:[%s1 + $0xe8] sm:$0xff]
  %v45 = vld [vmem:[%s1 + $0xf0] sm:$0xff]
  %v46 = vld [vmem:[%s1 + $0xf8] sm:$0xff]
  %v47 = vld [vmem:[%s1 + $0x100] sm:$0xff]
  %v48 = vld [vmem:[%s1 + $0x108] sm:$0xff]
  %v49 = vld [vmem:[%s1 + $0x110] sm:$0xff]
  %v50 = vld [vmem:[%s1 + $0x118] sm:$0xff]
  %v51 = vld [vmem:[%s1 + $0x120] sm:$0xff]
  %v52 = vld [vmem:[%s1 + $0x128] sm:$0xff]
  %v53 = vld [vmem:[%s1 + $0x130] sm:$0xff]
  %v54 = vld [vmem:[%s1 + $0x138] sm:$0xff]
  %v55 = vld [vmem:[%s1 + $0x140] sm:$0xff]
  %v56 = vld [vmem:[%s1 + $0x148] sm:$0xff]
  %v57 = vld [vmem:[%s1 + $0x150] sm:$0xff]
  %v58 = vld [vmem:[%s1 + $0x158] sm:$0xff]
  %v59 = vld [vmem:[%s1 + $0x160] sm:$0xff]
  %v60 = vld [vmem:[%s1 + $0x168] sm:$0xff]
  %v61 = vld [vmem:[%s1 + $0x170] sm:$0xff]
  %v62 = vld [vmem:[%s1 + $0x178] sm:$0xff]
  %v63 = vld [vmem:[%s1 + $0x180] sm:$0xff]
  %v64 = vld [vmem:[%s1 + $0x188] sm:$0xff]
  %v65 = vld [vmem:[%s1 + $0x190] sm:$0xff]
  %v66 = vld [vmem:[%s1 + $0x198] sm:$0xff]
  %v67 = vld [vmem:[%s1 + $0x1a0] sm:$0xff]
  %v68 = vld [vmem:[%s1 + $0x1a8] sm:$0xff]
  %v69 = vld [vmem:[%s1 + $0x1b0] sm:$0xff]
  %v70 = vld [vmem:[%s1 + $0x1b8] sm:$0xff]
  %v71 = vld [vmem:[%s1 + $0x1c0] sm:$0xff]
  %v72 = vld [vmem:[%s1 + $0x1c8] sm:$0xff]
  %v73 = vld [vmem:[%s1 + $0x1d0] sm:$0xff]
  %v74 = vld [vmem:[%s1 + $0x1d8] sm:$0xff]
  %v75 = vld [vmem:[%s1 + $0x1e0] sm:$0xff]
  %v76 = vld [vmem:[%s1 + $0x1e8] sm:$0xff]
  %v77 = vld [vmem:[%s1 + $0x1f0] sm:$0xff]
  %v78 = vld [vmem:[%s1 + $0x1f8] sm:$0xff]
  %v79 = vld [vmem:[%s2] sm:$0xff]
  %81 = vset.pattern.permute.xlu0 0
  %82 = vperm.xlu0 %81, %v79
  %v83 = vpop.permute.xlu0 %82
  %v86 = vunpack.c.l.b16 %v14
  %v87 = vunpack.c.h.b16 %v14
  %v88 = vpack.c.b16 %v86, %v86
  %v89 = vpack.c.b16 %v87, %v87
  %v156 = vunpack.c.l.b16 %v15
  %v157 = vunpack.c.h.b16 %v15
  %v158 = vunpack.c.l.b16 %v16
  %v159 = vunpack.c.h.b16 %v16
  %v160 = vunpack.c.l.b16 %v17
  %v161 = vunpack.c.h.b16 %v17
  %v162 = vunpack.c.l.b16 %v18
  %v163 = vunpack.c.h.b16 %v18
  %v164 = vunpack.c.l.b16 %v19
  %v165 = vunpack.c.h.b16 %v19
  %v166 = vunpack.c.l.b16 %v20
  %v167 = vunpack.c.h.b16 %v20
  %v168 = vunpack.c.l.b16 %v21
  %v169 = vunpack.c.h.b16 %v21
  %v170 = vunpack.c.l.b16 %v22
  %v171 = vunpack.c.h.b16 %v22
  %v172 = vunpack.c.l.b16 %v23
  %v173 = vunpack.c.h.b16 %v23
  %v174 = vunpack.c.l.b16 %v24
  %v175 = vunpack.c.h.b16 %v24
  %v176 = vunpack.c.l.b16 %v25
  %v177 = vunpack.c.h.b16 %v25
  %v178 = vunpack.c.l.b16 %v26
  %v179 = vunpack.c.h.b16 %v26
  %v180 = vunpack.c.l.b16 %v27
  %v181 = vunpack.c.h.b16 %v27
  %v182 = vunpack.c.l.b16 %v28
  %v183 = vunpack.c.h.b16 %v28
  %v184 = vunpack.c.l.b16 %v29
  %v185 = vunpack.c.h.b16 %v29
  %v186 = vunpack.c.l.b16 %v30
  %v187 = vunpack.c.h.b16 %v30
  %v188 = vunpack.c.l.b16 %v31
  %v189 = vunpack.c.h.b16 %v31
  %v190 = vunpack.c.l.b16 %v32
  %v191 = vunpack.c.h.b16 %v32
  %v192 = vunpack.c.l.b16 %v33
  %v193 = vunpack.c.h.b16 %v33
  %v194 = vunpack.c.l.b16 %v34
  %v195 = vunpack.c.h.b16 %v34
  %v196 = vunpack.c.l.b16 %v35
  %v197 = vunpack.c.h.b16 %v35
  %v198 = vunpack.c.l.b16 %v36
  %v199 = vunpack.c.h.b16 %v36
  %v200 = vunpack.c.l.b16 %v37
  %v201 = vunpack.c.h.b16 %v37
  %v202 = vunpack.c.l.b16 %v38
  %v203 = vunpack.c.h.b16 %v38
  %v204 = vunpack.c.l.b16 %v39
  %v205 = vunpack.c.h.b16 %v39
  %v206 = vunpack.c.l.b16 %v40
  %v207 = vunpack.c.h.b16 %v40
  %v208 = vunpack.c.l.b16 %v41
  %v209 = vunpack.c.h.b16 %v41
  %v210 = vunpack.c.l.b16 %v42
  %v211 = vunpack.c.h.b16 %v42
  %v212 = vunpack.c.l.b16 %v43
  %v213 = vunpack.c.h.b16 %v43
  %v214 = vunpack.c.l.b16 %v44
  %v215 = vunpack.c.h.b16 %v44
  %v216 = vunpack.c.l.b16 %v45
  %v217 = vunpack.c.h.b16 %v45
  %v218 = vunpack.c.l.b16 %v46
  %v219 = vunpack.c.h.b16 %v46
  %v220 = vunpack.c.l.b16 %v47
  %v221 = vunpack.c.h.b16 %v47
  %v222 = vunpack.c.l.b16 %v48
  %v223 = vunpack.c.h.b16 %v48
  %v224 = vunpack.c.l.b16 %v49
  %v225 = vunpack.c.h.b16 %v49
  %v226 = vunpack.c.l.b16 %v50
  %v227 = vunpack.c.h.b16 %v50
  %v228 = vunpack.c.l.b16 %v51
  %v229 = vunpack.c.h.b16 %v51
  %v230 = vunpack.c.l.b16 %v52
  %v231 = vunpack.c.h.b16 %v52
  %v232 = vunpack.c.l.b16 %v53
  %v233 = vunpack.c.h.b16 %v53
  %v234 = vunpack.c.l.b16 %v54
  %v235 = vunpack.c.h.b16 %v54
  %v236 = vunpack.c.l.b16 %v55
  %v237 = vunpack.c.h.b16 %v55
  %v238 = vunpack.c.l.b16 %v56
  %v239 = vunpack.c.h.b16 %v56
  %v240 = vunpack.c.l.b16 %v57
  %v241 = vunpack.c.h.b16 %v57
  %v242 = vunpack.c.l.b16 %v58
  %v243 = vunpack.c.h.b16 %v58
  %v244 = vunpack.c.l.b16 %v59
  %v245 = vunpack.c.h.b16 %v59
  %v246 = vunpack.c.l.b16 %v60
  %v247 = vunpack.c.h.b16 %v60
  %v248 = vunpack.c.l.b16 %v61
  %v249 = vunpack.c.h.b16 %v61
  %v250 = vunpack.c.l.b16 %v62
  %v251 = vunpack.c.h.b16 %v62
  %v252 = vunpack.c.l.b16 %v63
  %v253 = vunpack.c.h.b16 %v63
  %v254 = vunpack.c.l.b16 %v64
  %v255 = vunpack.c.h.b16 %v64
  %v256 = vunpack.c.l.b16 %v65
  %v257 = vunpack.c.h.b16 %v65
  %v258 = vunpack.c.l.b16 %v66
  %v259 = vunpack.c.h.b16 %v66
  %v260 = vunpack.c.l.b16 %v67
  %v261 = vunpack.c.h.b16 %v67
  %v262 = vunpack.c.l.b16 %v68
  %v263 = vunpack.c.h.b16 %v68
  %v264 = vunpack.c.l.b16 %v69
  %v265 = vunpack.c.h.b16 %v69
  %v266 = vunpack.c.l.b16 %v70
  %v267 = vunpack.c.h.b16 %v70
  %v268 = vunpack.c.l.b16 %v71
  %v269 = vunpack.c.h.b16 %v71
  %v270 = vunpack.c.l.b16 %v72
  %v271 = vunpack.c.h.b16 %v72
  %v272 = vunpack.c.l.b16 %v73
  %v273 = vunpack.c.h.b16 %v73
  %v274 = vunpack.c.l.b16 %v74
  %v275 = vunpack.c.h.b16 %v74
  %v276 = vunpack.c.l.b16 %v75
  %v277 = vunpack.c.h.b16 %v75
  %v278 = vunpack.c.l.b16 %v76
  %v279 = vunpack.c.h.b16 %v76
  %v280 = vunpack.c.l.b16 %v77
  %v281 = vunpack.c.h.b16 %v77
  %v282 = vunpack.c.l.b16 %v78
  %v283 = vunpack.c.h.b16 %v78
  %v284 = vpack.c.b16 %v160, %v156
  %v285 = vpack.c.b16 %v161, %v157
  %v286 = vpack.c.b16 %v162, %v158
  %v287 = vpack.c.b16 %v163, %v159
  %v288 = vpack.c.b16 %v168, %v164
  %v289 = vpack.c.b16 %v169, %v165
  %v290 = vpack.c.b16 %v170, %v166
  %v291 = vpack.c.b16 %v171, %v167
  %v292 = vpack.c.b16 %v176, %v172
  %v293 = vpack.c.b16 %v177, %v173
  %v294 = vpack.c.b16 %v178, %v174
  %v295 = vpack.c.b16 %v179, %v175
  %v296 = vpack.c.b16 %v184, %v180
  %v297 = vpack.c.b16 %v185, %v181
  %v298 = vpack.c.b16 %v186, %v182
  %v299 = vpack.c.b16 %v187, %v183
  %v300 = vpack.c.b16 %v192, %v188
  %v301 = vpack.c.b16 %v193, %v189
  %v302 = vpack.c.b16 %v194, %v190
  %v303 = vpack.c.b16 %v195, %v191
  %v304 = vpack.c.b16 %v200, %v196
  %v305 = vpack.c.b16 %v201, %v197
  %v306 = vpack.c.b16 %v202, %v198
  %v307 = vpack.c.b16 %v203, %v199
  %v308 = vpack.c.b16 %v208, %v204
  %v309 = vpack.c.b16 %v209, %v205
  %v310 = vpack.c.b16 %v210, %v206
  %v311 = vpack.c.b16 %v211, %v207
  %v312 = vpack.c.b16 %v216, %v212
  %v313 = vpack.c.b16 %v217, %v213
  %v314 = vpack.c.b16 %v218, %v214
  %v315 = vpack.c.b16 %v219, %v215
  %v316 = vpack.c.b16 %v224, %v220
  %v317 = vpack.c.b16 %v225, %v221
  %v318 = vpack.c.b16 %v226, %v222
  %v319 = vpack.c.b16 %v227, %v223
  %v320 = vpack.c.b16 %v232, %v228
  %v321 = vpack.c.b16 %v233, %v229
  %v322 = vpack.c.b16 %v234, %v230
  %v323 = vpack.c.b16 %v235, %v231
  %v324 = vpack.c.b16 %v240, %v236
  %v325 = vpack.c.b16 %v241, %v237
  %v326 = vpack.c.b16 %v242, %v238
  %v327 = vpack.c.b16 %v243, %v239
  %v328 = vpack.c.b16 %v248, %v244
  %v329 = vpack.c.b16 %v249, %v245
  %v330 = vpack.c.b16 %v250, %v246
  %v331 = vpack.c.b16 %v251, %v247
  %v332 = vpack.c.b16 %v256, %v252
  %v333 = vpack.c.b16 %v257, %v253
  %v334 = vpack.c.b16 %v258, %v254
  %v335 = vpack.c.b16 %v259, %v255
  %v336 = vpack.c.b16 %v264, %v260
  %v337 = vpack.c.b16 %v265, %v261
  %v338 = vpack.c.b16 %v266, %v262
  %v339 = vpack.c.b16 %v267, %v263
  %v340 = vpack.c.b16 %v272, %v268
  %v341 = vpack.c.b16 %v273, %v269
  %v342 = vpack.c.b16 %v274, %v270
  %v343 = vpack.c.b16 %v275, %v271
  %v344 = vpack.c.b16 %v280, %v276
  %v345 = vpack.c.b16 %v281, %v277
  %v346 = vpack.c.b16 %v282, %v278
  %v347 = vpack.c.b16 %v283, %v279
  %412 = vmatprep.subr.bf16.mxu0 %v313
  %413 = vmatpush1.bf16.msra.mxu0 %v312
  %414 = vmatprep.subr.bf16.mxu0 %v309
  %415 = vmatpush1.bf16.msra.mxu0 %v308
  %416 = vmatprep.subr.bf16.mxu0 %v305
  %417 = vmatpush1.bf16.msra.mxu0 %v304
  %418 = vmatprep.subr.bf16.mxu0 %v301
  %419 = vmatpush1.bf16.msra.mxu0 %v300
  %420 = vmatprep.subr.bf16.mxu0 %v297
  %421 = vmatpush1.bf16.msra.mxu0 %v296
  %422 = vmatprep.subr.bf16.mxu0 %v293
  %423 = vmatpush1.bf16.msra.mxu0 %v292
  %424 = vmatprep.subr.bf16.mxu0 %v289
  %425 = vmatpush1.bf16.msra.mxu0 %v288
  %426 = vmatprep.subr.bf16.mxu0 %v285
  %427 = vmatpush1.bf16.msra.mxu0 %v284
  %428 = vmatprep.subr.bf16.mxu0 %v345
  %429 = vmatpush2.bf16.msra.mxu0 %v344
  %430 = vmatprep.subr.bf16.mxu0 %v341
  %431 = vmatpush2.bf16.msra.mxu0 %v340
  %432 = vmatprep.subr.bf16.mxu0 %v337
  %433 = vmatpush2.bf16.msra.mxu0 %v336
  %434 = vmatprep.subr.bf16.mxu0 %v333
  %435 = vmatpush2.bf16.msra.mxu0 %v332
  %436 = vmatprep.subr.bf16.mxu0 %v329
  %437 = vmatpush2.bf16.msra.mxu0 %v328
  %438 = vmatprep.subr.bf16.mxu0 %v325
  %439 = vmatpush2.bf16.msra.mxu0 %v324
  %440 = vmatprep.subr.bf16.mxu0 %v321
  %441 = vmatpush2.bf16.msra.mxu0 %v320
  %442 = vmatprep.subr.bf16.mxu0 %v317
  %443 = vmatpush2.bf16.msra.mxu0 %v316
  %444 = vmatprep.mubr.bf16.mxu0 %v89
  %445 = vmatmul.mubr.bf16.gmra.mxu0 %v88
  %v446 = vpop.f32.mrf.mxu0
  %v447 = vadd.f32 %v83, %v446
  %v448 = vpop.f32.mrf.mxu0
  %v449 = vadd.f32 %v83, %v448
  %v450 = vpop.f32.mrf.mxu0
  %v451 = vpop.f32.mrf.mxu0
  %452 = vdwg.mxu0
  %453 = vmatprep.subr.bf16.mxu0 %v315
  %454 = vmatpush1.bf16.msra.mxu0 %v314
  %455 = vmatprep.subr.bf16.mxu0 %v311
  %456 = vmatpush1.bf16.msra.mxu0 %v310
  %457 = vmatprep.subr.bf16.mxu0 %v307
  %458 = vmatpush1.bf16.msra.mxu0 %v306
  %459 = vmatprep.subr.bf16.mxu0 %v303
  %460 = vmatpush1.bf16.msra.mxu0 %v302
  %461 = vmatprep.subr.bf16.mxu0 %v299
  %462 = vmatpush1.bf16.msra.mxu0 %v298
  %463 = vmatprep.subr.bf16.mxu0 %v295
  %464 = vmatpush1.bf16.msra.mxu0 %v294
  %465 = vmatprep.subr.bf16.mxu0 %v291
  %466 = vmatpush1.bf16.msra.mxu0 %v290
  %467 = vmatprep.subr.bf16.mxu0 %v287
  %468 = vmatpush1.bf16.msra.mxu0 %v286
  %469 = vmatprep.subr.bf16.mxu0 %v347
  %470 = vmatpush2.bf16.msra.mxu0 %v346
  %471 = vmatprep.subr.bf16.mxu0 %v343
  %472 = vmatpush2.bf16.msra.mxu0 %v342
  %473 = vmatprep.subr.bf16.mxu0 %v339
  %474 = vmatpush2.bf16.msra.mxu0 %v338
  %475 = vmatprep.subr.bf16.mxu0 %v335
  %476 = vmatpush2.bf16.msra.mxu0 %v334
  %477 = vmatprep.subr.bf16.mxu0 %v331
  %478 = vmatpush2.bf16.msra.mxu0 %v330
  %479 = vmatprep.subr.bf16.mxu0 %v327
  %480 = vmatpush2.bf16.msra.mxu0 %v326
  %481 = vmatprep.subr.bf16.mxu0 %v323
  %482 = vmatpush2.bf16.msra.mxu0 %v322
  %483 = vmatprep.subr.bf16.mxu0 %v319
  %484 = vmatpush2.bf16.msra.mxu0 %v318
  %485 = vmatprep.mubr.bf16.mxu0 %v89
  %486 = vmatmul.mubr.bf16.gmra.mxu0 %v88
  %v487 = vpop.f32.mrf.mxu0
  %v488 = vadd.f32 %v83, %v487
  %v489 = vpop.f32.mrf.mxu0
  %v490 = vadd.f32 %v83, %v489
  %v491 = vpop.f32.mrf.mxu0
  %v492 = vpop.f32.mrf.mxu0
  %493 = vdwg.mxu0
  %v494 = vmax.f32 %v447, 0.0
  %v495 = vmax.f32 %v449, 0.0
  %v496 = vmax.f32 %v488, 0.0
  %v497 = vmax.f32 %v490, 0.0
  %498 = vst [vmem:[%s3] sm:$0xff] %v494
  %499 = vst [vmem:[%s3 + $0x8] sm:$0xff] %v495
  %500 = vst [vmem:[%s3 + $0x10] sm:$0xff] %v496
  %501 = vst [vmem:[%s3 + $0x18] sm:$0xff] %v497
  // Predicated region
  $region14: #{generator_forward.10} parent=0 // pred_check
    _
  $region15: #{generator_forward.10} parent=0 // pred_check_branch
    %503 = sbr.rel (0) target = $region17
  $region16: #{generator_forward.10} parent=0 // pred_region
    _
  $region17: #{generator_forward.10} parent=0 // pred_fallthru
    _
  // Predicated region
  $region18: #{generator_forward.10} parent=0 // pred_check
    _
  $region19: #{generator_forward.10} parent=0 // pred_check_branch
    %505 = sbr.rel (0) target = $region21
  $region20: #{generator_forward.10} parent=0 // pred_region
    _
  $region21: #{generator_forward.10} parent=0 // pred_fallthru
    _

// kernel: generator_forward.11
$region0: #{generator_forward.11}
  #allocation0 [shape = 'u32[]', space=smem, size = 0x4, offset = 0x4, fixed_abs, tag = 'smem constant byte address 0x4 - core index']
  #allocation1 [shape = 'u32[144,128]{1,0:T(1,128)}', space=vmem, size = 0x12000, scoped, tag = 'internal scratch']
  %s0 = inlined_call_operand.vmem [shape: bf16[8,80], index: 0, kind: input, shape index: {}]
  %s1 = inlined_call_operand.vmem [shape: bf16[80,512], index: 1, kind: input, shape index: {}]
  %s2 = inlined_call_operand.vmem [shape: f32[8,1], index: 2, kind: input, shape index: {}]
  %s3 = inlined_call_operand.vmem [shape: f32[8,512], index: 3, kind: output, shape index: {}]
  %s4 = sld [smem:[#allocation0]]
  $region22: #{generator_forward.11} parent=0
    _
  %s6 = ssub.s32 1, %s4
  %s7 = scalar_select 0, %s6, %s4
  // Predicated region
  $region2: #{generator_forward.11} parent=0 // pred_check
    _
  $region3: #{generator_forward.11} parent=0 // pred_check_branch
    %9 = sbr.rel (0) target = $region5
  $region4: #{generator_forward.11} parent=0 // pred_region
    _
  $region5: #{generator_forward.11} parent=0 // pred_fallthru
    _
  // Predicated region
  $region6: #{generator_forward.11} parent=0 // pred_check
    _
  $region7: #{generator_forward.11} parent=0 // pred_check_branch
    %11 = sbr.rel (0) target = $region9
  $region8: #{generator_forward.11} parent=0 // pred_region
    _
  $region9: #{generator_forward.11} parent=0 // pred_fallthru
    _
  // Predicated region
  $region10: #{generator_forward.11} parent=0 // pred_check
    _
  $region11: #{generator_forward.11} parent=0 // pred_check_branch
    %13 = sbr.rel (0) target = $region13
  $region12: #{generator_forward.11} parent=0 // pred_region
    _
  $region13: #{generator_forward.11} parent=0 // pred_fallthru
    _
  %v15 = vld [vmem:[%s0] sm:$0xf]
  %v16 = vld [vmem:[%s1] sm:$0xff]
  %v17 = vld [vmem:[%s1 + $0x8] sm:$0xff]
  %v18 = vld [vmem:[%s1 + $0x10] sm:$0xff]
  %v19 = vld [vmem:[%s1 + $0x18] sm:$0xff]
  %v20 = vld [vmem:[%s1 + $0x20] sm:$0xff]
  %v21 = vld [vmem:[%s1 + $0x28] sm:$0xff]
  %v22 = vld [vmem:[%s1 + $0x30] sm:$0xff]
  %v23 = vld [vmem:[%s1 + $0x38] sm:$0xff]
  %v24 = vld [vmem:[%s1 + $0x40] sm:$0xff]
  %v25 = vld [vmem:[%s1 + $0x48] sm:$0xff]
  %v26 = vld [vmem:[%s1 + $0x50] sm:$0xff]
  %v27 = vld [vmem:[%s1 + $0x58] sm:$0xff]
  %v28 = vld [vmem:[%s1 + $0x60] sm:$0xff]
  %v29 = vld [vmem:[%s1 + $0x68] sm:$0xff]
  %v30 = vld [vmem:[%s1 + $0x70] sm:$0xff]
  %v31 = vld [vmem:[%s1 + $0x78] sm:$0xff]
  %v32 = vld [vmem:[%s1 + $0x80] sm:$0xff]
  %v33 = vld [vmem:[%s1 + $0x88] sm:$0xff]
  %v34 = vld [vmem:[%s1 + $0x90] sm:$0xff]
  %v35 = vld [vmem:[%s1 + $0x98] sm:$0xff]
  %v36 = vld [vmem:[%s2] sm:$0xff]
  %38 = vset.pattern.permute.xlu0 0
  %39 = vperm.xlu0 %38, %v36
  %v40 = vpop.permute.xlu0 %39
  %v62 = vunpack.c.l.b16 %v16
  %v63 = vunpack.c.h.b16 %v16
  %v64 = vunpack.c.l.b16 %v17
  %v65 = vunpack.c.h.b16 %v17
  %v66 = vunpack.c.l.b16 %v18
  %v67 = vunpack.c.h.b16 %v18
  %v68 = vunpack.c.l.b16 %v19
  %v69 = vunpack.c.h.b16 %v19
  %v70 = vunpack.c.l.b16 %v20
  %v71 = vunpack.c.h.b16 %v20
  %v72 = vunpack.c.l.b16 %v21
  %v73 = vunpack.c.h.b16 %v21
  %v74 = vunpack.c.l.b16 %v22
  %v75 = vunpack.c.h.b16 %v22
  %v76 = vunpack.c.l.b16 %v23
  %v77 = vunpack.c.h.b16 %v23
  %v78 = vunpack.c.l.b16 %v24
  %v79 = vunpack.c.h.b16 %v24
  %v80 = vunpack.c.l.b16 %v25
  %v81 = vunpack.c.h.b16 %v25
  %v82 = vunpack.c.l.b16 %v26
  %v83 = vunpack.c.h.b16 %v26
  %v84 = vunpack.c.l.b16 %v27
  %v85 = vunpack.c.h.b16 %v27
  %v86 = vunpack.c.l.b16 %v28
  %v87 = vunpack.c.h.b16 %v28
  %v88 = vunpack.c.l.b16 %v29
  %v89 = vunpack.c.h.b16 %v29
  %v90 = vunpack.c.l.b16 %v30
  %v91 = vunpack.c.h.b16 %v30
  %v92 = vunpack.c.l.b16 %v31
  %v93 = vunpack.c.h.b16 %v31
  %v94 = vunpack.c.l.b16 %v32
  %v95 = vunpack.c.h.b16 %v32
  %v96 = vunpack.c.l.b16 %v33
  %v97 = vunpack.c.h.b16 %v33
  %v98 = vunpack.c.l.b16 %v34
  %v99 = vunpack.c.h.b16 %v34
  %v100 = vunpack.c.l.b16 %v35
  %v101 = vunpack.c.h.b16 %v35
  %v102 = vpack.c.b16 %v66, %v62
  %v103 = vpack.c.b16 %v67, %v63
  %v104 = vpack.c.b16 %v68, %v64
  %v105 = vpack.c.b16 %v69, %v65
  %v106 = vpack.c.b16 %v74, %v70
  %v107 = vpack.c.b16 %v75, %v71
  %v108 = vpack.c.b16 %v76, %v72
  %v109 = vpack.c.b16 %v77, %v73
  %v110 = vpack.c.b16 %v82, %v78
  %v111 = vpack.c.b16 %v83, %v79
  %v112 = vpack.c.b16 %v84, %v80
  %v113 = vpack.c.b16 %v85, %v81
  %v114 = vpack.c.b16 %v90, %v86
  %v115 = vpack.c.b16 %v91, %v87
  %v116 = vpack.c.b16 %v92, %v88
  %v117 = vpack.c.b16 %v93, %v89
  %v118 = vpack.c.b16 %v98, %v94
  %v119 = vpack.c.b16 %v99, %v95
  %v120 = vpack.c.b16 %v100, %v96
  %v121 = vpack.c.b16 %v101, %v97
  %vm142 = vcmask 654336
  %v144 = vsel %vm142, %v15, 0
  %146 = vmatprep.subr.bf16.mxu0 0
  %147 = vmatpush1.bf16.msra.mxu0 0
  %148 = vmatprep.subr.bf16.mxu0 0
  %149 = vmatpush1.bf16.msra.mxu0 0
  %150 = vmatprep.subr.bf16.mxu0 0
  %151 = vmatpush1.bf16.msra.mxu0 0
  %152 = vmatprep.subr.bf16.mxu0 %v119
  %153 = vmatpush1.bf16.msra.mxu0 %v118
  %154 = vmatprep.subr.bf16.mxu0 %v115
  %155 = vmatpush1.bf16.msra.mxu0 %v114
  %156 = vmatprep.subr.bf16.mxu0 %v111
  %157 = vmatpush1.bf16.msra.mxu0 %v110
  %158 = vmatprep.subr.bf16.mxu0 %v107
  %159 = vmatpush1.bf16.msra.mxu0 %v106
  %160 = vmatprep.subr.bf16.mxu0 %v103
  %161 = vmatpush1.bf16.msra.mxu0 %v102
  %162 = vmatprep.subr.bf16.mxu0 0
  %163 = vmatpush2.bf16.msra.mxu0 0
  %164 = vmatprep.subr.bf16.mxu0 0
  %165 = vmatpush2.bf16.msra.mxu0 0
  %166 = vmatprep.subr.bf16.mxu0 0
  %167 = vmatpush2.bf16.msra.mxu0 0
  %168 = vmatprep.subr.bf16.mxu0 0
  %169 = vmatpush2.bf16.msra.mxu0 0
  %170 = vmatprep.subr.bf16.mxu0 0
  %171 = vmatpush2.bf16.msra.mxu0 0
  %172 = vmatprep.subr.bf16.mxu0 0
  %173 = vmatpush2.bf16.msra.mxu0 0
  %174 = vmatprep.subr.bf16.mxu0 0
  %175 = vmatpush2.bf16.msra.mxu0 0
  %176 = vmatprep.subr.bf16.mxu0 0
  %177 = vmatpush2.bf16.msra.mxu0 0
  %178 = vmatprep.mubr.bf16.mxu0 0
  %179 = vmatmul.mubr.bf16.gmra.mxu0 %v144
  %v180 = vpop.f32.mrf.mxu0
  %v181 = vadd.f32 %v40, %v180
  %v182 = vpop.f32.mrf.mxu0
  %v183 = vadd.f32 %v40, %v182
  %v184 = vpop.f32.mrf.mxu0
  %v185 = vpop.f32.mrf.mxu0
  %186 = vdwg.mxu0
  %187 = vmatprep.subr.bf16.mxu0 0
  %188 = vmatpush1.bf16.msra.mxu0 0
  %189 = vmatprep.subr.bf16.mxu0 0
  %190 = vmatpush1.bf16.msra.mxu0 0
  %191 = vmatprep.subr.bf16.mxu0 0
  %192 = vmatpush1.bf16.msra.mxu0 0
  %193 = vmatprep.subr.bf16.mxu0 %v121
  %194 = vmatpush1.bf16.msra.mxu0 %v120
  %195 = vmatprep.subr.bf16.mxu0 %v117
  %196 = vmatpush1.bf16.msra.mxu0 %v116
  %197 = vmatprep.subr.bf16.mxu0 %v113
  %198 = vmatpush1.bf16.msra.mxu0 %v112
  %199 = vmatprep.subr.bf16.mxu0 %v109
  %200 = vmatpush1.bf16.msra.mxu0 %v108
  %201 = vmatprep.subr.bf16.mxu0 %v105
  %202 = vmatpush1.bf16.msra.mxu0 %v104
  %203 = vmatprep.subr.bf16.mxu0 0
  %204 = vmatpush2.bf16.msra.mxu0 0
  %205 = vmatprep.subr.bf16.mxu0 0
  %206 = vmatpush2.bf16.msra.mxu0 0
  %207 = vmatprep.subr.bf16.mxu0 0
  %208 = vmatpush2.bf16.msra.mxu0 0
  %209 = vmatprep.subr.bf16.mxu0 0
  %210 = vmatpush2.bf16.msra.mxu0 0
  %211 = vmatprep.subr.bf16.mxu0 0
  %212 = vmatpush2.bf16.msra.mxu0 0
  %213 = vmatprep.subr.bf16.mxu0 0
  %214 = vmatpush2.bf16.msra.mxu0 0
  %215 = vmatprep.subr.bf16.mxu0 0
  %216 = vmatpush2.bf16.msra.mxu0 0
  %217 = vmatprep.subr.bf16.mxu0 0
  %218 = vmatpush2.bf16.msra.mxu0 0
  %219 = vmatprep.mubr.bf16.mxu0 0
  %220 = vmatmul.mubr.bf16.gmra.mxu0 %v144
  %v221 = vpop.f32.mrf.mxu0
  %v222 = vadd.f32 %v40, %v221
  %v223 = vpop.f32.mrf.mxu0
  %v224 = vadd.f32 %v40, %v223
  %v225 = vpop.f32.mrf.mxu0
  %v226 = vpop.f32.mrf.mxu0
  %227 = vdwg.mxu0
  %228 = vst [vmem:[%s3] sm:$0xff] %v181
  %229 = vst [vmem:[%s3 + $0x8] sm:$0xff] %v183
  %230 = vst [vmem:[%s3 + $0x10] sm:$0xff] %v222
  %231 = vst [vmem:[%s3 + $0x18] sm:$0xff] %v224
  // Predicated region
  $region14: #{generator_forward.11} parent=0 // pred_check
    _
  $region15: #{generator_forward.11} parent=0 // pred_check_branch
    %233 = sbr.rel (0) target = $region17
  $region16: #{generator_forward.11} parent=0 // pred_region
    _
  $region17: #{generator_forward.11} parent=0 // pred_fallthru
    _
  // Predicated region
  $region18: #{generator_forward.11} parent=0 // pred_check
    _
  $region19: #{generator_forward.11} parent=0 // pred_check_branch
    %235 = sbr.rel (0) target = $region21
  $region20: #{generator_forward.11} parent=0 // pred_region
    _
  $region21: #{generator_forward.11} parent=0 // pred_fallthru
    _

</llo_original>
